<compile_context>
chip_gen: v6e
topology: v6e:2x2x1
jax: 0.10.0
libtpu: 0.0.40
codegen_flags: <defaults>
</compile_context>

<pallas_src>
import functools

import jax
import jax.numpy as jnp
from jax.experimental import pallas as pl
from jax.experimental.pallas import tpu as pltpu


# ----------------------------------------------------------------------------- kernel

def lstm_stack_kernel(x_ref,        # (T*Bp, D)   bf16/f32, time-major rows
                      w_ih1_ref,    # (D,   4Hp)  bf16/f32
                      w_hh1_ref,    # (Hp,  4Hp)  bf16/f32
                      b1_ref,       # (1,   4Hp)  f32   (b_ih_l0 + b_hh_l0, gate-padded)
                      w2_ref,       # (2Hp, 4Hp)  bf16/f32  [W_ih_l1 ; W_hh_l1] stacked
                      b2_ref,       # (1,   4Hp)  f32
                      h2_out_ref,   # (Bp,  Hp)   f32  -> last-step layer-2 hidden state
                      xg_ref,       # VMEM scratch (T*Bp, 4Hp) f32: hoisted input proj
                      *, seq_len, batch_p, hidden_p):
    Bp, Hp = batch_p, hidden_p
    mm_dtype = w_hh1_ref.dtype

    # (1) Hoisted input projection: one big, well-shaped MXU matmul over every
    #     timestep at once, bias folded in.  (T*Bp, D) @ (D, 4Hp) -> (T*Bp, 4Hp).
    xg_ref[...] = (
        jnp.dot(x_ref[...], w_ih1_ref[...], preferred_element_type=jnp.float32)
        + b1_ref[...]
    )

    def gate_math(gates, c):
        # Each gate occupies its own 128-lane block -> vreg-aligned slices.
        i = jax.nn.sigmoid(gates[:, 0 * Hp:1 * Hp])
        f = jax.nn.sigmoid(gates[:, 1 * Hp:2 * Hp])
        g = jnp.tanh(gates[:, 2 * Hp:3 * Hp])
        o = jax.nn.sigmoid(gates[:, 3 * Hp:4 * Hp])
        c_new = f * c + i * g
        h_new = o * jnp.tanh(c_new)
        return h_new, c_new

    def step(t, carry):
        h1, c1, h2, c2 = carry                       # f32 (Bp, Hp) each
        row = pl.multiple_of(t * Bp, Bp)

        # Layer 1: input projection precomputed; only the recurrent matmul remains.
        g1 = xg_ref[pl.ds(row, Bp), :] + jnp.dot(
            h1.astype(mm_dtype), w_hh1_ref[...],
            preferred_element_type=jnp.float32)
        h1, c1 = gate_math(g1, c1)

        # Layer 2 (inter-layer dropout is identity at inference): fused single matmul
        # [h1, h2] @ [W_ih_l1 ; W_hh_l1].
        hcat = jnp.concatenate([h1, h2], axis=-1).astype(mm_dtype)   # (Bp, 2Hp)
        g2 = jnp.dot(hcat, w2_ref[...],
                     preferred_element_type=jnp.float32) + b2_ref[...]
        h2, c2 = gate_math(g2, c2)
        return (h1, c1, h2, c2)

    z = jnp.zeros((Bp, Hp), jnp.float32)
    _, _, h2, _ = jax.lax.fori_loop(0, seq_len, step, (z, z, z, z), unroll=True)

    # Lane-dense (Bp, Hp) output; the tiny final Linear is done in XLA outside.
    h2_out_ref[...] = h2


# ------------------------------------------------------------------- parameter prep

def _pad_gate_cols(w, H, Hp):
    """(in, 4H) -> (in, 4Hp): each gate's H columns start on its own 128-lane block."""
    n_in = w.shape[0]
    out = jnp.zeros((n_in, 4 * Hp), w.dtype)
    for g in range(4):
        out = out.at[:, g * Hp:g * Hp + H].set(w[:, g * H:(g + 1) * H])
    return out


def prepare_kernel_params(params, hidden_dim, matmul_dtype):
    """PyTorch-layout params -> right-multiply, gate-padded, stacked kernel weights."""
    H = hidden_dim
    Hp = -(-H // 128) * 128                                   # pad hidden to lane width

    w_ih1 = _pad_gate_cols(params["weight_ih_l0"].T, H, Hp)   # (D, 4Hp)
    w_hh1 = jnp.zeros((Hp, 4 * Hp), jnp.float32).at[:H].set(
        _pad_gate_cols(params["weight_hh_l0"].T, H, Hp))      # (Hp, 4Hp)
    b1 = _pad_gate_cols(
        (params["bias_ih_l0"] + params["bias_hh_l0"])[None, :], H, Hp)   # (1, 4Hp)

    w_ih2 = jnp.zeros((Hp, 4 * Hp), jnp.float32).at[:H].set(
        _pad_gate_cols(params["weight_ih_l1"].T, H, Hp))
    w_hh2 = jnp.zeros((Hp, 4 * Hp), jnp.float32).at[:H].set(
        _pad_gate_cols(params["weight_hh_l1"].T, H, Hp))
    w2 = jnp.concatenate([w_ih2, w_hh2], axis=0)              # (2Hp, 4Hp)
    b2 = _pad_gate_cols(
        (params["bias_ih_l1"] + params["bias_hh_l1"])[None, :], H, Hp)

    return (w_ih1.astype(matmul_dtype), w_hh1.astype(matmul_dtype),
            b1.astype(jnp.float32), w2.astype(matmul_dtype),
            b2.astype(jnp.float32), Hp)


# --------------------------------------------------------------------------- wrapper

@functools.partial(jax.jit, static_argnums=(2, 3, 4))
def lstm_model_forward(x, params, hidden_dim, output_dim,
                       matmul_dtype=jnp.bfloat16):
    """x: (B, T, D) float32 (PyTorch batch_first). Returns (B, output_dim) float32."""
    B, T, D = x.shape
    H = hidden_dim
    w_ih1, w_hh1, b1, w2, b2, Hp = prepare_kernel_params(params, H, matmul_dtype)

    Bp = -(-B // 8) * 8                                       # pad batch to sublanes
    x_tm = jnp.transpose(x, (1, 0, 2))                        # time-major (T, B, D)
    x_tm = jnp.pad(x_tm, ((0, 0), (0, Bp - B), (0, 0)))       # (T, Bp, D)
    x2d = x_tm.reshape(T * Bp, D).astype(matmul_dtype)        # rows = t*Bp + b

    kernel = functools.partial(lstm_stack_kernel,
                               seq_len=T, batch_p=Bp, hidden_p=Hp)
    vmem = pl.BlockSpec(memory_space=pltpu.MemorySpace.VMEM)

    h2_padded = pl.pallas_call(
        kernel,
        out_shape=jax.ShapeDtypeStruct((Bp, Hp), jnp.float32),
        in_specs=[vmem] * 6,
        out_specs=vmem,
        scratch_shapes=[pltpu.VMEM((T * Bp, 4 * Hp), jnp.float32)],
    )(x2d, w_ih1, w_hh1, b1, w2, b2)

    # Eval-mode dropout is identity; the once-only fc runs in plain XLA (keeps the
    # kernel output lane-dense and avoids buffering fc weights every step).
    h2 = h2_padded[:B, :H]
    return h2 @ params["fc_weight"].T + params["fc_bias"]


# --------------------------------------------------------------- init & pure-JAX ref

def init_params(key, input_dim, hidden_dim, output_dim):
    """Deterministic init with PyTorch nn.LSTM / nn.Linear layouts (f32)."""
    H = hidden_dim
    k = 1.0 / (H ** 0.5)
    keys = jax.random.split(key, 10)
    u = lambda kk, shape: jax.random.uniform(kk, shape, jnp.float32, -k, k)
    return dict(
        weight_ih_l0=u(keys[0], (4 * H, input_dim)),
        weight_hh_l0=u(keys[1], (4 * H, H)),
        bias_ih_l0=u(keys[2], (4 * H,)),
        bias_hh_l0=u(keys[3], (4 * H,)),
        weight_ih_l1=u(keys[4], (4 * H, H)),
        weight_hh_l1=u(keys[5], (4 * H, H)),
        bias_ih_l1=u(keys[6], (4 * H,)),
        bias_hh_l1=u(keys[7], (4 * H,)),
        fc_weight=u(keys[8], (output_dim, H)),
        fc_bias=u(keys[9], (output_dim,)),
    )


def reference_forward(x, params, hidden_dim, matmul_dtype=jnp.float32):
    """Pure-JAX reference (lax.scan) in PyTorch layout; matmul_dtype mirrors the
    kernel's bf16-input / f32-accumulation scheme when set to bfloat16."""
    p = params
    H = hidden_dim
    md = matmul_dtype

    def cell(x_t, h, c, w_ih, w_hh, b):
        g = (jnp.dot(x_t.astype(md), w_ih.T.astype(md),
                     preferred_element_type=jnp.float32)
             + jnp.dot(h.astype(md), w_hh.T.astype(md),
                       preferred_element_type=jnp.float32)
             + b)
        i = jax.nn.sigmoid(g[:, 0 * H:1 * H])
        f = jax.nn.sigmoid(g[:, 1 * H:2 * H])
        gg = jnp.tanh(g[:, 2 * H:3 * H])
        o = jax.nn.sigmoid(g[:, 3 * H:4 * H])
        c_new = f * c + i * gg
        return o * jnp.tanh(c_new), c_new

    b1 = p["bias_ih_l0"] + p["bias_hh_l0"]
    b2 = p["bias_ih_l1"] + p["bias_hh_l1"]

    def step(carry, x_t):
        h1, c1, h2, c2 = carry
        h1, c1 = cell(x_t, h1, c1, p["weight_ih_l0"], p["weight_hh_l0"], b1)
        h2, c2 = cell(h1, h2, c2, p["weight_ih_l1"], p["weight_hh_l1"], b2)
        return (h1, c1, h2, c2), None

    B = x.shape[0]
    z = jnp.zeros((B, H), jnp.float32)
    (_, _, h2, _), _ = jax.lax.scan(step, (z, z, z, z), jnp.transpose(x, (1, 0, 2)))
    return h2 @ p["fc_weight"].T + p["fc_bias"]


# ------------------------------------------------------------------------------ main

if __name__ == "__main__":
    batch, seq_len, input_dim = 2, 8, 4
    hidden_dim, output_dim = 32, 1

    key = jax.random.PRNGKey(0)
    kx, kp = jax.random.split(key)
    x = jax.random.normal(kx, (batch, seq_len, input_dim), jnp.float32)
    params = init_params(kp, input_dim, hidden_dim, output_dim)

    out = lstm_model_forward(x, params, hidden_dim, output_dim)
    out = jax.block_until_ready(out)
    assert out.shape == (batch, output_dim)

    # Tight check vs a reference using the same bf16-weight / f32-accumulate scheme.
    ref_bf16 = reference_forward(x, params, hidden_dim, matmul_dtype=jnp.bfloat16)
    assert jnp.allclose(out, ref_bf16, atol=1e-3, rtol=1e-3), (out, ref_bf16)

    # Loose sanity check vs the full-f32 (PyTorch-precision) reference.
    ref_f32 = reference_forward(x, params, hidden_dim)
    assert jnp.allclose(out, ref_f32, atol=5e-2, rtol=5e-2), (out, ref_f32)

    print("KERNEL_OK")
</pallas_src>

<mosaic_0001>
module attributes {stable_mosaic.version = 11 : i64} {
  func.func @lstm_stack_kernel(%arg0: memref<64x4xbf16, #tpu.memory_space<vmem>>, %arg1: memref<4x512xbf16, #tpu.memory_space<vmem>>, %arg2: memref<128x512xbf16, #tpu.memory_space<vmem>>, %arg3: memref<1x512xf32, #tpu.memory_space<vmem>>, %arg4: memref<256x512xbf16, #tpu.memory_space<vmem>>, %arg5: memref<1x512xf32, #tpu.memory_space<vmem>>, %arg6: memref<8x128xf32, #tpu.memory_space<vmem>>, %arg7: memref<64x512xf32, #tpu.memory_space<vmem>>) attributes {dimension_semantics = [], scalar_prefetch = 0 : i64, scratch_operands = 1 : i64, tpu.core_type = #tpu.core_type<tc>} {
    %c0 = arith.constant 0 : index
    %c0_0 = arith.constant 0 : index
    %0 = vector.load %arg0[%c0, %c0_0] : memref<64x4xbf16, #tpu.memory_space<vmem>>, vector<64x4xbf16>
    %c0_1 = arith.constant 0 : index
    %c0_2 = arith.constant 0 : index
    %1 = vector.load %arg1[%c0_1, %c0_2] : memref<4x512xbf16, #tpu.memory_space<vmem>>, vector<4x512xbf16>
    %cst = arith.constant dense<0.000000e+00> : vector<64x512xf32>
    %2 = tpu.matmul %0, %1, %cst {dimension_numbers = #tpu.dot_dimension_numbers<[1], [0], [0], [1], [0, 0, 1, 1], [], []>} : vector<64x4xbf16>, vector<4x512xbf16>, vector<64x512xf32> -> vector<64x512xf32>
    %c0_3 = arith.constant 0 : index
    %c0_4 = arith.constant 0 : index
    %3 = vector.load %arg3[%c0_3, %c0_4] : memref<1x512xf32, #tpu.memory_space<vmem>>, vector<1x512xf32>
    %4 = vector.broadcast %3 : vector<1x512xf32> to vector<64x512xf32>
    %5 = arith.addf %2, %4 : vector<64x512xf32>
    %c0_5 = arith.constant 0 : index
    %c0_6 = arith.constant 0 : index
    %6 = vector.load %arg7[%c0_5, %c0_6] : memref<64x512xf32, #tpu.memory_space<vmem>>, vector<64x512xf32>
    tpu.vector_store %arg7[%c0_5, %c0_6], %5 {strides = array<i32>} : memref<64x512xf32, #tpu.memory_space<vmem>>, vector<64x512xf32>,
    %cst_7 = arith.constant 0.000000e+00 : f32
    %7 = vector.broadcast %cst_7 : f32 to vector<8x128xf32>
    %c0_i32 = arith.constant 0 : i32
    %c8_i32 = arith.constant 8 : i32
    %8 = arith.muli %c0_i32, %c8_i32 : i32
    %9 = tpu.assume_multiple %8, 8 : i32
    %10 = arith.index_cast %9 : i32 to index
    %c0_8 = arith.constant 0 : index
    %11 = vector.load %arg7[%10, %c0_8] : memref<64x512xf32, #tpu.memory_space<vmem>>, vector<8x512xf32>
    %12 = arith.truncf %7 : vector<8x128xf32> to vector<8x128xbf16>
    %c0_9 = arith.constant 0 : index
    %c0_10 = arith.constant 0 : index
    %13 = vector.load %arg2[%c0_9, %c0_10] : memref<128x512xbf16, #tpu.memory_space<vmem>>, vector<128x512xbf16>
    %cst_11 = arith.constant dense<0.000000e+00> : vector<8x512xf32>
    %14 = tpu.matmul %12, %13, %cst_11 {dimension_numbers = #tpu.dot_dimension_numbers<[1], [0], [0], [1], [0, 0, 1, 1], [], []>} : vector<8x128xbf16>, vector<128x512xbf16>, vector<8x512xf32> -> vector<8x512xf32>
    %15 = arith.addf %11, %14 : vector<8x512xf32>
    %16 = vector.extract_strided_slice %15 {offsets = [0, 0], sizes = [8, 128], strides = [1, 1]} : vector<8x512xf32> to vector<8x128xf32>
    %17 = arith.negf %16 : vector<8x128xf32>
    %18 = math.exp %17 : vector<8x128xf32>
    %cst_12 = arith.constant 1.000000e+00 : f32
    %19 = vector.broadcast %cst_12 : f32 to vector<8x128xf32>
    %20 = arith.addf %19, %18 : vector<8x128xf32>
    %21 = arith.divf %19, %20 : vector<8x128xf32>
    %22 = vector.extract_strided_slice %15 {offsets = [0, 128], sizes = [8, 128], strides = [1, 1]} : vector<8x512xf32> to vector<8x128xf32>
    %23 = arith.negf %22 : vector<8x128xf32>
    %24 = math.exp %23 : vector<8x128xf32>
    %cst_13 = arith.constant 1.000000e+00 : f32
    %25 = vector.broadcast %cst_13 : f32 to vector<8x128xf32>
    %26 = arith.addf %25, %24 : vector<8x128xf32>
    %27 = arith.divf %25, %26 : vector<8x128xf32>
    %28 = vector.extract_strided_slice %15 {offsets = [0, 256], sizes = [8, 128], strides = [1, 1]} : vector<8x512xf32> to vector<8x128xf32>
    %29 = math.tanh %28 : vector<8x128xf32>
    %30 = vector.extract_strided_slice %15 {offsets = [0, 384], sizes = [8, 128], strides = [1, 1]} : vector<8x512xf32> to vector<8x128xf32>
    %31 = arith.negf %30 : vector<8x128xf32>
    %32 = math.exp %31 : vector<8x128xf32>
    %cst_14 = arith.constant 1.000000e+00 : f32
    %33 = vector.broadcast %cst_14 : f32 to vector<8x128xf32>
    %34 = arith.addf %33, %32 : vector<8x128xf32>
    %35 = arith.divf %33, %34 : vector<8x128xf32>
    %36 = arith.mulf %27, %7 : vector<8x128xf32>
    %37 = arith.mulf %21, %29 : vector<8x128xf32>
    %38 = arith.addf %36, %37 : vector<8x128xf32>
    %39 = math.tanh %38 : vector<8x128xf32>
    %40 = arith.mulf %35, %39 : vector<8x128xf32>
    %41 = tpu.concatenate %40, %7 in 1 : vector<8x128xf32>, vector<8x128xf32> -> vector<8x256xf32>
    %42 = arith.truncf %41 : vector<8x256xf32> to vector<8x256xbf16>
    %c0_15 = arith.constant 0 : index
    %c0_16 = arith.constant 0 : index
    %43 = vector.load %arg4[%c0_15, %c0_16] : memref<256x512xbf16, #tpu.memory_space<vmem>>, vector<256x512xbf16>
    %cst_17 = arith.constant dense<0.000000e+00> : vector<8x512xf32>
    %44 = tpu.matmul %42, %43, %cst_17 {dimension_numbers = #tpu.dot_dimension_numbers<[1], [0], [0], [1], [0, 0, 1, 1], [], []>} : vector<8x256xbf16>, vector<256x512xbf16>, vector<8x512xf32> -> vector<8x512xf32>
    %c0_18 = arith.constant 0 : index
    %c0_19 = arith.constant 0 : index
    %45 = vector.load %arg5[%c0_18, %c0_19] : memref<1x512xf32, #tpu.memory_space<vmem>>, vector<1x512xf32>
    %46 = vector.broadcast %45 : vector<1x512xf32> to vector<8x512xf32>
    %47 = arith.addf %44, %46 : vector<8x512xf32>
    %48 = vector.extract_strided_slice %47 {offsets = [0, 0], sizes = [8, 128], strides = [1, 1]} : vector<8x512xf32> to vector<8x128xf32>
    %49 = arith.negf %48 : vector<8x128xf32>
    %50 = math.exp %49 : vector<8x128xf32>
    %cst_20 = arith.constant 1.000000e+00 : f32
    %51 = vector.broadcast %cst_20 : f32 to vector<8x128xf32>
    %52 = arith.addf %51, %50 : vector<8x128xf32>
    %53 = arith.divf %51, %52 : vector<8x128xf32>
    %54 = vector.extract_strided_slice %47 {offsets = [0, 128], sizes = [8, 128], strides = [1, 1]} : vector<8x512xf32> to vector<8x128xf32>
    %55 = arith.negf %54 : vector<8x128xf32>
    %56 = math.exp %55 : vector<8x128xf32>
    %cst_21 = arith.constant 1.000000e+00 : f32
    %57 = vector.broadcast %cst_21 : f32 to vector<8x128xf32>
    %58 = arith.addf %57, %56 : vector<8x128xf32>
    %59 = arith.divf %57, %58 : vector<8x128xf32>
    %60 = vector.extract_strided_slice %47 {offsets = [0, 256], sizes = [8, 128], strides = [1, 1]} : vector<8x512xf32> to vector<8x128xf32>
    %61 = math.tanh %60 : vector<8x128xf32>
    %62 = vector.extract_strided_slice %47 {offsets = [0, 384], sizes = [8, 128], strides = [1, 1]} : vector<8x512xf32> to vector<8x128xf32>
    %63 = arith.negf %62 : vector<8x128xf32>
    %64 = math.exp %63 : vector<8x128xf32>
    %cst_22 = arith.constant 1.000000e+00 : f32
    %65 = vector.broadcast %cst_22 : f32 to vector<8x128xf32>
    %66 = arith.addf %65, %64 : vector<8x128xf32>
    %67 = arith.divf %65, %66 : vector<8x128xf32>
    %68 = arith.mulf %59, %7 : vector<8x128xf32>
    %69 = arith.mulf %53, %61 : vector<8x128xf32>
    %70 = arith.addf %68, %69 : vector<8x128xf32>
    %71 = math.tanh %70 : vector<8x128xf32>
    %72 = arith.mulf %67, %71 : vector<8x128xf32>
    %c1_i32 = arith.constant 1 : i32
    %c8_i32_23 = arith.constant 8 : i32
    %73 = arith.muli %c1_i32, %c8_i32_23 : i32
    %74 = tpu.assume_multiple %73, 8 : i32
    %75 = arith.index_cast %74 : i32 to index
    %c0_24 = arith.constant 0 : index
    %76 = vector.load %arg7[%75, %c0_24] : memref<64x512xf32, #tpu.memory_space<vmem>>, vector<8x512xf32>
    %77 = arith.truncf %40 : vector<8x128xf32> to vector<8x128xbf16>
    %c0_25 = arith.constant 0 : index
    %c0_26 = arith.constant 0 : index
    %78 = vector.load %arg2[%c0_25, %c0_26] : memref<128x512xbf16, #tpu.memory_space<vmem>>, vector<128x512xbf16>
    %cst_27 = arith.constant dense<0.000000e+00> : vector<8x512xf32>
    %79 = tpu.matmul %77, %78, %cst_27 {dimension_numbers = #tpu.dot_dimension_numbers<[1], [0], [0], [1], [0, 0, 1, 1], [], []>} : vector<8x128xbf16>, vector<128x512xbf16>, vector<8x512xf32> -> vector<8x512xf32>
    %80 = arith.addf %76, %79 : vector<8x512xf32>
    %81 = vector.extract_strided_slice %80 {offsets = [0, 0], sizes = [8, 128], strides = [1, 1]} : vector<8x512xf32> to vector<8x128xf32>
    %82 = arith.negf %81 : vector<8x128xf32>
    %83 = math.exp %82 : vector<8x128xf32>
    %cst_28 = arith.constant 1.000000e+00 : f32
    %84 = vector.broadcast %cst_28 : f32 to vector<8x128xf32>
    %85 = arith.addf %84, %83 : vector<8x128xf32>
    %86 = arith.divf %84, %85 : vector<8x128xf32>
    %87 = vector.extract_strided_slice %80 {offsets = [0, 128], sizes = [8, 128], strides = [1, 1]} : vector<8x512xf32> to vector<8x128xf32>
    %88 = arith.negf %87 : vector<8x128xf32>
    %89 = math.exp %88 : vector<8x128xf32>
    %cst_29 = arith.constant 1.000000e+00 : f32
    %90 = vector.broadcast %cst_29 : f32 to vector<8x128xf32>
    %91 = arith.addf %90, %89 : vector<8x128xf32>
    %92 = arith.divf %90, %91 : vector<8x128xf32>
    %93 = vector.extract_strided_slice %80 {offsets = [0, 256], sizes = [8, 128], strides = [1, 1]} : vector<8x512xf32> to vector<8x128xf32>
    %94 = math.tanh %93 : vector<8x128xf32>
    %95 = vector.extract_strided_slice %80 {offsets = [0, 384], sizes = [8, 128], strides = [1, 1]} : vector<8x512xf32> to vector<8x128xf32>
    %96 = arith.negf %95 : vector<8x128xf32>
    %97 = math.exp %96 : vector<8x128xf32>
    %cst_30 = arith.constant 1.000000e+00 : f32
    %98 = vector.broadcast %cst_30 : f32 to vector<8x128xf32>
    %99 = arith.addf %98, %97 : vector<8x128xf32>
    %100 = arith.divf %98, %99 : vector<8x128xf32>
    %101 = arith.mulf %92, %38 : vector<8x128xf32>
    %102 = arith.mulf %86, %94 : vector<8x128xf32>
    %103 = arith.addf %101, %102 : vector<8x128xf32>
    %104 = math.tanh %103 : vector<8x128xf32>
    %105 = arith.mulf %100, %104 : vector<8x128xf32>
    %106 = tpu.concatenate %105, %72 in 1 : vector<8x128xf32>, vector<8x128xf32> -> vector<8x256xf32>
    %107 = arith.truncf %106 : vector<8x256xf32> to vector<8x256xbf16>
    %c0_31 = arith.constant 0 : index
    %c0_32 = arith.constant 0 : index
    %108 = vector.load %arg4[%c0_31, %c0_32] : memref<256x512xbf16, #tpu.memory_space<vmem>>, vector<256x512xbf16>
    %cst_33 = arith.constant dense<0.000000e+00> : vector<8x512xf32>
    %109 = tpu.matmul %107, %108, %cst_33 {dimension_numbers = #tpu.dot_dimension_numbers<[1], [0], [0], [1], [0, 0, 1, 1], [], []>} : vector<8x256xbf16>, vector<256x512xbf16>, vector<8x512xf32> -> vector<8x512xf32>
    %c0_34 = arith.constant 0 : index
    %c0_35 = arith.constant 0 : index
    %110 = vector.load %arg5[%c0_34, %c0_35] : memref<1x512xf32, #tpu.memory_space<vmem>>, vector<1x512xf32>
    %111 = vector.broadcast %110 : vector<1x512xf32> to vector<8x512xf32>
    %112 = arith.addf %109, %111 : vector<8x512xf32>
    %113 = vector.extract_strided_slice %112 {offsets = [0, 0], sizes = [8, 128], strides = [1, 1]} : vector<8x512xf32> to vector<8x128xf32>
    %114 = arith.negf %113 : vector<8x128xf32>
    %115 = math.exp %114 : vector<8x128xf32>
    %cst_36 = arith.constant 1.000000e+00 : f32
    %116 = vector.broadcast %cst_36 : f32 to vector<8x128xf32>
    %117 = arith.addf %116, %115 : vector<8x128xf32>
    %118 = arith.divf %116, %117 : vector<8x128xf32>
    %119 = vector.extract_strided_slice %112 {offsets = [0, 128], sizes = [8, 128], strides = [1, 1]} : vector<8x512xf32> to vector<8x128xf32>
    %120 = arith.negf %119 : vector<8x128xf32>
    %121 = math.exp %120 : vector<8x128xf32>
    %cst_37 = arith.constant 1.000000e+00 : f32
    %122 = vector.broadcast %cst_37 : f32 to vector<8x128xf32>
    %123 = arith.addf %122, %121 : vector<8x128xf32>
    %124 = arith.divf %122, %123 : vector<8x128xf32>
    %125 = vector.extract_strided_slice %112 {offsets = [0, 256], sizes = [8, 128], strides = [1, 1]} : vector<8x512xf32> to vector<8x128xf32>
    %126 = math.tanh %125 : vector<8x128xf32>
    %127 = vector.extract_strided_slice %112 {offsets = [0, 384], sizes = [8, 128], strides = [1, 1]} : vector<8x512xf32> to vector<8x128xf32>
    %128 = arith.negf %127 : vector<8x128xf32>
    %129 = math.exp %128 : vector<8x128xf32>
    %cst_38 = arith.constant 1.000000e+00 : f32
    %130 = vector.broadcast %cst_38 : f32 to vector<8x128xf32>
    %131 = arith.addf %130, %129 : vector<8x128xf32>
    %132 = arith.divf %130, %131 : vector<8x128xf32>
    %133 = arith.mulf %124, %70 : vector<8x128xf32>
    %134 = arith.mulf %118, %126 : vector<8x128xf32>
    %135 = arith.addf %133, %134 : vector<8x128xf32>
    %136 = math.tanh %135 : vector<8x128xf32>
    %137 = arith.mulf %132, %136 : vector<8x128xf32>
    %c2_i32 = arith.constant 2 : i32
    %c8_i32_39 = arith.constant 8 : i32
    %138 = arith.muli %c2_i32, %c8_i32_39 : i32
    %139 = tpu.assume_multiple %138, 8 : i32
    %140 = arith.index_cast %139 : i32 to index
    %c0_40 = arith.constant 0 : index
    %141 = vector.load %arg7[%140, %c0_40] : memref<64x512xf32, #tpu.memory_space<vmem>>, vector<8x512xf32>
    %142 = arith.truncf %105 : vector<8x128xf32> to vector<8x128xbf16>
    %c0_41 = arith.constant 0 : index
    %c0_42 = arith.constant 0 : index
    %143 = vector.load %arg2[%c0_41, %c0_42] : memref<128x512xbf16, #tpu.memory_space<vmem>>, vector<128x512xbf16>
    %cst_43 = arith.constant dense<0.000000e+00> : vector<8x512xf32>
    %144 = tpu.matmul %142, %143, %cst_43 {dimension_numbers = #tpu.dot_dimension_numbers<[1], [0], [0], [1], [0, 0, 1, 1], [], []>} : vector<8x128xbf16>, vector<128x512xbf16>, vector<8x512xf32> -> vector<8x512xf32>
    %145 = arith.addf %141, %144 : vector<8x512xf32>
    %146 = vector.extract_strided_slice %145 {offsets = [0, 0], sizes = [8, 128], strides = [1, 1]} : vector<8x512xf32> to vector<8x128xf32>
    %147 = arith.negf %146 : vector<8x128xf32>
    %148 = math.exp %147 : vector<8x128xf32>
    %cst_44 = arith.constant 1.000000e+00 : f32
    %149 = vector.broadcast %cst_44 : f32 to vector<8x128xf32>
    %150 = arith.addf %149, %148 : vector<8x128xf32>
    %151 = arith.divf %149, %150 : vector<8x128xf32>
    %152 = vector.extract_strided_slice %145 {offsets = [0, 128], sizes = [8, 128], strides = [1, 1]} : vector<8x512xf32> to vector<8x128xf32>
    %153 = arith.negf %152 : vector<8x128xf32>
    %154 = math.exp %153 : vector<8x128xf32>
    %cst_45 = arith.constant 1.000000e+00 : f32
    %155 = vector.broadcast %cst_45 : f32 to vector<8x128xf32>
    %156 = arith.addf %155, %154 : vector<8x128xf32>
    %157 = arith.divf %155, %156 : vector<8x128xf32>
    %158 = vector.extract_strided_slice %145 {offsets = [0, 256], sizes = [8, 128], strides = [1, 1]} : vector<8x512xf32> to vector<8x128xf32>
    %159 = math.tanh %158 : vector<8x128xf32>
    %160 = vector.extract_strided_slice %145 {offsets = [0, 384], sizes = [8, 128], strides = [1, 1]} : vector<8x512xf32> to vector<8x128xf32>
    %161 = arith.negf %160 : vector<8x128xf32>
    %162 = math.exp %161 : vector<8x128xf32>
    %cst_46 = arith.constant 1.000000e+00 : f32
    %163 = vector.broadcast %cst_46 : f32 to vector<8x128xf32>
    %164 = arith.addf %163, %162 : vector<8x128xf32>
    %165 = arith.divf %163, %164 : vector<8x128xf32>
    %166 = arith.mulf %157, %103 : vector<8x128xf32>
    %167 = arith.mulf %151, %159 : vector<8x128xf32>
    %168 = arith.addf %166, %167 : vector<8x128xf32>
    %169 = math.tanh %168 : vector<8x128xf32>
    %170 = arith.mulf %165, %169 : vector<8x128xf32>
    %171 = tpu.concatenate %170, %137 in 1 : vector<8x128xf32>, vector<8x128xf32> -> vector<8x256xf32>
    %172 = arith.truncf %171 : vector<8x256xf32> to vector<8x256xbf16>
    %c0_47 = arith.constant 0 : index
    %c0_48 = arith.constant 0 : index
    %173 = vector.load %arg4[%c0_47, %c0_48] : memref<256x512xbf16, #tpu.memory_space<vmem>>, vector<256x512xbf16>
    %cst_49 = arith.constant dense<0.000000e+00> : vector<8x512xf32>
    %174 = tpu.matmul %172, %173, %cst_49 {dimension_numbers = #tpu.dot_dimension_numbers<[1], [0], [0], [1], [0, 0, 1, 1], [], []>} : vector<8x256xbf16>, vector<256x512xbf16>, vector<8x512xf32> -> vector<8x512xf32>
    %c0_50 = arith.constant 0 : index
    %c0_51 = arith.constant 0 : index
    %175 = vector.load %arg5[%c0_50, %c0_51] : memref<1x512xf32, #tpu.memory_space<vmem>>, vector<1x512xf32>
    %176 = vector.broadcast %175 : vector<1x512xf32> to vector<8x512xf32>
    %177 = arith.addf %174, %176 : vector<8x512xf32>
    %178 = vector.extract_strided_slice %177 {offsets = [0, 0], sizes = [8, 128], strides = [1, 1]} : vector<8x512xf32> to vector<8x128xf32>
    %179 = arith.negf %178 : vector<8x128xf32>
    %180 = math.exp %179 : vector<8x128xf32>
    %cst_52 = arith.constant 1.000000e+00 : f32
    %181 = vector.broadcast %cst_52 : f32 to vector<8x128xf32>
    %182 = arith.addf %181, %180 : vector<8x128xf32>
    %183 = arith.divf %181, %182 : vector<8x128xf32>
    %184 = vector.extract_strided_slice %177 {offsets = [0, 128], sizes = [8, 128], strides = [1, 1]} : vector<8x512xf32> to vector<8x128xf32>
    %185 = arith.negf %184 : vector<8x128xf32>
    %186 = math.exp %185 : vector<8x128xf32>
    %cst_53 = arith.constant 1.000000e+00 : f32
    %187 = vector.broadcast %cst_53 : f32 to vector<8x128xf32>
    %188 = arith.addf %187, %186 : vector<8x128xf32>
    %189 = arith.divf %187, %188 : vector<8x128xf32>
    %190 = vector.extract_strided_slice %177 {offsets = [0, 256], sizes = [8, 128], strides = [1, 1]} : vector<8x512xf32> to vector<8x128xf32>
    %191 = math.tanh %190 : vector<8x128xf32>
    %192 = vector.extract_strided_slice %177 {offsets = [0, 384], sizes = [8, 128], strides = [1, 1]} : vector<8x512xf32> to vector<8x128xf32>
    %193 = arith.negf %192 : vector<8x128xf32>
    %194 = math.exp %193 : vector<8x128xf32>
    %cst_54 = arith.constant 1.000000e+00 : f32
    %195 = vector.broadcast %cst_54 : f32 to vector<8x128xf32>
    %196 = arith.addf %195, %194 : vector<8x128xf32>
    %197 = arith.divf %195, %196 : vector<8x128xf32>
    %198 = arith.mulf %189, %135 : vector<8x128xf32>
    %199 = arith.mulf %183, %191 : vector<8x128xf32>
    %200 = arith.addf %198, %199 : vector<8x128xf32>
    %201 = math.tanh %200 : vector<8x128xf32>
    %202 = arith.mulf %197, %201 : vector<8x128xf32>
    %c3_i32 = arith.constant 3 : i32
    %c8_i32_55 = arith.constant 8 : i32
    %203 = arith.muli %c3_i32, %c8_i32_55 : i32
    %204 = tpu.assume_multiple %203, 8 : i32
    %205 = arith.index_cast %204 : i32 to index
    %c0_56 = arith.constant 0 : index
    %206 = vector.load %arg7[%205, %c0_56] : memref<64x512xf32, #tpu.memory_space<vmem>>, vector<8x512xf32>
    %207 = arith.truncf %170 : vector<8x128xf32> to vector<8x128xbf16>
    %c0_57 = arith.constant 0 : index
    %c0_58 = arith.constant 0 : index
    %208 = vector.load %arg2[%c0_57, %c0_58] : memref<128x512xbf16, #tpu.memory_space<vmem>>, vector<128x512xbf16>
    %cst_59 = arith.constant dense<0.000000e+00> : vector<8x512xf32>
    %209 = tpu.matmul %207, %208, %cst_59 {dimension_numbers = #tpu.dot_dimension_numbers<[1], [0], [0], [1], [0, 0, 1, 1], [], []>} : vector<8x128xbf16>, vector<128x512xbf16>, vector<8x512xf32> -> vector<8x512xf32>
    %210 = arith.addf %206, %209 : vector<8x512xf32>
    %211 = vector.extract_strided_slice %210 {offsets = [0, 0], sizes = [8, 128], strides = [1, 1]} : vector<8x512xf32> to vector<8x128xf32>
    %212 = arith.negf %211 : vector<8x128xf32>
    %213 = math.exp %212 : vector<8x128xf32>
    %cst_60 = arith.constant 1.000000e+00 : f32
    %214 = vector.broadcast %cst_60 : f32 to vector<8x128xf32>
    %215 = arith.addf %214, %213 : vector<8x128xf32>
    %216 = arith.divf %214, %215 : vector<8x128xf32>
    %217 = vector.extract_strided_slice %210 {offsets = [0, 128], sizes = [8, 128], strides = [1, 1]} : vector<8x512xf32> to vector<8x128xf32>
    %218 = arith.negf %217 : vector<8x128xf32>
    %219 = math.exp %218 : vector<8x128xf32>
    %cst_61 = arith.constant 1.000000e+00 : f32
    %220 = vector.broadcast %cst_61 : f32 to vector<8x128xf32>
    %221 = arith.addf %220, %219 : vector<8x128xf32>
    %222 = arith.divf %220, %221 : vector<8x128xf32>
    %223 = vector.extract_strided_slice %210 {offsets = [0, 256], sizes = [8, 128], strides = [1, 1]} : vector<8x512xf32> to vector<8x128xf32>
    %224 = math.tanh %223 : vector<8x128xf32>
    %225 = vector.extract_strided_slice %210 {offsets = [0, 384], sizes = [8, 128], strides = [1, 1]} : vector<8x512xf32> to vector<8x128xf32>
    %226 = arith.negf %225 : vector<8x128xf32>
    %227 = math.exp %226 : vector<8x128xf32>
    %cst_62 = arith.constant 1.000000e+00 : f32
    %228 = vector.broadcast %cst_62 : f32 to vector<8x128xf32>
    %229 = arith.addf %228, %227 : vector<8x128xf32>
    %230 = arith.divf %228, %229 : vector<8x128xf32>
    %231 = arith.mulf %222, %168 : vector<8x128xf32>
    %232 = arith.mulf %216, %224 : vector<8x128xf32>
    %233 = arith.addf %231, %232 : vector<8x128xf32>
    %234 = math.tanh %233 : vector<8x128xf32>
    %235 = arith.mulf %230, %234 : vector<8x128xf32>
    %236 = tpu.concatenate %235, %202 in 1 : vector<8x128xf32>, vector<8x128xf32> -> vector<8x256xf32>
    %237 = arith.truncf %236 : vector<8x256xf32> to vector<8x256xbf16>
    %c0_63 = arith.constant 0 : index
    %c0_64 = arith.constant 0 : index
    %238 = vector.load %arg4[%c0_63, %c0_64] : memref<256x512xbf16, #tpu.memory_space<vmem>>, vector<256x512xbf16>
    %cst_65 = arith.constant dense<0.000000e+00> : vector<8x512xf32>
    %239 = tpu.matmul %237, %238, %cst_65 {dimension_numbers = #tpu.dot_dimension_numbers<[1], [0], [0], [1], [0, 0, 1, 1], [], []>} : vector<8x256xbf16>, vector<256x512xbf16>, vector<8x512xf32> -> vector<8x512xf32>
    %c0_66 = arith.constant 0 : index
    %c0_67 = arith.constant 0 : index
    %240 = vector.load %arg5[%c0_66, %c0_67] : memref<1x512xf32, #tpu.memory_space<vmem>>, vector<1x512xf32>
    %241 = vector.broadcast %240 : vector<1x512xf32> to vector<8x512xf32>
    %242 = arith.addf %239, %241 : vector<8x512xf32>
    %243 = vector.extract_strided_slice %242 {offsets = [0, 0], sizes = [8, 128], strides = [1, 1]} : vector<8x512xf32> to vector<8x128xf32>
    %244 = arith.negf %243 : vector<8x128xf32>
    %245 = math.exp %244 : vector<8x128xf32>
    %cst_68 = arith.constant 1.000000e+00 : f32
    %246 = vector.broadcast %cst_68 : f32 to vector<8x128xf32>
    %247 = arith.addf %246, %245 : vector<8x128xf32>
    %248 = arith.divf %246, %247 : vector<8x128xf32>
    %249 = vector.extract_strided_slice %242 {offsets = [0, 128], sizes = [8, 128], strides = [1, 1]} : vector<8x512xf32> to vector<8x128xf32>
    %250 = arith.negf %249 : vector<8x128xf32>
    %251 = math.exp %250 : vector<8x128xf32>
    %cst_69 = arith.constant 1.000000e+00 : f32
    %252 = vector.broadcast %cst_69 : f32 to vector<8x128xf32>
    %253 = arith.addf %252, %251 : vector<8x128xf32>
    %254 = arith.divf %252, %253 : vector<8x128xf32>
    %255 = vector.extract_strided_slice %242 {offsets = [0, 256], sizes = [8, 128], strides = [1, 1]} : vector<8x512xf32> to vector<8x128xf32>
    %256 = math.tanh %255 : vector<8x128xf32>
    %257 = vector.extract_strided_slice %242 {offsets = [0, 384], sizes = [8, 128], strides = [1, 1]} : vector<8x512xf32> to vector<8x128xf32>
    %258 = arith.negf %257 : vector<8x128xf32>
    %259 = math.exp %258 : vector<8x128xf32>
    %cst_70 = arith.constant 1.000000e+00 : f32
    %260 = vector.broadcast %cst_70 : f32 to vector<8x128xf32>
    %261 = arith.addf %260, %259 : vector<8x128xf32>
    %262 = arith.divf %260, %261 : vector<8x128xf32>
    %263 = arith.mulf %254, %200 : vector<8x128xf32>
    %264 = arith.mulf %248, %256 : vector<8x128xf32>
    %265 = arith.addf %263, %264 : vector<8x128xf32>
    %266 = math.tanh %265 : vector<8x128xf32>
    %267 = arith.mulf %262, %266 : vector<8x128xf32>
    %c4_i32 = arith.constant 4 : i32
    %c8_i32_71 = arith.constant 8 : i32
    %268 = arith.muli %c4_i32, %c8_i32_71 : i32
    %269 = tpu.assume_multiple %268, 8 : i32
    %270 = arith.index_cast %269 : i32 to index
    %c0_72 = arith.constant 0 : index
    %271 = vector.load %arg7[%270, %c0_72] : memref<64x512xf32, #tpu.memory_space<vmem>>, vector<8x512xf32>
    %272 = arith.truncf %235 : vector<8x128xf32> to vector<8x128xbf16>
    %c0_73 = arith.constant 0 : index
    %c0_74 = arith.constant 0 : index
    %273 = vector.load %arg2[%c0_73, %c0_74] : memref<128x512xbf16, #tpu.memory_space<vmem>>, vector<128x512xbf16>
    %cst_75 = arith.constant dense<0.000000e+00> : vector<8x512xf32>
    %274 = tpu.matmul %272, %273, %cst_75 {dimension_numbers = #tpu.dot_dimension_numbers<[1], [0], [0], [1], [0, 0, 1, 1], [], []>} : vector<8x128xbf16>, vector<128x512xbf16>, vector<8x512xf32> -> vector<8x512xf32>
    %275 = arith.addf %271, %274 : vector<8x512xf32>
    %276 = vector.extract_strided_slice %275 {offsets = [0, 0], sizes = [8, 128], strides = [1, 1]} : vector<8x512xf32> to vector<8x128xf32>
    %277 = arith.negf %276 : vector<8x128xf32>
    %278 = math.exp %277 : vector<8x128xf32>
    %cst_76 = arith.constant 1.000000e+00 : f32
    %279 = vector.broadcast %cst_76 : f32 to vector<8x128xf32>
    %280 = arith.addf %279, %278 : vector<8x128xf32>
    %281 = arith.divf %279, %280 : vector<8x128xf32>
    %282 = vector.extract_strided_slice %275 {offsets = [0, 128], sizes = [8, 128], strides = [1, 1]} : vector<8x512xf32> to vector<8x128xf32>
    %283 = arith.negf %282 : vector<8x128xf32>
    %284 = math.exp %283 : vector<8x128xf32>
    %cst_77 = arith.constant 1.000000e+00 : f32
    %285 = vector.broadcast %cst_77 : f32 to vector<8x128xf32>
    %286 = arith.addf %285, %284 : vector<8x128xf32>
    %287 = arith.divf %285, %286 : vector<8x128xf32>
    %288 = vector.extract_strided_slice %275 {offsets = [0, 256], sizes = [8, 128], strides = [1, 1]} : vector<8x512xf32> to vector<8x128xf32>
    %289 = math.tanh %288 : vector<8x128xf32>
    %290 = vector.extract_strided_slice %275 {offsets = [0, 384], sizes = [8, 128], strides = [1, 1]} : vector<8x512xf32> to vector<8x128xf32>
    %291 = arith.negf %290 : vector<8x128xf32>
    %292 = math.exp %291 : vector<8x128xf32>
    %cst_78 = arith.constant 1.000000e+00 : f32
    %293 = vector.broadcast %cst_78 : f32 to vector<8x128xf32>
    %294 = arith.addf %293, %292 : vector<8x128xf32>
    %295 = arith.divf %293, %294 : vector<8x128xf32>
    %296 = arith.mulf %287, %233 : vector<8x128xf32>
    %297 = arith.mulf %281, %289 : vector<8x128xf32>
    %298 = arith.addf %296, %297 : vector<8x128xf32>
    %299 = math.tanh %298 : vector<8x128xf32>
    %300 = arith.mulf %295, %299 : vector<8x128xf32>
    %301 = tpu.concatenate %300, %267 in 1 : vector<8x128xf32>, vector<8x128xf32> -> vector<8x256xf32>
    %302 = arith.truncf %301 : vector<8x256xf32> to vector<8x256xbf16>
    %c0_79 = arith.constant 0 : index
    %c0_80 = arith.constant 0 : index
    %303 = vector.load %arg4[%c0_79, %c0_80] : memref<256x512xbf16, #tpu.memory_space<vmem>>, vector<256x512xbf16>
    %cst_81 = arith.constant dense<0.000000e+00> : vector<8x512xf32>
    %304 = tpu.matmul %302, %303, %cst_81 {dimension_numbers = #tpu.dot_dimension_numbers<[1], [0], [0], [1], [0, 0, 1, 1], [], []>} : vector<8x256xbf16>, vector<256x512xbf16>, vector<8x512xf32> -> vector<8x512xf32>
    %c0_82 = arith.constant 0 : index
    %c0_83 = arith.constant 0 : index
    %305 = vector.load %arg5[%c0_82, %c0_83] : memref<1x512xf32, #tpu.memory_space<vmem>>, vector<1x512xf32>
    %306 = vector.broadcast %305 : vector<1x512xf32> to vector<8x512xf32>
    %307 = arith.addf %304, %306 : vector<8x512xf32>
    %308 = vector.extract_strided_slice %307 {offsets = [0, 0], sizes = [8, 128], strides = [1, 1]} : vector<8x512xf32> to vector<8x128xf32>
    %309 = arith.negf %308 : vector<8x128xf32>
    %310 = math.exp %309 : vector<8x128xf32>
    %cst_84 = arith.constant 1.000000e+00 : f32
    %311 = vector.broadcast %cst_84 : f32 to vector<8x128xf32>
    %312 = arith.addf %311, %310 : vector<8x128xf32>
    %313 = arith.divf %311, %312 : vector<8x128xf32>
    %314 = vector.extract_strided_slice %307 {offsets = [0, 128], sizes = [8, 128], strides = [1, 1]} : vector<8x512xf32> to vector<8x128xf32>
    %315 = arith.negf %314 : vector<8x128xf32>
    %316 = math.exp %315 : vector<8x128xf32>
    %cst_85 = arith.constant 1.000000e+00 : f32
    %317 = vector.broadcast %cst_85 : f32 to vector<8x128xf32>
    %318 = arith.addf %317, %316 : vector<8x128xf32>
    %319 = arith.divf %317, %318 : vector<8x128xf32>
    %320 = vector.extract_strided_slice %307 {offsets = [0, 256], sizes = [8, 128], strides = [1, 1]} : vector<8x512xf32> to vector<8x128xf32>
    %321 = math.tanh %320 : vector<8x128xf32>
    %322 = vector.extract_strided_slice %307 {offsets = [0, 384], sizes = [8, 128], strides = [1, 1]} : vector<8x512xf32> to vector<8x128xf32>
    %323 = arith.negf %322 : vector<8x128xf32>
    %324 = math.exp %323 : vector<8x128xf32>
    %cst_86 = arith.constant 1.000000e+00 : f32
    %325 = vector.broadcast %cst_86 : f32 to vector<8x128xf32>
    %326 = arith.addf %325, %324 : vector<8x128xf32>
    %327 = arith.divf %325, %326 : vector<8x128xf32>
    %328 = arith.mulf %319, %265 : vector<8x128xf32>
    %329 = arith.mulf %313, %321 : vector<8x128xf32>
    %330 = arith.addf %328, %329 : vector<8x128xf32>
    %331 = math.tanh %330 : vector<8x128xf32>
    %332 = arith.mulf %327, %331 : vector<8x128xf32>
    %c5_i32 = arith.constant 5 : i32
    %c8_i32_87 = arith.constant 8 : i32
    %333 = arith.muli %c5_i32, %c8_i32_87 : i32
    %334 = tpu.assume_multiple %333, 8 : i32
    %335 = arith.index_cast %334 : i32 to index
    %c0_88 = arith.constant 0 : index
    %336 = vector.load %arg7[%335, %c0_88] : memref<64x512xf32, #tpu.memory_space<vmem>>, vector<8x512xf32>
    %337 = arith.truncf %300 : vector<8x128xf32> to vector<8x128xbf16>
    %c0_89 = arith.constant 0 : index
    %c0_90 = arith.constant 0 : index
    %338 = vector.load %arg2[%c0_89, %c0_90] : memref<128x512xbf16, #tpu.memory_space<vmem>>, vector<128x512xbf16>
    %cst_91 = arith.constant dense<0.000000e+00> : vector<8x512xf32>
    %339 = tpu.matmul %337, %338, %cst_91 {dimension_numbers = #tpu.dot_dimension_numbers<[1], [0], [0], [1], [0, 0, 1, 1], [], []>} : vector<8x128xbf16>, vector<128x512xbf16>, vector<8x512xf32> -> vector<8x512xf32>
    %340 = arith.addf %336, %339 : vector<8x512xf32>
    %341 = vector.extract_strided_slice %340 {offsets = [0, 0], sizes = [8, 128], strides = [1, 1]} : vector<8x512xf32> to vector<8x128xf32>
    %342 = arith.negf %341 : vector<8x128xf32>
    %343 = math.exp %342 : vector<8x128xf32>
    %cst_92 = arith.constant 1.000000e+00 : f32
    %344 = vector.broadcast %cst_92 : f32 to vector<8x128xf32>
    %345 = arith.addf %344, %343 : vector<8x128xf32>
    %346 = arith.divf %344, %345 : vector<8x128xf32>
    %347 = vector.extract_strided_slice %340 {offsets = [0, 128], sizes = [8, 128], strides = [1, 1]} : vector<8x512xf32> to vector<8x128xf32>
    %348 = arith.negf %347 : vector<8x128xf32>
    %349 = math.exp %348 : vector<8x128xf32>
    %cst_93 = arith.constant 1.000000e+00 : f32
    %350 = vector.broadcast %cst_93 : f32 to vector<8x128xf32>
    %351 = arith.addf %350, %349 : vector<8x128xf32>
    %352 = arith.divf %350, %351 : vector<8x128xf32>
    %353 = vector.extract_strided_slice %340 {offsets = [0, 256], sizes = [8, 128], strides = [1, 1]} : vector<8x512xf32> to vector<8x128xf32>
    %354 = math.tanh %353 : vector<8x128xf32>
    %355 = vector.extract_strided_slice %340 {offsets = [0, 384], sizes = [8, 128], strides = [1, 1]} : vector<8x512xf32> to vector<8x128xf32>
    %356 = arith.negf %355 : vector<8x128xf32>
    %357 = math.exp %356 : vector<8x128xf32>
    %cst_94 = arith.constant 1.000000e+00 : f32
    %358 = vector.broadcast %cst_94 : f32 to vector<8x128xf32>
    %359 = arith.addf %358, %357 : vector<8x128xf32>
    %360 = arith.divf %358, %359 : vector<8x128xf32>
    %361 = arith.mulf %352, %298 : vector<8x128xf32>
    %362 = arith.mulf %346, %354 : vector<8x128xf32>
    %363 = arith.addf %361, %362 : vector<8x128xf32>
    %364 = math.tanh %363 : vector<8x128xf32>
    %365 = arith.mulf %360, %364 : vector<8x128xf32>
    %366 = tpu.concatenate %365, %332 in 1 : vector<8x128xf32>, vector<8x128xf32> -> vector<8x256xf32>
    %367 = arith.truncf %366 : vector<8x256xf32> to vector<8x256xbf16>
    %c0_95 = arith.constant 0 : index
    %c0_96 = arith.constant 0 : index
    %368 = vector.load %arg4[%c0_95, %c0_96] : memref<256x512xbf16, #tpu.memory_space<vmem>>, vector<256x512xbf16>
    %cst_97 = arith.constant dense<0.000000e+00> : vector<8x512xf32>
    %369 = tpu.matmul %367, %368, %cst_97 {dimension_numbers = #tpu.dot_dimension_numbers<[1], [0], [0], [1], [0, 0, 1, 1], [], []>} : vector<8x256xbf16>, vector<256x512xbf16>, vector<8x512xf32> -> vector<8x512xf32>
    %c0_98 = arith.constant 0 : index
    %c0_99 = arith.constant 0 : index
    %370 = vector.load %arg5[%c0_98, %c0_99] : memref<1x512xf32, #tpu.memory_space<vmem>>, vector<1x512xf32>
    %371 = vector.broadcast %370 : vector<1x512xf32> to vector<8x512xf32>
    %372 = arith.addf %369, %371 : vector<8x512xf32>
    %373 = vector.extract_strided_slice %372 {offsets = [0, 0], sizes = [8, 128], strides = [1, 1]} : vector<8x512xf32> to vector<8x128xf32>
    %374 = arith.negf %373 : vector<8x128xf32>
    %375 = math.exp %374 : vector<8x128xf32>
    %cst_100 = arith.constant 1.000000e+00 : f32
    %376 = vector.broadcast %cst_100 : f32 to vector<8x128xf32>
    %377 = arith.addf %376, %375 : vector<8x128xf32>
    %378 = arith.divf %376, %377 : vector<8x128xf32>
    %379 = vector.extract_strided_slice %372 {offsets = [0, 128], sizes = [8, 128], strides = [1, 1]} : vector<8x512xf32> to vector<8x128xf32>
    %380 = arith.negf %379 : vector<8x128xf32>
    %381 = math.exp %380 : vector<8x128xf32>
    %cst_101 = arith.constant 1.000000e+00 : f32
    %382 = vector.broadcast %cst_101 : f32 to vector<8x128xf32>
    %383 = arith.addf %382, %381 : vector<8x128xf32>
    %384 = arith.divf %382, %383 : vector<8x128xf32>
    %385 = vector.extract_strided_slice %372 {offsets = [0, 256], sizes = [8, 128], strides = [1, 1]} : vector<8x512xf32> to vector<8x128xf32>
    %386 = math.tanh %385 : vector<8x128xf32>
    %387 = vector.extract_strided_slice %372 {offsets = [0, 384], sizes = [8, 128], strides = [1, 1]} : vector<8x512xf32> to vector<8x128xf32>
    %388 = arith.negf %387 : vector<8x128xf32>
    %389 = math.exp %388 : vector<8x128xf32>
    %cst_102 = arith.constant 1.000000e+00 : f32
    %390 = vector.broadcast %cst_102 : f32 to vector<8x128xf32>
    %391 = arith.addf %390, %389 : vector<8x128xf32>
    %392 = arith.divf %390, %391 : vector<8x128xf32>
    %393 = arith.mulf %384, %330 : vector<8x128xf32>
    %394 = arith.mulf %378, %386 : vector<8x128xf32>
    %395 = arith.addf %393, %394 : vector<8x128xf32>
    %396 = math.tanh %395 : vector<8x128xf32>
    %397 = arith.mulf %392, %396 : vector<8x128xf32>
    %c6_i32 = arith.constant 6 : i32
    %c8_i32_103 = arith.constant 8 : i32
    %398 = arith.muli %c6_i32, %c8_i32_103 : i32
    %399 = tpu.assume_multiple %398, 8 : i32
    %400 = arith.index_cast %399 : i32 to index
    %c0_104 = arith.constant 0 : index
    %401 = vector.load %arg7[%400, %c0_104] : memref<64x512xf32, #tpu.memory_space<vmem>>, vector<8x512xf32>
    %402 = arith.truncf %365 : vector<8x128xf32> to vector<8x128xbf16>
    %c0_105 = arith.constant 0 : index
    %c0_106 = arith.constant 0 : index
    %403 = vector.load %arg2[%c0_105, %c0_106] : memref<128x512xbf16, #tpu.memory_space<vmem>>, vector<128x512xbf16>
    %cst_107 = arith.constant dense<0.000000e+00> : vector<8x512xf32>
    %404 = tpu.matmul %402, %403, %cst_107 {dimension_numbers = #tpu.dot_dimension_numbers<[1], [0], [0], [1], [0, 0, 1, 1], [], []>} : vector<8x128xbf16>, vector<128x512xbf16>, vector<8x512xf32> -> vector<8x512xf32>
    %405 = arith.addf %401, %404 : vector<8x512xf32>
    %406 = vector.extract_strided_slice %405 {offsets = [0, 0], sizes = [8, 128], strides = [1, 1]} : vector<8x512xf32> to vector<8x128xf32>
    %407 = arith.negf %406 : vector<8x128xf32>
    %408 = math.exp %407 : vector<8x128xf32>
    %cst_108 = arith.constant 1.000000e+00 : f32
    %409 = vector.broadcast %cst_108 : f32 to vector<8x128xf32>
    %410 = arith.addf %409, %408 : vector<8x128xf32>
    %411 = arith.divf %409, %410 : vector<8x128xf32>
    %412 = vector.extract_strided_slice %405 {offsets = [0, 128], sizes = [8, 128], strides = [1, 1]} : vector<8x512xf32> to vector<8x128xf32>
    %413 = arith.negf %412 : vector<8x128xf32>
    %414 = math.exp %413 : vector<8x128xf32>
    %cst_109 = arith.constant 1.000000e+00 : f32
    %415 = vector.broadcast %cst_109 : f32 to vector<8x128xf32>
    %416 = arith.addf %415, %414 : vector<8x128xf32>
    %417 = arith.divf %415, %416 : vector<8x128xf32>
    %418 = vector.extract_strided_slice %405 {offsets = [0, 256], sizes = [8, 128], strides = [1, 1]} : vector<8x512xf32> to vector<8x128xf32>
    %419 = math.tanh %418 : vector<8x128xf32>
    %420 = vector.extract_strided_slice %405 {offsets = [0, 384], sizes = [8, 128], strides = [1, 1]} : vector<8x512xf32> to vector<8x128xf32>
    %421 = arith.negf %420 : vector<8x128xf32>
    %422 = math.exp %421 : vector<8x128xf32>
    %cst_110 = arith.constant 1.000000e+00 : f32
    %423 = vector.broadcast %cst_110 : f32 to vector<8x128xf32>
    %424 = arith.addf %423, %422 : vector<8x128xf32>
    %425 = arith.divf %423, %424 : vector<8x128xf32>
    %426 = arith.mulf %417, %363 : vector<8x128xf32>
    %427 = arith.mulf %411, %419 : vector<8x128xf32>
    %428 = arith.addf %426, %427 : vector<8x128xf32>
    %429 = math.tanh %428 : vector<8x128xf32>
    %430 = arith.mulf %425, %429 : vector<8x128xf32>
    %431 = tpu.concatenate %430, %397 in 1 : vector<8x128xf32>, vector<8x128xf32> -> vector<8x256xf32>
    %432 = arith.truncf %431 : vector<8x256xf32> to vector<8x256xbf16>
    %c0_111 = arith.constant 0 : index
    %c0_112 = arith.constant 0 : index
    %433 = vector.load %arg4[%c0_111, %c0_112] : memref<256x512xbf16, #tpu.memory_space<vmem>>, vector<256x512xbf16>
    %cst_113 = arith.constant dense<0.000000e+00> : vector<8x512xf32>
    %434 = tpu.matmul %432, %433, %cst_113 {dimension_numbers = #tpu.dot_dimension_numbers<[1], [0], [0], [1], [0, 0, 1, 1], [], []>} : vector<8x256xbf16>, vector<256x512xbf16>, vector<8x512xf32> -> vector<8x512xf32>
    %c0_114 = arith.constant 0 : index
    %c0_115 = arith.constant 0 : index
    %435 = vector.load %arg5[%c0_114, %c0_115] : memref<1x512xf32, #tpu.memory_space<vmem>>, vector<1x512xf32>
    %436 = vector.broadcast %435 : vector<1x512xf32> to vector<8x512xf32>
    %437 = arith.addf %434, %436 : vector<8x512xf32>
    %438 = vector.extract_strided_slice %437 {offsets = [0, 0], sizes = [8, 128], strides = [1, 1]} : vector<8x512xf32> to vector<8x128xf32>
    %439 = arith.negf %438 : vector<8x128xf32>
    %440 = math.exp %439 : vector<8x128xf32>
    %cst_116 = arith.constant 1.000000e+00 : f32
    %441 = vector.broadcast %cst_116 : f32 to vector<8x128xf32>
    %442 = arith.addf %441, %440 : vector<8x128xf32>
    %443 = arith.divf %441, %442 : vector<8x128xf32>
    %444 = vector.extract_strided_slice %437 {offsets = [0, 128], sizes = [8, 128], strides = [1, 1]} : vector<8x512xf32> to vector<8x128xf32>
    %445 = arith.negf %444 : vector<8x128xf32>
    %446 = math.exp %445 : vector<8x128xf32>
    %cst_117 = arith.constant 1.000000e+00 : f32
    %447 = vector.broadcast %cst_117 : f32 to vector<8x128xf32>
    %448 = arith.addf %447, %446 : vector<8x128xf32>
    %449 = arith.divf %447, %448 : vector<8x128xf32>
    %450 = vector.extract_strided_slice %437 {offsets = [0, 256], sizes = [8, 128], strides = [1, 1]} : vector<8x512xf32> to vector<8x128xf32>
    %451 = math.tanh %450 : vector<8x128xf32>
    %452 = vector.extract_strided_slice %437 {offsets = [0, 384], sizes = [8, 128], strides = [1, 1]} : vector<8x512xf32> to vector<8x128xf32>
    %453 = arith.negf %452 : vector<8x128xf32>
    %454 = math.exp %453 : vector<8x128xf32>
    %cst_118 = arith.constant 1.000000e+00 : f32
    %455 = vector.broadcast %cst_118 : f32 to vector<8x128xf32>
    %456 = arith.addf %455, %454 : vector<8x128xf32>
    %457 = arith.divf %455, %456 : vector<8x128xf32>
    %458 = arith.mulf %449, %395 : vector<8x128xf32>
    %459 = arith.mulf %443, %451 : vector<8x128xf32>
    %460 = arith.addf %458, %459 : vector<8x128xf32>
    %461 = math.tanh %460 : vector<8x128xf32>
    %462 = arith.mulf %457, %461 : vector<8x128xf32>
    %c7_i32 = arith.constant 7 : i32
    %c8_i32_119 = arith.constant 8 : i32
    %463 = arith.muli %c7_i32, %c8_i32_119 : i32
    %464 = tpu.assume_multiple %463, 8 : i32
    %465 = arith.index_cast %464 : i32 to index
    %c0_120 = arith.constant 0 : index
    %466 = vector.load %arg7[%465, %c0_120] : memref<64x512xf32, #tpu.memory_space<vmem>>, vector<8x512xf32>
    %467 = arith.truncf %430 : vector<8x128xf32> to vector<8x128xbf16>
    %c0_121 = arith.constant 0 : index
    %c0_122 = arith.constant 0 : index
    %468 = vector.load %arg2[%c0_121, %c0_122] : memref<128x512xbf16, #tpu.memory_space<vmem>>, vector<128x512xbf16>
    %cst_123 = arith.constant dense<0.000000e+00> : vector<8x512xf32>
    %469 = tpu.matmul %467, %468, %cst_123 {dimension_numbers = #tpu.dot_dimension_numbers<[1], [0], [0], [1], [0, 0, 1, 1], [], []>} : vector<8x128xbf16>, vector<128x512xbf16>, vector<8x512xf32> -> vector<8x512xf32>
    %470 = arith.addf %466, %469 : vector<8x512xf32>
    %471 = vector.extract_strided_slice %470 {offsets = [0, 0], sizes = [8, 128], strides = [1, 1]} : vector<8x512xf32> to vector<8x128xf32>
    %472 = arith.negf %471 : vector<8x128xf32>
    %473 = math.exp %472 : vector<8x128xf32>
    %cst_124 = arith.constant 1.000000e+00 : f32
    %474 = vector.broadcast %cst_124 : f32 to vector<8x128xf32>
    %475 = arith.addf %474, %473 : vector<8x128xf32>
    %476 = arith.divf %474, %475 : vector<8x128xf32>
    %477 = vector.extract_strided_slice %470 {offsets = [0, 128], sizes = [8, 128], strides = [1, 1]} : vector<8x512xf32> to vector<8x128xf32>
    %478 = arith.negf %477 : vector<8x128xf32>
    %479 = math.exp %478 : vector<8x128xf32>
    %cst_125 = arith.constant 1.000000e+00 : f32
    %480 = vector.broadcast %cst_125 : f32 to vector<8x128xf32>
    %481 = arith.addf %480, %479 : vector<8x128xf32>
    %482 = arith.divf %480, %481 : vector<8x128xf32>
    %483 = vector.extract_strided_slice %470 {offsets = [0, 256], sizes = [8, 128], strides = [1, 1]} : vector<8x512xf32> to vector<8x128xf32>
    %484 = math.tanh %483 : vector<8x128xf32>
    %485 = vector.extract_strided_slice %470 {offsets = [0, 384], sizes = [8, 128], strides = [1, 1]} : vector<8x512xf32> to vector<8x128xf32>
    %486 = arith.negf %485 : vector<8x128xf32>
    %487 = math.exp %486 : vector<8x128xf32>
    %cst_126 = arith.constant 1.000000e+00 : f32
    %488 = vector.broadcast %cst_126 : f32 to vector<8x128xf32>
    %489 = arith.addf %488, %487 : vector<8x128xf32>
    %490 = arith.divf %488, %489 : vector<8x128xf32>
    %491 = arith.mulf %482, %428 : vector<8x128xf32>
    %492 = arith.mulf %476, %484 : vector<8x128xf32>
    %493 = arith.addf %491, %492 : vector<8x128xf32>
    %494 = math.tanh %493 : vector<8x128xf32>
    %495 = arith.mulf %490, %494 : vector<8x128xf32>
    %496 = tpu.concatenate %495, %462 in 1 : vector<8x128xf32>, vector<8x128xf32> -> vector<8x256xf32>
    %497 = arith.truncf %496 : vector<8x256xf32> to vector<8x256xbf16>
    %c0_127 = arith.constant 0 : index
    %c0_128 = arith.constant 0 : index
    %498 = vector.load %arg4[%c0_127, %c0_128] : memref<256x512xbf16, #tpu.memory_space<vmem>>, vector<256x512xbf16>
    %cst_129 = arith.constant dense<0.000000e+00> : vector<8x512xf32>
    %499 = tpu.matmul %497, %498, %cst_129 {dimension_numbers = #tpu.dot_dimension_numbers<[1], [0], [0], [1], [0, 0, 1, 1], [], []>} : vector<8x256xbf16>, vector<256x512xbf16>, vector<8x512xf32> -> vector<8x512xf32>
    %c0_130 = arith.constant 0 : index
    %c0_131 = arith.constant 0 : index
    %500 = vector.load %arg5[%c0_130, %c0_131] : memref<1x512xf32, #tpu.memory_space<vmem>>, vector<1x512xf32>
    %501 = vector.broadcast %500 : vector<1x512xf32> to vector<8x512xf32>
    %502 = arith.addf %499, %501 : vector<8x512xf32>
    %503 = vector.extract_strided_slice %502 {offsets = [0, 0], sizes = [8, 128], strides = [1, 1]} : vector<8x512xf32> to vector<8x128xf32>
    %504 = arith.negf %503 : vector<8x128xf32>
    %505 = math.exp %504 : vector<8x128xf32>
    %cst_132 = arith.constant 1.000000e+00 : f32
    %506 = vector.broadcast %cst_132 : f32 to vector<8x128xf32>
    %507 = arith.addf %506, %505 : vector<8x128xf32>
    %508 = arith.divf %506, %507 : vector<8x128xf32>
    %509 = vector.extract_strided_slice %502 {offsets = [0, 128], sizes = [8, 128], strides = [1, 1]} : vector<8x512xf32> to vector<8x128xf32>
    %510 = arith.negf %509 : vector<8x128xf32>
    %511 = math.exp %510 : vector<8x128xf32>
    %cst_133 = arith.constant 1.000000e+00 : f32
    %512 = vector.broadcast %cst_133 : f32 to vector<8x128xf32>
    %513 = arith.addf %512, %511 : vector<8x128xf32>
    %514 = arith.divf %512, %513 : vector<8x128xf32>
    %515 = vector.extract_strided_slice %502 {offsets = [0, 256], sizes = [8, 128], strides = [1, 1]} : vector<8x512xf32> to vector<8x128xf32>
    %516 = math.tanh %515 : vector<8x128xf32>
    %517 = vector.extract_strided_slice %502 {offsets = [0, 384], sizes = [8, 128], strides = [1, 1]} : vector<8x512xf32> to vector<8x128xf32>
    %518 = arith.negf %517 : vector<8x128xf32>
    %519 = math.exp %518 : vector<8x128xf32>
    %cst_134 = arith.constant 1.000000e+00 : f32
    %520 = vector.broadcast %cst_134 : f32 to vector<8x128xf32>
    %521 = arith.addf %520, %519 : vector<8x128xf32>
    %522 = arith.divf %520, %521 : vector<8x128xf32>
    %523 = arith.mulf %514, %460 : vector<8x128xf32>
    %524 = arith.mulf %508, %516 : vector<8x128xf32>
    %525 = arith.addf %523, %524 : vector<8x128xf32>
    %526 = math.tanh %525 : vector<8x128xf32>
    %527 = arith.mulf %522, %526 : vector<8x128xf32>
    %c8_i32_135 = arith.constant 8 : i32
    %c0_136 = arith.constant 0 : index
    %c0_137 = arith.constant 0 : index
    %528 = vector.load %arg6[%c0_136, %c0_137] : memref<8x128xf32, #tpu.memory_space<vmem>>, vector<8x128xf32>
    tpu.vector_store %arg6[%c0_136, %c0_137], %527 {strides = array<i32>} : memref<8x128xf32, #tpu.memory_space<vmem>>, vector<8x128xf32>,
    return
  }
}

</mosaic_0001>

<llo_original>
// kernel: lstm_model_forward.1
$region0: #{lstm_model_forward.1}
  #allocation0 [shape = 'u32[]', space=smem, size = 0x4, offset = 0x4, fixed_abs, tag = 'smem constant byte address 0x4 - core index']
  #allocation1 [shape = 'u32[144,128]{1,0:T(1,128)}', space=vmem, size = 0x12000, scoped, tag = 'internal scratch']
  #allocation2 [shape = 'f32[64,512]{1,0:T(8,128)}', space=vmem, size = 0x20000, scoped, tag = 'scratch operand']
  %s0 = inlined_call_operand.vmem [shape: bf16[64,4], index: 0, kind: input, shape index: {}]
  %s1 = inlined_call_operand.vmem [shape: bf16[4,512], index: 1, kind: input, shape index: {}]
  %s2 = inlined_call_operand.vmem [shape: bf16[128,512], index: 2, kind: input, shape index: {}]
  %s3 = inlined_call_operand.vmem [shape: f32[1,512], index: 3, kind: input, shape index: {}]
  %s4 = inlined_call_operand.vmem [shape: bf16[256,512], index: 4, kind: input, shape index: {}]
  %s5 = inlined_call_operand.vmem [shape: f32[1,512], index: 5, kind: input, shape index: {}]
  %s6 = inlined_call_operand.vmem [shape: f32[8,128], index: 6, kind: output, shape index: {}]
  %s7 = sld [smem:[#allocation0]]
  $region34: #{lstm_model_forward.1} parent=0
    _
  %s9 = ssub.s32 1, %s7
  %s10 = scalar_select 0, %s9, %s7
  // Predicated region
  $region2: #{lstm_model_forward.1} parent=0 // pred_check
    _
  $region3: #{lstm_model_forward.1} parent=0 // pred_check_branch
    %12 = sbr.rel (0) target = $region5
  $region4: #{lstm_model_forward.1} parent=0 // pred_region
    _
  $region5: #{lstm_model_forward.1} parent=0 // pred_fallthru
    _
  // Predicated region
  $region6: #{lstm_model_forward.1} parent=0 // pred_check
    _
  $region7: #{lstm_model_forward.1} parent=0 // pred_check_branch
    %14 = sbr.rel (0) target = $region9
  $region8: #{lstm_model_forward.1} parent=0 // pred_region
    _
  $region9: #{lstm_model_forward.1} parent=0 // pred_fallthru
    _
  // Predicated region
  $region10: #{lstm_model_forward.1} parent=0 // pred_check
    _
  $region11: #{lstm_model_forward.1} parent=0 // pred_check_branch
    %16 = sbr.rel (0) target = $region13
  $region12: #{lstm_model_forward.1} parent=0 // pred_region
    _
  $region13: #{lstm_model_forward.1} parent=0 // pred_fallthru
    _
  // Predicated region
  $region14: #{lstm_model_forward.1} parent=0 // pred_check
    _
  $region15: #{lstm_model_forward.1} parent=0 // pred_check_branch
    %18 = sbr.rel (0) target = $region17
  $region16: #{lstm_model_forward.1} parent=0 // pred_region
    _
  $region17: #{lstm_model_forward.1} parent=0 // pred_fallthru
    _
  // Predicated region
  $region18: #{lstm_model_forward.1} parent=0 // pred_check
    _
  $region19: #{lstm_model_forward.1} parent=0 // pred_check_branch
    %20 = sbr.rel (0) target = $region21
  $region20: #{lstm_model_forward.1} parent=0 // pred_region
    _
  $region21: #{lstm_model_forward.1} parent=0 // pred_fallthru
    _
  // Predicated region
  $region22: #{lstm_model_forward.1} parent=0 // pred_check
    _
  $region23: #{lstm_model_forward.1} parent=0 // pred_check_branch
    %22 = sbr.rel (0) target = $region25
  $region24: #{lstm_model_forward.1} parent=0 // pred_region
    _
  $region25: #{lstm_model_forward.1} parent=0 // pred_fallthru
    _
  %v24 = vld [vmem:[%s0] sm:$0xf]
  %v25 = vld [vmem:[%s0 + $0x4] sm:$0xf]
  %v26 = vld [vmem:[%s0 + $0x8] sm:$0xf]
  %v27 = vld [vmem:[%s0 + $0xc] sm:$0xf]
  %v28 = vld [vmem:[%s0 + $0x10] sm:$0xf]
  %v29 = vld [vmem:[%s0 + $0x14] sm:$0xf]
  %v30 = vld [vmem:[%s0 + $0x18] sm:$0xf]
  %v31 = vld [vmem:[%s0 + $0x1c] sm:$0xf]
  %v32 = vld [vmem:[%s1] sm:$0xff]
  %v33 = vld [vmem:[%s3] sm:$0xf]
  %v35 = vlaneseq
  %v36 = vshrl.u32 %v35, 7
  %v37 = vsub.s32 0, %v36
  %v38 = vrot.slane %v33, %v37
  %v39 = vlaneseq
  %v40 = vshrl.u32 %v39, 7
  %v41 = vsub.s32 1, %v40
  %v42 = vrot.slane %v33, %v41
  %v43 = vlaneseq
  %v44 = vshrl.u32 %v43, 7
  %v45 = vsub.s32 2, %v44
  %v46 = vrot.slane %v33, %v45
  %v47 = vlaneseq
  %v48 = vshrl.u32 %v47, 7
  %v49 = vsub.s32 3, %v48
  %v50 = vrot.slane %v33, %v49
  %v63 = vunpack.c.l.b16 %v24
  %v64 = vunpack.c.l.b16 %v25
  %v65 = vunpack.c.l.b16 %v26
  %v66 = vunpack.c.l.b16 %v27
  %v67 = vunpack.c.l.b16 %v28
  %v68 = vunpack.c.l.b16 %v29
  %v69 = vunpack.c.l.b16 %v30
  %v70 = vunpack.c.l.b16 %v31
  %v71 = vpack.c.b16 %v64, %v63
  %v72 = vpack.c.b16 %v66, %v65
  %v73 = vpack.c.b16 %v68, %v67
  %v74 = vpack.c.b16 %v70, %v69
  %v76 = vcombine.high %v32, %v32
  %v78 = vunpack.c.l.s4 1983009808
  %v79 = vunpack.c.0.s8 %v78
  %v80 = vlaneseq
  %v81 = vshrl.u32 %v80, 7
  %v82 = vsub.s32 %v79, %v81
  %v83 = vrot.slane %v32, %v82
  %v85 = vunpack.c.l.s4 1983009808
  %v86 = vunpack.c.0.s8 %v85
  %v87 = vlaneseq
  %v88 = vshrl.u32 %v87, 7
  %v89 = vsub.s32 %v86, %v88
  %v90 = vrot.slane %v76, %v89
  %v91 = vcombine.high %v83, %v83
  %v92 = vcombine.high %v90, %v90
  %vm93 = vcmask 31744
  %v95 = vsel %vm93, %v71, 0
  %v98 = vsel %vm93, %v72, 0
  %v101 = vsel %vm93, %v73, 0
  %v104 = vsel %vm93, %v74, 0
  %vm106 = vcmask 1041408
  %v108 = vsel %vm106, %v83, 0
  %v111 = vsel %vm106, %v91, 0
  %v114 = vsel %vm106, %v90, 0
  %v117 = vsel %vm106, %v92, 0
  %119 = vmatprep.subr.bf16.mxu0 0
  %120 = vmatpush1.bf16.msra.mxu0 0
  %121 = vmatprep.subr.bf16.mxu0 0
  %122 = vmatpush1.bf16.msra.mxu0 0
  %123 = vmatprep.subr.bf16.mxu0 0
  %124 = vmatpush1.bf16.msra.mxu0 0
  %125 = vmatprep.subr.bf16.mxu0 0
  %126 = vmatpush1.bf16.msra.mxu0 0
  %127 = vmatprep.subr.bf16.mxu0 0
  %128 = vmatpush1.bf16.msra.mxu0 0
  %129 = vmatprep.subr.bf16.mxu0 0
  %130 = vmatpush1.bf16.msra.mxu0 0
  %131 = vmatprep.subr.bf16.mxu0 0
  %132 = vmatpush1.bf16.msra.mxu0 0
  %133 = vmatprep.subr.bf16.mxu0 %v111
  %134 = vmatpush1.bf16.msra.mxu0 %v108
  %135 = vmatprep.subr.bf16.mxu0 0
  %136 = vmatpush2.bf16.msra.mxu0 0
  %137 = vmatprep.subr.bf16.mxu0 0
  %138 = vmatpush2.bf16.msra.mxu0 0
  %139 = vmatprep.subr.bf16.mxu0 0
  %140 = vmatpush2.bf16.msra.mxu0 0
  %141 = vmatprep.subr.bf16.mxu0 0
  %142 = vmatpush2.bf16.msra.mxu0 0
  %143 = vmatprep.subr.bf16.mxu0 0
  %144 = vmatpush2.bf16.msra.mxu0 0
  %145 = vmatprep.subr.bf16.mxu0 0
  %146 = vmatpush2.bf16.msra.mxu0 0
  %147 = vmatprep.subr.bf16.mxu0 0
  %148 = vmatpush2.bf16.msra.mxu0 0
  %149 = vmatprep.subr.bf16.mxu0 0
  %150 = vmatpush2.bf16.msra.mxu0 0
  %151 = vmatprep.mubr.bf16.mxu0 0
  %152 = vmatmul.mubr.bf16.gmra.mxu0 %v95
  %v153 = vpop.f32.mrf.mxu0
  %v154 = vadd.f32 %v38, %v153
  %v155 = vpop.f32.mrf.mxu0
  %v156 = vadd.f32 %v42, %v155
  %v157 = vpop.f32.mrf.mxu0
  %v158 = vadd.f32 %v38, %v157
  %v159 = vpop.f32.mrf.mxu0
  %v160 = vadd.f32 %v42, %v159
  %161 = vmatprep.mubr.bf16.mxu0 0
  %162 = vmatmul.mubr.bf16.gmra.mxu0 %v98
  %v163 = vpop.f32.mrf.mxu0
  %v164 = vadd.f32 %v38, %v163
  %v165 = vpop.f32.mrf.mxu0
  %v166 = vadd.f32 %v42, %v165
  %v167 = vpop.f32.mrf.mxu0
  %v168 = vadd.f32 %v38, %v167
  %v169 = vpop.f32.mrf.mxu0
  %v170 = vadd.f32 %v42, %v169
  %171 = vmatprep.mubr.bf16.mxu0 0
  %172 = vmatmul.mubr.bf16.gmra.mxu0 %v101
  %v173 = vpop.f32.mrf.mxu0
  %v174 = vadd.f32 %v38, %v173
  %v175 = vpop.f32.mrf.mxu0
  %v176 = vadd.f32 %v42, %v175
  %v177 = vpop.f32.mrf.mxu0
  %v178 = vadd.f32 %v38, %v177
  %v179 = vpop.f32.mrf.mxu0
  %v180 = vadd.f32 %v42, %v179
  %181 = vmatprep.mubr.bf16.mxu0 0
  %182 = vmatmul.mubr.bf16.gmra.mxu0 %v104
  %v183 = vpop.f32.mrf.mxu0
  %v184 = vadd.f32 %v38, %v183
  %v185 = vpop.f32.mrf.mxu0
  %v186 = vadd.f32 %v42, %v185
  %v187 = vpop.f32.mrf.mxu0
  %v188 = vadd.f32 %v38, %v187
  %v189 = vpop.f32.mrf.mxu0
  %v190 = vadd.f32 %v42, %v189
  %191 = vdwg.mxu0
  %192 = vmatprep.subr.bf16.mxu0 0
  %193 = vmatpush1.bf16.msra.mxu0 0
  %194 = vmatprep.subr.bf16.mxu0 0
  %195 = vmatpush1.bf16.msra.mxu0 0
  %196 = vmatprep.subr.bf16.mxu0 0
  %197 = vmatpush1.bf16.msra.mxu0 0
  %198 = vmatprep.subr.bf16.mxu0 0
  %199 = vmatpush1.bf16.msra.mxu0 0
  %200 = vmatprep.subr.bf16.mxu0 0
  %201 = vmatpush1.bf16.msra.mxu0 0
  %202 = vmatprep.subr.bf16.mxu0 0
  %203 = vmatpush1.bf16.msra.mxu0 0
  %204 = vmatprep.subr.bf16.mxu0 0
  %205 = vmatpush1.bf16.msra.mxu0 0
  %206 = vmatprep.subr.bf16.mxu0 %v117
  %207 = vmatpush1.bf16.msra.mxu0 %v114
  %208 = vmatprep.subr.bf16.mxu0 0
  %209 = vmatpush2.bf16.msra.mxu0 0
  %210 = vmatprep.subr.bf16.mxu0 0
  %211 = vmatpush2.bf16.msra.mxu0 0
  %212 = vmatprep.subr.bf16.mxu0 0
  %213 = vmatpush2.bf16.msra.mxu0 0
  %214 = vmatprep.subr.bf16.mxu0 0
  %215 = vmatpush2.bf16.msra.mxu0 0
  %216 = vmatprep.subr.bf16.mxu0 0
  %217 = vmatpush2.bf16.msra.mxu0 0
  %218 = vmatprep.subr.bf16.mxu0 0
  %219 = vmatpush2.bf16.msra.mxu0 0
  %220 = vmatprep.subr.bf16.mxu0 0
  %221 = vmatpush2.bf16.msra.mxu0 0
  %222 = vmatprep.subr.bf16.mxu0 0
  %223 = vmatpush2.bf16.msra.mxu0 0
  %224 = vmatprep.mubr.bf16.mxu0 0
  %225 = vmatmul.mubr.bf16.gmra.mxu0 %v95
  %v226 = vpop.f32.mrf.mxu0
  %v227 = vadd.f32 %v46, %v226
  %v228 = vpop.f32.mrf.mxu0
  %v229 = vadd.f32 %v50, %v228
  %v230 = vpop.f32.mrf.mxu0
  %v231 = vadd.f32 %v46, %v230
  %v232 = vpop.f32.mrf.mxu0
  %v233 = vadd.f32 %v50, %v232
  %234 = vmatprep.mubr.bf16.mxu0 0
  %235 = vmatmul.mubr.bf16.gmra.mxu0 %v98
  %v236 = vpop.f32.mrf.mxu0
  %v237 = vadd.f32 %v46, %v236
  %v238 = vpop.f32.mrf.mxu0
  %v239 = vadd.f32 %v50, %v238
  %v240 = vpop.f32.mrf.mxu0
  %v241 = vadd.f32 %v46, %v240
  %v242 = vpop.f32.mrf.mxu0
  %v243 = vadd.f32 %v50, %v242
  %244 = vmatprep.mubr.bf16.mxu0 0
  %245 = vmatmul.mubr.bf16.gmra.mxu0 %v101
  %v246 = vpop.f32.mrf.mxu0
  %v247 = vadd.f32 %v46, %v246
  %v248 = vpop.f32.mrf.mxu0
  %v249 = vadd.f32 %v50, %v248
  %v250 = vpop.f32.mrf.mxu0
  %v251 = vadd.f32 %v46, %v250
  %v252 = vpop.f32.mrf.mxu0
  %v253 = vadd.f32 %v50, %v252
  %254 = vmatprep.mubr.bf16.mxu0 0
  %255 = vmatmul.mubr.bf16.gmra.mxu0 %v104
  %v256 = vpop.f32.mrf.mxu0
  %v257 = vadd.f32 %v46, %v256
  %v258 = vpop.f32.mrf.mxu0
  %v259 = vadd.f32 %v50, %v258
  %v260 = vpop.f32.mrf.mxu0
  %v261 = vadd.f32 %v46, %v260
  %v262 = vpop.f32.mrf.mxu0
  %v263 = vadd.f32 %v50, %v262
  %264 = vdwg.mxu0
  %265 = vst [vmem:[#allocation2] sm:$0xff] %v154
  %266 = vst [vmem:[#allocation2 + $0x8] sm:$0xff] %v156
  %267 = vst [vmem:[#allocation2 + $0x10] sm:$0xff] %v227
  %268 = vst [vmem:[#allocation2 + $0x18] sm:$0xff] %v229
  %269 = vst [vmem:[#allocation2 + $0x20] sm:$0xff] %v158
  %270 = vst [vmem:[#allocation2 + $0x28] sm:$0xff] %v160
  %271 = vst [vmem:[#allocation2 + $0x30] sm:$0xff] %v231
  %272 = vst [vmem:[#allocation2 + $0x38] sm:$0xff] %v233
  %273 = vst [vmem:[#allocation2 + $0x40] sm:$0xff] %v164
  %274 = vst [vmem:[#allocation2 + $0x48] sm:$0xff] %v166
  %275 = vst [vmem:[#allocation2 + $0x50] sm:$0xff] %v237
  %276 = vst [vmem:[#allocation2 + $0x58] sm:$0xff] %v239
  %277 = vst [vmem:[#allocation2 + $0x60] sm:$0xff] %v168
  %278 = vst [vmem:[#allocation2 + $0x68] sm:$0xff] %v170
  %279 = vst [vmem:[#allocation2 + $0x70] sm:$0xff] %v241
  %280 = vst [vmem:[#allocation2 + $0x78] sm:$0xff] %v243
  %281 = vst [vmem:[#allocation2 + $0x80] sm:$0xff] %v174
  %282 = vst [vmem:[#allocation2 + $0x88] sm:$0xff] %v176
  %283 = vst [vmem:[#allocation2 + $0x90] sm:$0xff] %v247
  %284 = vst [vmem:[#allocation2 + $0x98] sm:$0xff] %v249
  %285 = vst [vmem:[#allocation2 + $0xa0] sm:$0xff] %v178
  %286 = vst [vmem:[#allocation2 + $0xa8] sm:$0xff] %v180
  %287 = vst [vmem:[#allocation2 + $0xb0] sm:$0xff] %v251
  %288 = vst [vmem:[#allocation2 + $0xb8] sm:$0xff] %v253
  %289 = vst [vmem:[#allocation2 + $0xc0] sm:$0xff] %v184
  %290 = vst [vmem:[#allocation2 + $0xc8] sm:$0xff] %v186
  %291 = vst [vmem:[#allocation2 + $0xd0] sm:$0xff] %v257
  %292 = vst [vmem:[#allocation2 + $0xd8] sm:$0xff] %v259
  %293 = vst [vmem:[#allocation2 + $0xe0] sm:$0xff] %v188
  %294 = vst [vmem:[#allocation2 + $0xe8] sm:$0xff] %v190
  %295 = vst [vmem:[#allocation2 + $0xf0] sm:$0xff] %v261
  %296 = vst [vmem:[#allocation2 + $0xf8] sm:$0xff] %v263
  %s297 = smul.u32 0, 4
  %s298 = smul.addr %s297, 8
  %s299 = scalar_lea.vmem [#allocation2], %s298
  %v300 = vld [vmem:[%s299] sm:$0xff]
  %v301 = vld [vmem:[%s299 + $0x8] sm:$0xff]
  %v302 = vld [vmem:[%s299 + $0x10] sm:$0xff]
  %v303 = vld [vmem:[%s299 + $0x18] sm:$0xff]
  %v304 = vld [vmem:[%s2] sm:$0xff]
  %v305 = vld [vmem:[%s2 + $0x8] sm:$0xff]
  %v306 = vld [vmem:[%s2 + $0x10] sm:$0xff]
  %v307 = vld [vmem:[%s2 + $0x18] sm:$0xff]
  %v308 = vld [vmem:[%s2 + $0x20] sm:$0xff]
  %v309 = vld [vmem:[%s2 + $0x28] sm:$0xff]
  %v310 = vld [vmem:[%s2 + $0x30] sm:$0xff]
  %v311 = vld [vmem:[%s2 + $0x38] sm:$0xff]
  %v312 = vld [vmem:[%s2 + $0x40] sm:$0xff]
  %v313 = vld [vmem:[%s2 + $0x48] sm:$0xff]
  %v314 = vld [vmem:[%s2 + $0x50] sm:$0xff]
  %v315 = vld [vmem:[%s2 + $0x58] sm:$0xff]
  %v316 = vld [vmem:[%s2 + $0x60] sm:$0xff]
  %v317 = vld [vmem:[%s2 + $0x68] sm:$0xff]
  %v318 = vld [vmem:[%s2 + $0x70] sm:$0xff]
  %v319 = vld [vmem:[%s2 + $0x78] sm:$0xff]
  %v320 = vld [vmem:[%s2 + $0x80] sm:$0xff]
  %v321 = vld [vmem:[%s2 + $0x88] sm:$0xff]
  %v322 = vld [vmem:[%s2 + $0x90] sm:$0xff]
  %v323 = vld [vmem:[%s2 + $0x98] sm:$0xff]
  %v324 = vld [vmem:[%s2 + $0xa0] sm:$0xff]
  %v325 = vld [vmem:[%s2 + $0xa8] sm:$0xff]
  %v326 = vld [vmem:[%s2 + $0xb0] sm:$0xff]
  %v327 = vld [vmem:[%s2 + $0xb8] sm:$0xff]
  %v328 = vld [vmem:[%s2 + $0xc0] sm:$0xff]
  %v329 = vld [vmem:[%s2 + $0xc8] sm:$0xff]
  %v330 = vld [vmem:[%s2 + $0xd0] sm:$0xff]
  %v331 = vld [vmem:[%s2 + $0xd8] sm:$0xff]
  %v332 = vld [vmem:[%s2 + $0xe0] sm:$0xff]
  %v333 = vld [vmem:[%s2 + $0xe8] sm:$0xff]
  %v334 = vld [vmem:[%s2 + $0xf0] sm:$0xff]
  %v335 = vld [vmem:[%s2 + $0xf8] sm:$0xff]
  %v368 = vunpack.c.l.b16 %v304
  %v369 = vunpack.c.h.b16 %v304
  %v370 = vunpack.c.l.b16 %v305
  %v371 = vunpack.c.h.b16 %v305
  %v372 = vunpack.c.l.b16 %v306
  %v373 = vunpack.c.h.b16 %v306
  %v374 = vunpack.c.l.b16 %v307
  %v375 = vunpack.c.h.b16 %v307
  %v376 = vunpack.c.l.b16 %v308
  %v377 = vunpack.c.h.b16 %v308
  %v378 = vunpack.c.l.b16 %v309
  %v379 = vunpack.c.h.b16 %v309
  %v380 = vunpack.c.l.b16 %v310
  %v381 = vunpack.c.h.b16 %v310
  %v382 = vunpack.c.l.b16 %v311
  %v383 = vunpack.c.h.b16 %v311
  %v384 = vunpack.c.l.b16 %v312
  %v385 = vunpack.c.h.b16 %v312
  %v386 = vunpack.c.l.b16 %v313
  %v387 = vunpack.c.h.b16 %v313
  %v388 = vunpack.c.l.b16 %v314
  %v389 = vunpack.c.h.b16 %v314
  %v390 = vunpack.c.l.b16 %v315
  %v391 = vunpack.c.h.b16 %v315
  %v392 = vunpack.c.l.b16 %v316
  %v393 = vunpack.c.h.b16 %v316
  %v394 = vunpack.c.l.b16 %v317
  %v395 = vunpack.c.h.b16 %v317
  %v396 = vunpack.c.l.b16 %v318
  %v397 = vunpack.c.h.b16 %v318
  %v398 = vunpack.c.l.b16 %v319
  %v399 = vunpack.c.h.b16 %v319
  %v400 = vunpack.c.l.b16 %v320
  %v401 = vunpack.c.h.b16 %v320
  %v402 = vunpack.c.l.b16 %v321
  %v403 = vunpack.c.h.b16 %v321
  %v404 = vunpack.c.l.b16 %v322
  %v405 = vunpack.c.h.b16 %v322
  %v406 = vunpack.c.l.b16 %v323
  %v407 = vunpack.c.h.b16 %v323
  %v408 = vunpack.c.l.b16 %v324
  %v409 = vunpack.c.h.b16 %v324
  %v410 = vunpack.c.l.b16 %v325
  %v411 = vunpack.c.h.b16 %v325
  %v412 = vunpack.c.l.b16 %v326
  %v413 = vunpack.c.h.b16 %v326
  %v414 = vunpack.c.l.b16 %v327
  %v415 = vunpack.c.h.b16 %v327
  %v416 = vunpack.c.l.b16 %v328
  %v417 = vunpack.c.h.b16 %v328
  %v418 = vunpack.c.l.b16 %v329
  %v419 = vunpack.c.h.b16 %v329
  %v420 = vunpack.c.l.b16 %v330
  %v421 = vunpack.c.h.b16 %v330
  %v422 = vunpack.c.l.b16 %v331
  %v423 = vunpack.c.h.b16 %v331
  %v424 = vunpack.c.l.b16 %v332
  %v425 = vunpack.c.h.b16 %v332
  %v426 = vunpack.c.l.b16 %v333
  %v427 = vunpack.c.h.b16 %v333
  %v428 = vunpack.c.l.b16 %v334
  %v429 = vunpack.c.h.b16 %v334
  %v430 = vunpack.c.l.b16 %v335
  %v431 = vunpack.c.h.b16 %v335
  %v432 = vpack.c.b16 %v372, %v368
  %v433 = vpack.c.b16 %v373, %v369
  %v434 = vpack.c.b16 %v374, %v370
  %v435 = vpack.c.b16 %v375, %v371
  %v436 = vpack.c.b16 %v380, %v376
  %v437 = vpack.c.b16 %v381, %v377
  %v438 = vpack.c.b16 %v382, %v378
  %v439 = vpack.c.b16 %v383, %v379
  %v440 = vpack.c.b16 %v388, %v384
  %v441 = vpack.c.b16 %v389, %v385
  %v442 = vpack.c.b16 %v390, %v386
  %v443 = vpack.c.b16 %v391, %v387
  %v444 = vpack.c.b16 %v396, %v392
  %v445 = vpack.c.b16 %v397, %v393
  %v446 = vpack.c.b16 %v398, %v394
  %v447 = vpack.c.b16 %v399, %v395
  %v448 = vpack.c.b16 %v404, %v400
  %v449 = vpack.c.b16 %v405, %v401
  %v450 = vpack.c.b16 %v406, %v402
  %v451 = vpack.c.b16 %v407, %v403
  %v452 = vpack.c.b16 %v412, %v408
  %v453 = vpack.c.b16 %v413, %v409
  %v454 = vpack.c.b16 %v414, %v410
  %v455 = vpack.c.b16 %v415, %v411
  %v456 = vpack.c.b16 %v420, %v416
  %v457 = vpack.c.b16 %v421, %v417
  %v458 = vpack.c.b16 %v422, %v418
  %v459 = vpack.c.b16 %v423, %v419
  %v460 = vpack.c.b16 %v428, %v424
  %v461 = vpack.c.b16 %v429, %v425
  %v462 = vpack.c.b16 %v430, %v426
  %v463 = vpack.c.b16 %v431, %v427
  %496 = vmatprep.subr.bf16.mxu0 %v461
  %497 = vmatpush1.bf16.msra.mxu0 %v460
  %498 = vmatprep.subr.bf16.mxu0 %v457
  %499 = vmatpush1.bf16.msra.mxu0 %v456
  %500 = vmatprep.subr.bf16.mxu0 %v453
  %501 = vmatpush1.bf16.msra.mxu0 %v452
  %502 = vmatprep.subr.bf16.mxu0 %v449
  %503 = vmatpush1.bf16.msra.mxu0 %v448
  %504 = vmatprep.subr.bf16.mxu0 %v445
  %505 = vmatpush1.bf16.msra.mxu0 %v444
  %506 = vmatprep.subr.bf16.mxu0 %v441
  %507 = vmatpush1.bf16.msra.mxu0 %v440
  %508 = vmatprep.subr.bf16.mxu0 %v437
  %509 = vmatpush1.bf16.msra.mxu0 %v436
  %510 = vmatprep.subr.bf16.mxu0 %v433
  %511 = vmatpush1.bf16.msra.mxu0 %v432
  %512 = vmatprep.subr.bf16.mxu0 0
  %513 = vmatpush2.bf16.msra.mxu0 0
  %514 = vmatprep.subr.bf16.mxu0 0
  %515 = vmatpush2.bf16.msra.mxu0 0
  %516 = vmatprep.subr.bf16.mxu0 0
  %517 = vmatpush2.bf16.msra.mxu0 0
  %518 = vmatprep.subr.bf16.mxu0 0
  %519 = vmatpush2.bf16.msra.mxu0 0
  %520 = vmatprep.subr.bf16.mxu0 0
  %521 = vmatpush2.bf16.msra.mxu0 0
  %522 = vmatprep.subr.bf16.mxu0 0
  %523 = vmatpush2.bf16.msra.mxu0 0
  %524 = vmatprep.subr.bf16.mxu0 0
  %525 = vmatpush2.bf16.msra.mxu0 0
  %526 = vmatprep.subr.bf16.mxu0 0
  %527 = vmatpush2.bf16.msra.mxu0 0
  %528 = vmatprep.mubr.bf16.mxu0 0
  %529 = vmatmul.mubr.bf16.gmra.mxu0 0
  %v530 = vpop.f32.mrf.mxu0
  %v531 = vadd.f32 0.0, %v530
  %v532 = vpop.f32.mrf.mxu0
  %v533 = vadd.f32 0.0, %v532
  %v534 = vpop.f32.mrf.mxu0
  %v535 = vpop.f32.mrf.mxu0
  %536 = vdwg.mxu0
  %537 = vmatprep.subr.bf16.mxu0 %v463
  %538 = vmatpush1.bf16.msra.mxu0 %v462
  %539 = vmatprep.subr.bf16.mxu0 %v459
  %540 = vmatpush1.bf16.msra.mxu0 %v458
  %541 = vmatprep.subr.bf16.mxu0 %v455
  %542 = vmatpush1.bf16.msra.mxu0 %v454
  %543 = vmatprep.subr.bf16.mxu0 %v451
  %544 = vmatpush1.bf16.msra.mxu0 %v450
  %545 = vmatprep.subr.bf16.mxu0 %v447
  %546 = vmatpush1.bf16.msra.mxu0 %v446
  %547 = vmatprep.subr.bf16.mxu0 %v443
  %548 = vmatpush1.bf16.msra.mxu0 %v442
  %549 = vmatprep.subr.bf16.mxu0 %v439
  %550 = vmatpush1.bf16.msra.mxu0 %v438
  %551 = vmatprep.subr.bf16.mxu0 %v435
  %552 = vmatpush1.bf16.msra.mxu0 %v434
  %553 = vmatprep.subr.bf16.mxu0 0
  %554 = vmatpush2.bf16.msra.mxu0 0
  %555 = vmatprep.subr.bf16.mxu0 0
  %556 = vmatpush2.bf16.msra.mxu0 0
  %557 = vmatprep.subr.bf16.mxu0 0
  %558 = vmatpush2.bf16.msra.mxu0 0
  %559 = vmatprep.subr.bf16.mxu0 0
  %560 = vmatpush2.bf16.msra.mxu0 0
  %561 = vmatprep.subr.bf16.mxu0 0
  %562 = vmatpush2.bf16.msra.mxu0 0
  %563 = vmatprep.subr.bf16.mxu0 0
  %564 = vmatpush2.bf16.msra.mxu0 0
  %565 = vmatprep.subr.bf16.mxu0 0
  %566 = vmatpush2.bf16.msra.mxu0 0
  %567 = vmatprep.subr.bf16.mxu0 0
  %568 = vmatpush2.bf16.msra.mxu0 0
  %569 = vmatprep.mubr.bf16.mxu0 0
  %570 = vmatmul.mubr.bf16.gmra.mxu0 0
  %v571 = vpop.f32.mrf.mxu0
  %v572 = vadd.f32 0.0, %v571
  %v573 = vpop.f32.mrf.mxu0
  %v574 = vadd.f32 0.0, %v573
  %v575 = vpop.f32.mrf.mxu0
  %v576 = vpop.f32.mrf.mxu0
  %577 = vdwg.mxu0
  %v578 = vadd.f32 %v300, %v531
  %v579 = vadd.f32 %v301, %v533
  %v580 = vadd.f32 %v302, %v572
  %v581 = vadd.f32 %v303, %v574
  %v582 = vxor.u32 %v578, 2147483648
  %v583 = vmul.f32 %v582, 1.442695
  %v584 = vpow.pop %v583
  %v585 = vadd.f32 %v584, 1.0
  %v586 = vrcp.pop %v585
  %v587 = vmul.f32 1.0, %v586
  %v588 = vxor.u32 %v579, 2147483648
  %v589 = vmul.f32 %v588, 1.442695
  %v590 = vpow.pop %v589
  %v591 = vadd.f32 %v590, 1.0
  %v592 = vrcp.pop %v591
  %v593 = vmul.f32 1.0, %v592
  %v594 = vtanh.pop %v580
  %v595 = vxor.u32 %v581, 2147483648
  %v596 = vmul.f32 %v595, 1.442695
  %v597 = vpow.pop %v596
  %v598 = vadd.f32 %v597, 1.0
  %v599 = vrcp.pop %v598
  %v600 = vmul.f32 1.0, %v599
  %v601 = vmul.f32 %v593, 0.0
  %v602 = vmul.f32 %v587, %v594
  %v603 = vadd.f32 %v601, %v602
  %v604 = vtanh.pop %v603
  %v605 = vmul.f32 %v600, %v604
  %v606 = vpack.c.bf16 %v605, %v605
  %v607 = vpack.c.bf16 0.0, 0.0
  %v608 = vld [vmem:[%s4] sm:$0xff]
  %v609 = vld [vmem:[%s4 + $0x8] sm:$0xff]
  %v610 = vld [vmem:[%s4 + $0x10] sm:$0xff]
  %v611 = vld [vmem:[%s4 + $0x18] sm:$0xff]
  %v612 = vld [vmem:[%s4 + $0x20] sm:$0xff]
  %v613 = vld [vmem:[%s4 + $0x28] sm:$0xff]
  %v614 = vld [vmem:[%s4 + $0x30] sm:$0xff]
  %v615 = vld [vmem:[%s4 + $0x38] sm:$0xff]
  %v616 = vld [vmem:[%s4 + $0x40] sm:$0xff]
  %v617 = vld [vmem:[%s4 + $0x48] sm:$0xff]
  %v618 = vld [vmem:[%s4 + $0x50] sm:$0xff]
  %v619 = vld [vmem:[%s4 + $0x58] sm:$0xff]
  %v620 = vld [vmem:[%s4 + $0x60] sm:$0xff]
  %v621 = vld [vmem:[%s4 + $0x68] sm:$0xff]
  %v622 = vld [vmem:[%s4 + $0x70] sm:$0xff]
  %v623 = vld [vmem:[%s4 + $0x78] sm:$0xff]
  %v624 = vld [vmem:[%s4 + $0x80] sm:$0xff]
  %v625 = vld [vmem:[%s4 + $0x88] sm:$0xff]
  %v626 = vld [vmem:[%s4 + $0x90] sm:$0xff]
  %v627 = vld [vmem:[%s4 + $0x98] sm:$0xff]
  %v628 = vld [vmem:[%s4 + $0xa0] sm:$0xff]
  %v629 = vld [vmem:[%s4 + $0xa8] sm:$0xff]
  %v630 = vld [vmem:[%s4 + $0xb0] sm:$0xff]
  %v631 = vld [vmem:[%s4 + $0xb8] sm:$0xff]
  %v632 = vld [vmem:[%s4 + $0xc0] sm:$0xff]
  %v633 = vld [vmem:[%s4 + $0xc8] sm:$0xff]
  %v634 = vld [vmem:[%s4 + $0xd0] sm:$0xff]
  %v635 = vld [vmem:[%s4 + $0xd8] sm:$0xff]
  %v636 = vld [vmem:[%s4 + $0xe0] sm:$0xff]
  %v637 = vld [vmem:[%s4 + $0xe8] sm:$0xff]
  %v638 = vld [vmem:[%s4 + $0xf0] sm:$0xff]
  %v639 = vld [vmem:[%s4 + $0xf8] sm:$0xff]
  %v640 = vld [vmem:[%s4 + $0x100] sm:$0xff]
  %v641 = vld [vmem:[%s4 + $0x108] sm:$0xff]
  %v642 = vld [vmem:[%s4 + $0x110] sm:$0xff]
  %v643 = vld [vmem:[%s4 + $0x118] sm:$0xff]
  %v644 = vld [vmem:[%s4 + $0x120] sm:$0xff]
  %v645 = vld [vmem:[%s4 + $0x128] sm:$0xff]
  %v646 = vld [vmem:[%s4 + $0x130] sm:$0xff]
  %v647 = vld [vmem:[%s4 + $0x138] sm:$0xff]
  %v648 = vld [vmem:[%s4 + $0x140] sm:$0xff]
  %v649 = vld [vmem:[%s4 + $0x148] sm:$0xff]
  %v650 = vld [vmem:[%s4 + $0x150] sm:$0xff]
  %v651 = vld [vmem:[%s4 + $0x158] sm:$0xff]
  %v652 = vld [vmem:[%s4 + $0x160] sm:$0xff]
  %v653 = vld [vmem:[%s4 + $0x168] sm:$0xff]
  %v654 = vld [vmem:[%s4 + $0x170] sm:$0xff]
  %v655 = vld [vmem:[%s4 + $0x178] sm:$0xff]
  %v656 = vld [vmem:[%s4 + $0x180] sm:$0xff]
  %v657 = vld [vmem:[%s4 + $0x188] sm:$0xff]
  %v658 = vld [vmem:[%s4 + $0x190] sm:$0xff]
  %v659 = vld [vmem:[%s4 + $0x198] sm:$0xff]
  %v660 = vld [vmem:[%s4 + $0x1a0] sm:$0xff]
  %v661 = vld [vmem:[%s4 + $0x1a8] sm:$0xff]
  %v662 = vld [vmem:[%s4 + $0x1b0] sm:$0xff]
  %v663 = vld [vmem:[%s4 + $0x1b8] sm:$0xff]
  %v664 = vld [vmem:[%s4 + $0x1c0] sm:$0xff]
  %v665 = vld [vmem:[%s4 + $0x1c8] sm:$0xff]
  %v666 = vld [vmem:[%s4 + $0x1d0] sm:$0xff]
  %v667 = vld [vmem:[%s4 + $0x1d8] sm:$0xff]
  %v668 = vld [vmem:[%s4 + $0x1e0] sm:$0xff]
  %v669 = vld [vmem:[%s4 + $0x1e8] sm:$0xff]
  %v670 = vld [vmem:[%s4 + $0x1f0] sm:$0xff]
  %v671 = vld [vmem:[%s4 + $0x1f8] sm:$0xff]
  %v672 = vld [vmem:[%s5] sm:$0xf]
  %v674 = vlaneseq
  %v675 = vshrl.u32 %v674, 7
  %v676 = vsub.s32 0, %v675
  %v677 = vrot.slane %v672, %v676
  %v678 = vlaneseq
  %v679 = vshrl.u32 %v678, 7
  %v680 = vsub.s32 1, %v679
  %v681 = vrot.slane %v672, %v680
  %v682 = vlaneseq
  %v683 = vshrl.u32 %v682, 7
  %v684 = vsub.s32 2, %v683
  %v685 = vrot.slane %v672, %v684
  %v686 = vlaneseq
  %v687 = vshrl.u32 %v686, 7
  %v688 = vsub.s32 3, %v687
  %v689 = vrot.slane %v672, %v688
  %v758 = vunpack.c.l.b16 %v608
  %v759 = vunpack.c.h.b16 %v608
  %v760 = vunpack.c.l.b16 %v609
  %v761 = vunpack.c.h.b16 %v609
  %v762 = vunpack.c.l.b16 %v610
  %v763 = vunpack.c.h.b16 %v610
  %v764 = vunpack.c.l.b16 %v611
  %v765 = vunpack.c.h.b16 %v611
  %v766 = vunpack.c.l.b16 %v612
  %v767 = vunpack.c.h.b16 %v612
  %v768 = vunpack.c.l.b16 %v613
  %v769 = vunpack.c.h.b16 %v613
  %v770 = vunpack.c.l.b16 %v614
  %v771 = vunpack.c.h.b16 %v614
  %v772 = vunpack.c.l.b16 %v615
  %v773 = vunpack.c.h.b16 %v615
  %v774 = vunpack.c.l.b16 %v616
  %v775 = vunpack.c.h.b16 %v616
  %v776 = vunpack.c.l.b16 %v617
  %v777 = vunpack.c.h.b16 %v617
  %v778 = vunpack.c.l.b16 %v618
  %v779 = vunpack.c.h.b16 %v618
  %v780 = vunpack.c.l.b16 %v619
  %v781 = vunpack.c.h.b16 %v619
  %v782 = vunpack.c.l.b16 %v620
  %v783 = vunpack.c.h.b16 %v620
  %v784 = vunpack.c.l.b16 %v621
  %v785 = vunpack.c.h.b16 %v621
  %v786 = vunpack.c.l.b16 %v622
  %v787 = vunpack.c.h.b16 %v622
  %v788 = vunpack.c.l.b16 %v623
  %v789 = vunpack.c.h.b16 %v623
  %v790 = vunpack.c.l.b16 %v624
  %v791 = vunpack.c.h.b16 %v624
  %v792 = vunpack.c.l.b16 %v625
  %v793 = vunpack.c.h.b16 %v625
  %v794 = vunpack.c.l.b16 %v626
  %v795 = vunpack.c.h.b16 %v626
  %v796 = vunpack.c.l.b16 %v627
  %v797 = vunpack.c.h.b16 %v627
  %v798 = vunpack.c.l.b16 %v628
  %v799 = vunpack.c.h.b16 %v628
  %v800 = vunpack.c.l.b16 %v629
  %v801 = vunpack.c.h.b16 %v629
  %v802 = vunpack.c.l.b16 %v630
  %v803 = vunpack.c.h.b16 %v630
  %v804 = vunpack.c.l.b16 %v631
  %v805 = vunpack.c.h.b16 %v631
  %v806 = vunpack.c.l.b16 %v632
  %v807 = vunpack.c.h.b16 %v632
  %v808 = vunpack.c.l.b16 %v633
  %v809 = vunpack.c.h.b16 %v633
  %v810 = vunpack.c.l.b16 %v634
  %v811 = vunpack.c.h.b16 %v634
  %v812 = vunpack.c.l.b16 %v635
  %v813 = vunpack.c.h.b16 %v635
  %v814 = vunpack.c.l.b16 %v636
  %v815 = vunpack.c.h.b16 %v636
  %v816 = vunpack.c.l.b16 %v637
  %v817 = vunpack.c.h.b16 %v637
  %v818 = vunpack.c.l.b16 %v638
  %v819 = vunpack.c.h.b16 %v638
  %v820 = vunpack.c.l.b16 %v639
  %v821 = vunpack.c.h.b16 %v639
  %v822 = vunpack.c.l.b16 %v640
  %v823 = vunpack.c.h.b16 %v640
  %v824 = vunpack.c.l.b16 %v641
  %v825 = vunpack.c.h.b16 %v641
  %v826 = vunpack.c.l.b16 %v642
  %v827 = vunpack.c.h.b16 %v642
  %v828 = vunpack.c.l.b16 %v643
  %v829 = vunpack.c.h.b16 %v643
  %v830 = vunpack.c.l.b16 %v644
  %v831 = vunpack.c.h.b16 %v644
  %v832 = vunpack.c.l.b16 %v645
  %v833 = vunpack.c.h.b16 %v645
  %v834 = vunpack.c.l.b16 %v646
  %v835 = vunpack.c.h.b16 %v646
  %v836 = vunpack.c.l.b16 %v647
  %v837 = vunpack.c.h.b16 %v647
  %v838 = vunpack.c.l.b16 %v648
  %v839 = vunpack.c.h.b16 %v648
  %v840 = vunpack.c.l.b16 %v649
  %v841 = vunpack.c.h.b16 %v649
  %v842 = vunpack.c.l.b16 %v650
  %v843 = vunpack.c.h.b16 %v650
  %v844 = vunpack.c.l.b16 %v651
  %v845 = vunpack.c.h.b16 %v651
  %v846 = vunpack.c.l.b16 %v652
  %v847 = vunpack.c.h.b16 %v652
  %v848 = vunpack.c.l.b16 %v653
  %v849 = vunpack.c.h.b16 %v653
  %v850 = vunpack.c.l.b16 %v654
  %v851 = vunpack.c.h.b16 %v654
  %v852 = vunpack.c.l.b16 %v655
  %v853 = vunpack.c.h.b16 %v655
  %v854 = vunpack.c.l.b16 %v656
  %v855 = vunpack.c.h.b16 %v656
  %v856 = vunpack.c.l.b16 %v657
  %v857 = vunpack.c.h.b16 %v657
  %v858 = vunpack.c.l.b16 %v658
  %v859 = vunpack.c.h.b16 %v658
  %v860 = vunpack.c.l.b16 %v659
  %v861 = vunpack.c.h.b16 %v659
  %v862 = vunpack.c.l.b16 %v660
  %v863 = vunpack.c.h.b16 %v660
  %v864 = vunpack.c.l.b16 %v661
  %v865 = vunpack.c.h.b16 %v661
  %v866 = vunpack.c.l.b16 %v662
  %v867 = vunpack.c.h.b16 %v662
  %v868 = vunpack.c.l.b16 %v663
  %v869 = vunpack.c.h.b16 %v663
  %v870 = vunpack.c.l.b16 %v664
  %v871 = vunpack.c.h.b16 %v664
  %v872 = vunpack.c.l.b16 %v665
  %v873 = vunpack.c.h.b16 %v665
  %v874 = vunpack.c.l.b16 %v666
  %v875 = vunpack.c.h.b16 %v666
  %v876 = vunpack.c.l.b16 %v667
  %v877 = vunpack.c.h.b16 %v667
  %v878 = vunpack.c.l.b16 %v668
  %v879 = vunpack.c.h.b16 %v668
  %v880 = vunpack.c.l.b16 %v669
  %v881 = vunpack.c.h.b16 %v669
  %v882 = vunpack.c.l.b16 %v670
  %v883 = vunpack.c.h.b16 %v670
  %v884 = vunpack.c.l.b16 %v671
  %v885 = vunpack.c.h.b16 %v671
  %v886 = vpack.c.b16 %v762, %v758
  %v887 = vpack.c.b16 %v763, %v759
  %v888 = vpack.c.b16 %v764, %v760
  %v889 = vpack.c.b16 %v765, %v761
  %v890 = vpack.c.b16 %v770, %v766
  %v891 = vpack.c.b16 %v771, %v767
  %v892 = vpack.c.b16 %v772, %v768
  %v893 = vpack.c.b16 %v773, %v769
  %v894 = vpack.c.b16 %v778, %v774
  %v895 = vpack.c.b16 %v779, %v775
  %v896 = vpack.c.b16 %v780, %v776
  %v897 = vpack.c.b16 %v781, %v777
  %v898 = vpack.c.b16 %v786, %v782
  %v899 = vpack.c.b16 %v787, %v783
  %v900 = vpack.c.b16 %v788, %v784
  %v901 = vpack.c.b16 %v789, %v785
  %v902 = vpack.c.b16 %v794, %v790
  %v903 = vpack.c.b16 %v795, %v791
  %v904 = vpack.c.b16 %v796, %v792
  %v905 = vpack.c.b16 %v797, %v793
  %v906 = vpack.c.b16 %v802, %v798
  %v907 = vpack.c.b16 %v803, %v799
  %v908 = vpack.c.b16 %v804, %v800
  %v909 = vpack.c.b16 %v805, %v801
  %v910 = vpack.c.b16 %v810, %v806
  %v911 = vpack.c.b16 %v811, %v807
  %v912 = vpack.c.b16 %v812, %v808
  %v913 = vpack.c.b16 %v813, %v809
  %v914 = vpack.c.b16 %v818, %v814
  %v915 = vpack.c.b16 %v819, %v815
  %v916 = vpack.c.b16 %v820, %v816
  %v917 = vpack.c.b16 %v821, %v817
  %v918 = vpack.c.b16 %v826, %v822
  %v919 = vpack.c.b16 %v827, %v823
  %v920 = vpack.c.b16 %v828, %v824
  %v921 = vpack.c.b16 %v829, %v825
  %v922 = vpack.c.b16 %v834, %v830
  %v923 = vpack.c.b16 %v835, %v831
  %v924 = vpack.c.b16 %v836, %v832
  %v925 = vpack.c.b16 %v837, %v833
  %v926 = vpack.c.b16 %v842, %v838
  %v927 = vpack.c.b16 %v843, %v839
  %v928 = vpack.c.b16 %v844, %v840
  %v929 = vpack.c.b16 %v845, %v841
  %v930 = vpack.c.b16 %v850, %v846
  %v931 = vpack.c.b16 %v851, %v847
  %v932 = vpack.c.b16 %v852, %v848
  %v933 = vpack.c.b16 %v853, %v849
  %v934 = vpack.c.b16 %v858, %v854
  %v935 = vpack.c.b16 %v859, %v855
  %v936 = vpack.c.b16 %v860, %v856
  %v937 = vpack.c.b16 %v861, %v857
  %v938 = vpack.c.b16 %v866, %v862
  %v939 = vpack.c.b16 %v867, %v863
  %v940 = vpack.c.b16 %v868, %v864
  %v941 = vpack.c.b16 %v869, %v865
  %v942 = vpack.c.b16 %v874, %v870
  %v943 = vpack.c.b16 %v875, %v871
  %v944 = vpack.c.b16 %v876, %v872
  %v945 = vpack.c.b16 %v877, %v873
  %v946 = vpack.c.b16 %v882, %v878
  %v947 = vpack.c.b16 %v883, %v879
  %v948 = vpack.c.b16 %v884, %v880
  %v949 = vpack.c.b16 %v885, %v881
  %1014 = vmatprep.subr.bf16.mxu0 %v915
  %1015 = vmatpush1.bf16.msra.mxu0 %v914
  %1016 = vmatprep.subr.bf16.mxu0 %v911
  %1017 = vmatpush1.bf16.msra.mxu0 %v910
  %1018 = vmatprep.subr.bf16.mxu0 %v907
  %1019 = vmatpush1.bf16.msra.mxu0 %v906
  %1020 = vmatprep.subr.bf16.mxu0 %v903
  %1021 = vmatpush1.bf16.msra.mxu0 %v902
  %1022 = vmatprep.subr.bf16.mxu0 %v899
  %1023 = vmatpush1.bf16.msra.mxu0 %v898
  %1024 = vmatprep.subr.bf16.mxu0 %v895
  %1025 = vmatpush1.bf16.msra.mxu0 %v894
  %1026 = vmatprep.subr.bf16.mxu0 %v891
  %1027 = vmatpush1.bf16.msra.mxu0 %v890
  %1028 = vmatprep.subr.bf16.mxu0 %v887
  %1029 = vmatpush1.bf16.msra.mxu0 %v886
  %1030 = vmatprep.subr.bf16.mxu0 %v947
  %1031 = vmatpush2.bf16.msra.mxu0 %v946
  %1032 = vmatprep.subr.bf16.mxu0 %v943
  %1033 = vmatpush2.bf16.msra.mxu0 %v942
  %1034 = vmatprep.subr.bf16.mxu0 %v939
  %1035 = vmatpush2.bf16.msra.mxu0 %v938
  %1036 = vmatprep.subr.bf16.mxu0 %v935
  %1037 = vmatpush2.bf16.msra.mxu0 %v934
  %1038 = vmatprep.subr.bf16.mxu0 %v931
  %1039 = vmatpush2.bf16.msra.mxu0 %v930
  %1040 = vmatprep.subr.bf16.mxu0 %v927
  %1041 = vmatpush2.bf16.msra.mxu0 %v926
  %1042 = vmatprep.subr.bf16.mxu0 %v923
  %1043 = vmatpush2.bf16.msra.mxu0 %v922
  %1044 = vmatprep.subr.bf16.mxu0 %v919
  %1045 = vmatpush2.bf16.msra.mxu0 %v918
  %1046 = vmatprep.mubr.bf16.mxu0 %v607
  %1047 = vmatmul.mubr.bf16.gmra.mxu0 %v606
  %v1048 = vpop.f32.mrf.mxu0
  %v1049 = vadd.f32 %v677, %v1048
  %v1050 = vpop.f32.mrf.mxu0
  %v1051 = vadd.f32 %v681, %v1050
  %v1052 = vpop.f32.mrf.mxu0
  %v1053 = vpop.f32.mrf.mxu0
  %1054 = vdwg.mxu0
  %1055 = vmatprep.subr.bf16.mxu0 %v917
  %1056 = vmatpush1.bf16.msra.mxu0 %v916
  %1057 = vmatprep.subr.bf16.mxu0 %v913
  %1058 = vmatpush1.bf16.msra.mxu0 %v912
  %1059 = vmatprep.subr.bf16.mxu0 %v909
  %1060 = vmatpush1.bf16.msra.mxu0 %v908
  %1061 = vmatprep.subr.bf16.mxu0 %v905
  %1062 = vmatpush1.bf16.msra.mxu0 %v904
  %1063 = vmatprep.subr.bf16.mxu0 %v901
  %1064 = vmatpush1.bf16.msra.mxu0 %v900
  %1065 = vmatprep.subr.bf16.mxu0 %v897
  %1066 = vmatpush1.bf16.msra.mxu0 %v896
  %1067 = vmatprep.subr.bf16.mxu0 %v893
  %1068 = vmatpush1.bf16.msra.mxu0 %v892
  %1069 = vmatprep.subr.bf16.mxu0 %v889
  %1070 = vmatpush1.bf16.msra.mxu0 %v888
  %1071 = vmatprep.subr.bf16.mxu0 %v949
  %1072 = vmatpush2.bf16.msra.mxu0 %v948
  %1073 = vmatprep.subr.bf16.mxu0 %v945
  %1074 = vmatpush2.bf16.msra.mxu0 %v944
  %1075 = vmatprep.subr.bf16.mxu0 %v941
  %1076 = vmatpush2.bf16.msra.mxu0 %v940
  %1077 = vmatprep.subr.bf16.mxu0 %v937
  %1078 = vmatpush2.bf16.msra.mxu0 %v936
  %1079 = vmatprep.subr.bf16.mxu0 %v933
  %1080 = vmatpush2.bf16.msra.mxu0 %v932
  %1081 = vmatprep.subr.bf16.mxu0 %v929
  %1082 = vmatpush2.bf16.msra.mxu0 %v928
  %1083 = vmatprep.subr.bf16.mxu0 %v925
  %1084 = vmatpush2.bf16.msra.mxu0 %v924
  %1085 = vmatprep.subr.bf16.mxu0 %v921
  %1086 = vmatpush2.bf16.msra.mxu0 %v920
  %1087 = vmatprep.mubr.bf16.mxu0 %v607
  %1088 = vmatmul.mubr.bf16.gmra.mxu0 %v606
  %v1089 = vpop.f32.mrf.mxu0
  %v1090 = vadd.f32 %v685, %v1089
  %v1091 = vpop.f32.mrf.mxu0
  %v1092 = vadd.f32 %v689, %v1091
  %v1093 = vpop.f32.mrf.mxu0
  %v1094 = vpop.f32.mrf.mxu0
  %1095 = vdwg.mxu0
  %v1096 = vxor.u32 %v1049, 2147483648
  %v1097 = vmul.f32 %v1096, 1.442695
  %v1098 = vpow.pop %v1097
  %v1099 = vadd.f32 %v1098, 1.0
  %v1100 = vrcp.pop %v1099
  %v1101 = vmul.f32 1.0, %v1100
  %v1102 = vxor.u32 %v1051, 2147483648
  %v1103 = vmul.f32 %v1102, 1.442695
  %v1104 = vpow.pop %v1103
  %v1105 = vadd.f32 %v1104, 1.0
  %v1106 = vrcp.pop %v1105
  %v1107 = vmul.f32 1.0, %v1106
  %v1108 = vtanh.pop %v1090
  %v1109 = vxor.u32 %v1092, 2147483648
  %v1110 = vmul.f32 %v1109, 1.442695
  %v1111 = vpow.pop %v1110
  %v1112 = vadd.f32 %v1111, 1.0
  %v1113 = vrcp.pop %v1112
  %v1114 = vmul.f32 1.0, %v1113
  %v1115 = vmul.f32 %v1107, 0.0
  %v1116 = vmul.f32 %v1101, %v1108
  %v1117 = vadd.f32 %v1115, %v1116
  %v1118 = vtanh.pop %v1117
  %v1119 = vmul.f32 %v1114, %v1118
  %s1120 = smul.u32 1, 4
  %s1121 = smul.addr %s1120, 8
  %s1122 = scalar_lea.vmem [#allocation2], %s1121
  %v1123 = vld [vmem:[%s1122] sm:$0xff]
  %v1124 = vld [vmem:[%s1122 + $0x8] sm:$0xff]
  %v1125 = vld [vmem:[%s1122 + $0x10] sm:$0xff]
  %v1126 = vld [vmem:[%s1122 + $0x18] sm:$0xff]
  %1127 = vmatprep.subr.bf16.mxu0 %v461
  %1128 = vmatpush1.bf16.msra.mxu0 %v460
  %1129 = vmatprep.subr.bf16.mxu0 %v457
  %1130 = vmatpush1.bf16.msra.mxu0 %v456
  %1131 = vmatprep.subr.bf16.mxu0 %v453
  %1132 = vmatpush1.bf16.msra.mxu0 %v452
  %1133 = vmatprep.subr.bf16.mxu0 %v449
  %1134 = vmatpush1.bf16.msra.mxu0 %v448
  %1135 = vmatprep.subr.bf16.mxu0 %v445
  %1136 = vmatpush1.bf16.msra.mxu0 %v444
  %1137 = vmatprep.subr.bf16.mxu0 %v441
  %1138 = vmatpush1.bf16.msra.mxu0 %v440
  %1139 = vmatprep.subr.bf16.mxu0 %v437
  %1140 = vmatpush1.bf16.msra.mxu0 %v436
  %1141 = vmatprep.subr.bf16.mxu0 %v433
  %1142 = vmatpush1.bf16.msra.mxu0 %v432
  %1143 = vmatprep.subr.bf16.mxu0 0
  %1144 = vmatpush2.bf16.msra.mxu0 0
  %1145 = vmatprep.subr.bf16.mxu0 0
  %1146 = vmatpush2.bf16.msra.mxu0 0
  %1147 = vmatprep.subr.bf16.mxu0 0
  %1148 = vmatpush2.bf16.msra.mxu0 0
  %1149 = vmatprep.subr.bf16.mxu0 0
  %1150 = vmatpush2.bf16.msra.mxu0 0
  %1151 = vmatprep.subr.bf16.mxu0 0
  %1152 = vmatpush2.bf16.msra.mxu0 0
  %1153 = vmatprep.subr.bf16.mxu0 0
  %1154 = vmatpush2.bf16.msra.mxu0 0
  %1155 = vmatprep.subr.bf16.mxu0 0
  %1156 = vmatpush2.bf16.msra.mxu0 0
  %1157 = vmatprep.subr.bf16.mxu0 0
  %1158 = vmatpush2.bf16.msra.mxu0 0
  %1159 = vmatprep.mubr.bf16.mxu0 0
  %1160 = vmatmul.mubr.bf16.gmra.mxu0 %v606
  %v1161 = vpop.f32.mrf.mxu0
  %v1162 = vadd.f32 0.0, %v1161
  %v1163 = vpop.f32.mrf.mxu0
  %v1164 = vadd.f32 0.0, %v1163
  %v1165 = vpop.f32.mrf.mxu0
  %v1166 = vpop.f32.mrf.mxu0
  %1167 = vdwg.mxu0
  %1168 = vmatprep.subr.bf16.mxu0 %v463
  %1169 = vmatpush1.bf16.msra.mxu0 %v462
  %1170 = vmatprep.subr.bf16.mxu0 %v459
  %1171 = vmatpush1.bf16.msra.mxu0 %v458
  %1172 = vmatprep.subr.bf16.mxu0 %v455
  %1173 = vmatpush1.bf16.msra.mxu0 %v454
  %1174 = vmatprep.subr.bf16.mxu0 %v451
  %1175 = vmatpush1.bf16.msra.mxu0 %v450
  %1176 = vmatprep.subr.bf16.mxu0 %v447
  %1177 = vmatpush1.bf16.msra.mxu0 %v446
  %1178 = vmatprep.subr.bf16.mxu0 %v443
  %1179 = vmatpush1.bf16.msra.mxu0 %v442
  %1180 = vmatprep.subr.bf16.mxu0 %v439
  %1181 = vmatpush1.bf16.msra.mxu0 %v438
  %1182 = vmatprep.subr.bf16.mxu0 %v435
  %1183 = vmatpush1.bf16.msra.mxu0 %v434
  %1184 = vmatprep.subr.bf16.mxu0 0
  %1185 = vmatpush2.bf16.msra.mxu0 0
  %1186 = vmatprep.subr.bf16.mxu0 0
  %1187 = vmatpush2.bf16.msra.mxu0 0
  %1188 = vmatprep.subr.bf16.mxu0 0
  %1189 = vmatpush2.bf16.msra.mxu0 0
  %1190 = vmatprep.subr.bf16.mxu0 0
  %1191 = vmatpush2.bf16.msra.mxu0 0
  %1192 = vmatprep.subr.bf16.mxu0 0
  %1193 = vmatpush2.bf16.msra.mxu0 0
  %1194 = vmatprep.subr.bf16.mxu0 0
  %1195 = vmatpush2.bf16.msra.mxu0 0
  %1196 = vmatprep.subr.bf16.mxu0 0
  %1197 = vmatpush2.bf16.msra.mxu0 0
  %1198 = vmatprep.subr.bf16.mxu0 0
  %1199 = vmatpush2.bf16.msra.mxu0 0
  %1200 = vmatprep.mubr.bf16.mxu0 0
  %1201 = vmatmul.mubr.bf16.gmra.mxu0 %v606
  %v1202 = vpop.f32.mrf.mxu0
  %v1203 = vadd.f32 0.0, %v1202
  %v1204 = vpop.f32.mrf.mxu0
  %v1205 = vadd.f32 0.0, %v1204
  %v1206 = vpop.f32.mrf.mxu0
  %v1207 = vpop.f32.mrf.mxu0
  %1208 = vdwg.mxu0
  %v1209 = vadd.f32 %v1123, %v1162
  %v1210 = vadd.f32 %v1124, %v1164
  %v1211 = vadd.f32 %v1125, %v1203
  %v1212 = vadd.f32 %v1126, %v1205
  %v1213 = vxor.u32 %v1209, 2147483648
  %v1214 = vmul.f32 %v1213, 1.442695
  %v1215 = vpow.pop %v1214
  %v1216 = vadd.f32 %v1215, 1.0
  %v1217 = vrcp.pop %v1216
  %v1218 = vmul.f32 1.0, %v1217
  %v1219 = vxor.u32 %v1210, 2147483648
  %v1220 = vmul.f32 %v1219, 1.442695
  %v1221 = vpow.pop %v1220
  %v1222 = vadd.f32 %v1221, 1.0
  %v1223 = vrcp.pop %v1222
  %v1224 = vmul.f32 1.0, %v1223
  %v1225 = vtanh.pop %v1211
  %v1226 = vxor.u32 %v1212, 2147483648
  %v1227 = vmul.f32 %v1226, 1.442695
  %v1228 = vpow.pop %v1227
  %v1229 = vadd.f32 %v1228, 1.0
  %v1230 = vrcp.pop %v1229
  %v1231 = vmul.f32 1.0, %v1230
  %v1232 = vmul.f32 %v1224, %v603
  %v1233 = vmul.f32 %v1218, %v1225
  %v1234 = vadd.f32 %v1232, %v1233
  %v1235 = vtanh.pop %v1234
  %v1236 = vmul.f32 %v1231, %v1235
  %v1237 = vpack.c.bf16 %v1236, %v1236
  %v1238 = vpack.c.bf16 %v1119, %v1119
  %1239 = vmatprep.subr.bf16.mxu0 %v915
  %1240 = vmatpush1.bf16.msra.mxu0 %v914
  %1241 = vmatprep.subr.bf16.mxu0 %v911
  %1242 = vmatpush1.bf16.msra.mxu0 %v910
  %1243 = vmatprep.subr.bf16.mxu0 %v907
  %1244 = vmatpush1.bf16.msra.mxu0 %v906
  %1245 = vmatprep.subr.bf16.mxu0 %v903
  %1246 = vmatpush1.bf16.msra.mxu0 %v902
  %1247 = vmatprep.subr.bf16.mxu0 %v899
  %1248 = vmatpush1.bf16.msra.mxu0 %v898
  %1249 = vmatprep.subr.bf16.mxu0 %v895
  %1250 = vmatpush1.bf16.msra.mxu0 %v894
  %1251 = vmatprep.subr.bf16.mxu0 %v891
  %1252 = vmatpush1.bf16.msra.mxu0 %v890
  %1253 = vmatprep.subr.bf16.mxu0 %v887
  %1254 = vmatpush1.bf16.msra.mxu0 %v886
  %1255 = vmatprep.subr.bf16.mxu0 %v947
  %1256 = vmatpush2.bf16.msra.mxu0 %v946
  %1257 = vmatprep.subr.bf16.mxu0 %v943
  %1258 = vmatpush2.bf16.msra.mxu0 %v942
  %1259 = vmatprep.subr.bf16.mxu0 %v939
  %1260 = vmatpush2.bf16.msra.mxu0 %v938
  %1261 = vmatprep.subr.bf16.mxu0 %v935
  %1262 = vmatpush2.bf16.msra.mxu0 %v934
  %1263 = vmatprep.subr.bf16.mxu0 %v931
  %1264 = vmatpush2.bf16.msra.mxu0 %v930
  %1265 = vmatprep.subr.bf16.mxu0 %v927
  %1266 = vmatpush2.bf16.msra.mxu0 %v926
  %1267 = vmatprep.subr.bf16.mxu0 %v923
  %1268 = vmatpush2.bf16.msra.mxu0 %v922
  %1269 = vmatprep.subr.bf16.mxu0 %v919
  %1270 = vmatpush2.bf16.msra.mxu0 %v918
  %1271 = vmatprep.mubr.bf16.mxu0 %v1238
  %1272 = vmatmul.mubr.bf16.gmra.mxu0 %v1237
  %v1273 = vpop.f32.mrf.mxu0
  %v1274 = vadd.f32 %v677, %v1273
  %v1275 = vpop.f32.mrf.mxu0
  %v1276 = vadd.f32 %v681, %v1275
  %v1277 = vpop.f32.mrf.mxu0
  %v1278 = vpop.f32.mrf.mxu0
  %1279 = vdwg.mxu0
  %1280 = vmatprep.subr.bf16.mxu0 %v917
  %1281 = vmatpush1.bf16.msra.mxu0 %v916
  %1282 = vmatprep.subr.bf16.mxu0 %v913
  %1283 = vmatpush1.bf16.msra.mxu0 %v912
  %1284 = vmatprep.subr.bf16.mxu0 %v909
  %1285 = vmatpush1.bf16.msra.mxu0 %v908
  %1286 = vmatprep.subr.bf16.mxu0 %v905
  %1287 = vmatpush1.bf16.msra.mxu0 %v904
  %1288 = vmatprep.subr.bf16.mxu0 %v901
  %1289 = vmatpush1.bf16.msra.mxu0 %v900
  %1290 = vmatprep.subr.bf16.mxu0 %v897
  %1291 = vmatpush1.bf16.msra.mxu0 %v896
  %1292 = vmatprep.subr.bf16.mxu0 %v893
  %1293 = vmatpush1.bf16.msra.mxu0 %v892
  %1294 = vmatprep.subr.bf16.mxu0 %v889
  %1295 = vmatpush1.bf16.msra.mxu0 %v888
  %1296 = vmatprep.subr.bf16.mxu0 %v949
  %1297 = vmatpush2.bf16.msra.mxu0 %v948
  %1298 = vmatprep.subr.bf16.mxu0 %v945
  %1299 = vmatpush2.bf16.msra.mxu0 %v944
  %1300 = vmatprep.subr.bf16.mxu0 %v941
  %1301 = vmatpush2.bf16.msra.mxu0 %v940
  %1302 = vmatprep.subr.bf16.mxu0 %v937
  %1303 = vmatpush2.bf16.msra.mxu0 %v936
  %1304 = vmatprep.subr.bf16.mxu0 %v933
  %1305 = vmatpush2.bf16.msra.mxu0 %v932
  %1306 = vmatprep.subr.bf16.mxu0 %v929
  %1307 = vmatpush2.bf16.msra.mxu0 %v928
  %1308 = vmatprep.subr.bf16.mxu0 %v925
  %1309 = vmatpush2.bf16.msra.mxu0 %v924
  %1310 = vmatprep.subr.bf16.mxu0 %v921
  %1311 = vmatpush2.bf16.msra.mxu0 %v920
  %1312 = vmatprep.mubr.bf16.mxu0 %v1238
  %1313 = vmatmul.mubr.bf16.gmra.mxu0 %v1237
  %v1314 = vpop.f32.mrf.mxu0
  %v1315 = vadd.f32 %v685, %v1314
  %v1316 = vpop.f32.mrf.mxu0
  %v1317 = vadd.f32 %v689, %v1316
  %v1318 = vpop.f32.mrf.mxu0
  %v1319 = vpop.f32.mrf.mxu0
  %1320 = vdwg.mxu0
  %v1321 = vxor.u32 %v1274, 2147483648
  %v1322 = vmul.f32 %v1321, 1.442695
  %v1323 = vpow.pop %v1322
  %v1324 = vadd.f32 %v1323, 1.0
  %v1325 = vrcp.pop %v1324
  %v1326 = vmul.f32 1.0, %v1325
  %v1327 = vxor.u32 %v1276, 2147483648
  %v1328 = vmul.f32 %v1327, 1.442695
  %v1329 = vpow.pop %v1328
  %v1330 = vadd.f32 %v1329, 1.0
  %v1331 = vrcp.pop %v1330
  %v1332 = vmul.f32 1.0, %v1331
  %v1333 = vtanh.pop %v1315
  %v1334 = vxor.u32 %v1317, 2147483648
  %v1335 = vmul.f32 %v1334, 1.442695
  %v1336 = vpow.pop %v1335
  %v1337 = vadd.f32 %v1336, 1.0
  %v1338 = vrcp.pop %v1337
  %v1339 = vmul.f32 1.0, %v1338
  %v1340 = vmul.f32 %v1332, %v1117
  %v1341 = vmul.f32 %v1326, %v1333
  %v1342 = vadd.f32 %v1340, %v1341
  %v1343 = vtanh.pop %v1342
  %v1344 = vmul.f32 %v1339, %v1343
  %s1345 = smul.u32 2, 4
  %s1346 = smul.addr %s1345, 8
  %s1347 = scalar_lea.vmem [#allocation2], %s1346
  %v1348 = vld [vmem:[%s1347] sm:$0xff]
  %v1349 = vld [vmem:[%s1347 + $0x8] sm:$0xff]
  %v1350 = vld [vmem:[%s1347 + $0x10] sm:$0xff]
  %v1351 = vld [vmem:[%s1347 + $0x18] sm:$0xff]
  %1352 = vmatprep.subr.bf16.mxu0 %v461
  %1353 = vmatpush1.bf16.msra.mxu0 %v460
  %1354 = vmatprep.subr.bf16.mxu0 %v457
  %1355 = vmatpush1.bf16.msra.mxu0 %v456
  %1356 = vmatprep.subr.bf16.mxu0 %v453
  %1357 = vmatpush1.bf16.msra.mxu0 %v452
  %1358 = vmatprep.subr.bf16.mxu0 %v449
  %1359 = vmatpush1.bf16.msra.mxu0 %v448
  %1360 = vmatprep.subr.bf16.mxu0 %v445
  %1361 = vmatpush1.bf16.msra.mxu0 %v444
  %1362 = vmatprep.subr.bf16.mxu0 %v441
  %1363 = vmatpush1.bf16.msra.mxu0 %v440
  %1364 = vmatprep.subr.bf16.mxu0 %v437
  %1365 = vmatpush1.bf16.msra.mxu0 %v436
  %1366 = vmatprep.subr.bf16.mxu0 %v433
  %1367 = vmatpush1.bf16.msra.mxu0 %v432
  %1368 = vmatprep.subr.bf16.mxu0 0
  %1369 = vmatpush2.bf16.msra.mxu0 0
  %1370 = vmatprep.subr.bf16.mxu0 0
  %1371 = vmatpush2.bf16.msra.mxu0 0
  %1372 = vmatprep.subr.bf16.mxu0 0
  %1373 = vmatpush2.bf16.msra.mxu0 0
  %1374 = vmatprep.subr.bf16.mxu0 0
  %1375 = vmatpush2.bf16.msra.mxu0 0
  %1376 = vmatprep.subr.bf16.mxu0 0
  %1377 = vmatpush2.bf16.msra.mxu0 0
  %1378 = vmatprep.subr.bf16.mxu0 0
  %1379 = vmatpush2.bf16.msra.mxu0 0
  %1380 = vmatprep.subr.bf16.mxu0 0
  %1381 = vmatpush2.bf16.msra.mxu0 0
  %1382 = vmatprep.subr.bf16.mxu0 0
  %1383 = vmatpush2.bf16.msra.mxu0 0
  %1384 = vmatprep.mubr.bf16.mxu0 0
  %1385 = vmatmul.mubr.bf16.gmra.mxu0 %v1237
  %v1386 = vpop.f32.mrf.mxu0
  %v1387 = vadd.f32 0.0, %v1386
  %v1388 = vpop.f32.mrf.mxu0
  %v1389 = vadd.f32 0.0, %v1388
  %v1390 = vpop.f32.mrf.mxu0
  %v1391 = vpop.f32.mrf.mxu0
  %1392 = vdwg.mxu0
  %1393 = vmatprep.subr.bf16.mxu0 %v463
  %1394 = vmatpush1.bf16.msra.mxu0 %v462
  %1395 = vmatprep.subr.bf16.mxu0 %v459
  %1396 = vmatpush1.bf16.msra.mxu0 %v458
  %1397 = vmatprep.subr.bf16.mxu0 %v455
  %1398 = vmatpush1.bf16.msra.mxu0 %v454
  %1399 = vmatprep.subr.bf16.mxu0 %v451
  %1400 = vmatpush1.bf16.msra.mxu0 %v450
  %1401 = vmatprep.subr.bf16.mxu0 %v447
  %1402 = vmatpush1.bf16.msra.mxu0 %v446
  %1403 = vmatprep.subr.bf16.mxu0 %v443
  %1404 = vmatpush1.bf16.msra.mxu0 %v442
  %1405 = vmatprep.subr.bf16.mxu0 %v439
  %1406 = vmatpush1.bf16.msra.mxu0 %v438
  %1407 = vmatprep.subr.bf16.mxu0 %v435
  %1408 = vmatpush1.bf16.msra.mxu0 %v434
  %1409 = vmatprep.subr.bf16.mxu0 0
  %1410 = vmatpush2.bf16.msra.mxu0 0
  %1411 = vmatprep.subr.bf16.mxu0 0
  %1412 = vmatpush2.bf16.msra.mxu0 0
  %1413 = vmatprep.subr.bf16.mxu0 0
  %1414 = vmatpush2.bf16.msra.mxu0 0
  %1415 = vmatprep.subr.bf16.mxu0 0
  %1416 = vmatpush2.bf16.msra.mxu0 0
  %1417 = vmatprep.subr.bf16.mxu0 0
  %1418 = vmatpush2.bf16.msra.mxu0 0
  %1419 = vmatprep.subr.bf16.mxu0 0
  %1420 = vmatpush2.bf16.msra.mxu0 0
  %1421 = vmatprep.subr.bf16.mxu0 0
  %1422 = vmatpush2.bf16.msra.mxu0 0
  %1423 = vmatprep.subr.bf16.mxu0 0
  %1424 = vmatpush2.bf16.msra.mxu0 0
  %1425 = vmatprep.mubr.bf16.mxu0 0
  %1426 = vmatmul.mubr.bf16.gmra.mxu0 %v1237
  %v1427 = vpop.f32.mrf.mxu0
  %v1428 = vadd.f32 0.0, %v1427
  %v1429 = vpop.f32.mrf.mxu0
  %v1430 = vadd.f32 0.0, %v1429
  %v1431 = vpop.f32.mrf.mxu0
  %v1432 = vpop.f32.mrf.mxu0
  %1433 = vdwg.mxu0
  %v1434 = vadd.f32 %v1348, %v1387
  %v1435 = vadd.f32 %v1349, %v1389
  %v1436 = vadd.f32 %v1350, %v1428
  %v1437 = vadd.f32 %v1351, %v1430
  %v1438 = vxor.u32 %v1434, 2147483648
  %v1439 = vmul.f32 %v1438, 1.442695
  %v1440 = vpow.pop %v1439
  %v1441 = vadd.f32 %v1440, 1.0
  %v1442 = vrcp.pop %v1441
  %v1443 = vmul.f32 1.0, %v1442
  %v1444 = vxor.u32 %v1435, 2147483648
  %v1445 = vmul.f32 %v1444, 1.442695
  %v1446 = vpow.pop %v1445
  %v1447 = vadd.f32 %v1446, 1.0
  %v1448 = vrcp.pop %v1447
  %v1449 = vmul.f32 1.0, %v1448
  %v1450 = vtanh.pop %v1436
  %v1451 = vxor.u32 %v1437, 2147483648
  %v1452 = vmul.f32 %v1451, 1.442695
  %v1453 = vpow.pop %v1452
  %v1454 = vadd.f32 %v1453, 1.0
  %v1455 = vrcp.pop %v1454
  %v1456 = vmul.f32 1.0, %v1455
  %v1457 = vmul.f32 %v1449, %v1234
  %v1458 = vmul.f32 %v1443, %v1450
  %v1459 = vadd.f32 %v1457, %v1458
  %v1460 = vtanh.pop %v1459
  %v1461 = vmul.f32 %v1456, %v1460
  %v1462 = vpack.c.bf16 %v1461, %v1461
  %v1463 = vpack.c.bf16 %v1344, %v1344
  %1464 = vmatprep.subr.bf16.mxu0 %v915
  %1465 = vmatpush1.bf16.msra.mxu0 %v914
  %1466 = vmatprep.subr.bf16.mxu0 %v911
  %1467 = vmatpush1.bf16.msra.mxu0 %v910
  %1468 = vmatprep.subr.bf16.mxu0 %v907
  %1469 = vmatpush1.bf16.msra.mxu0 %v906
  %1470 = vmatprep.subr.bf16.mxu0 %v903
  %1471 = vmatpush1.bf16.msra.mxu0 %v902
  %1472 = vmatprep.subr.bf16.mxu0 %v899
  %1473 = vmatpush1.bf16.msra.mxu0 %v898
  %1474 = vmatprep.subr.bf16.mxu0 %v895
  %1475 = vmatpush1.bf16.msra.mxu0 %v894
  %1476 = vmatprep.subr.bf16.mxu0 %v891
  %1477 = vmatpush1.bf16.msra.mxu0 %v890
  %1478 = vmatprep.subr.bf16.mxu0 %v887
  %1479 = vmatpush1.bf16.msra.mxu0 %v886
  %1480 = vmatprep.subr.bf16.mxu0 %v947
  %1481 = vmatpush2.bf16.msra.mxu0 %v946
  %1482 = vmatprep.subr.bf16.mxu0 %v943
  %1483 = vmatpush2.bf16.msra.mxu0 %v942
  %1484 = vmatprep.subr.bf16.mxu0 %v939
  %1485 = vmatpush2.bf16.msra.mxu0 %v938
  %1486 = vmatprep.subr.bf16.mxu0 %v935
  %1487 = vmatpush2.bf16.msra.mxu0 %v934
  %1488 = vmatprep.subr.bf16.mxu0 %v931
  %1489 = vmatpush2.bf16.msra.mxu0 %v930
  %1490 = vmatprep.subr.bf16.mxu0 %v927
  %1491 = vmatpush2.bf16.msra.mxu0 %v926
  %1492 = vmatprep.subr.bf16.mxu0 %v923
  %1493 = vmatpush2.bf16.msra.mxu0 %v922
  %1494 = vmatprep.subr.bf16.mxu0 %v919
  %1495 = vmatpush2.bf16.msra.mxu0 %v918
  %1496 = vmatprep.mubr.bf16.mxu0 %v1463
  %1497 = vmatmul.mubr.bf16.gmra.mxu0 %v1462
  %v1498 = vpop.f32.mrf.mxu0
  %v1499 = vadd.f32 %v677, %v1498
  %v1500 = vpop.f32.mrf.mxu0
  %v1501 = vadd.f32 %v681, %v1500
  %v1502 = vpop.f32.mrf.mxu0
  %v1503 = vpop.f32.mrf.mxu0
  %1504 = vdwg.mxu0
  %1505 = vmatprep.subr.bf16.mxu0 %v917
  %1506 = vmatpush1.bf16.msra.mxu0 %v916
  %1507 = vmatprep.subr.bf16.mxu0 %v913
  %1508 = vmatpush1.bf16.msra.mxu0 %v912
  %1509 = vmatprep.subr.bf16.mxu0 %v909
  %1510 = vmatpush1.bf16.msra.mxu0 %v908
  %1511 = vmatprep.subr.bf16.mxu0 %v905
  %1512 = vmatpush1.bf16.msra.mxu0 %v904
  %1513 = vmatprep.subr.bf16.mxu0 %v901
  %1514 = vmatpush1.bf16.msra.mxu0 %v900
  %1515 = vmatprep.subr.bf16.mxu0 %v897
  %1516 = vmatpush1.bf16.msra.mxu0 %v896
  %1517 = vmatprep.subr.bf16.mxu0 %v893
  %1518 = vmatpush1.bf16.msra.mxu0 %v892
  %1519 = vmatprep.subr.bf16.mxu0 %v889
  %1520 = vmatpush1.bf16.msra.mxu0 %v888
  %1521 = vmatprep.subr.bf16.mxu0 %v949
  %1522 = vmatpush2.bf16.msra.mxu0 %v948
  %1523 = vmatprep.subr.bf16.mxu0 %v945
  %1524 = vmatpush2.bf16.msra.mxu0 %v944
  %1525 = vmatprep.subr.bf16.mxu0 %v941
  %1526 = vmatpush2.bf16.msra.mxu0 %v940
  %1527 = vmatprep.subr.bf16.mxu0 %v937
  %1528 = vmatpush2.bf16.msra.mxu0 %v936
  %1529 = vmatprep.subr.bf16.mxu0 %v933
  %1530 = vmatpush2.bf16.msra.mxu0 %v932
  %1531 = vmatprep.subr.bf16.mxu0 %v929
  %1532 = vmatpush2.bf16.msra.mxu0 %v928
  %1533 = vmatprep.subr.bf16.mxu0 %v925
  %1534 = vmatpush2.bf16.msra.mxu0 %v924
  %1535 = vmatprep.subr.bf16.mxu0 %v921
  %1536 = vmatpush2.bf16.msra.mxu0 %v920
  %1537 = vmatprep.mubr.bf16.mxu0 %v1463
  %1538 = vmatmul.mubr.bf16.gmra.mxu0 %v1462
  %v1539 = vpop.f32.mrf.mxu0
  %v1540 = vadd.f32 %v685, %v1539
  %v1541 = vpop.f32.mrf.mxu0
  %v1542 = vadd.f32 %v689, %v1541
  %v1543 = vpop.f32.mrf.mxu0
  %v1544 = vpop.f32.mrf.mxu0
  %1545 = vdwg.mxu0
  %v1546 = vxor.u32 %v1499, 2147483648
  %v1547 = vmul.f32 %v1546, 1.442695
  %v1548 = vpow.pop %v1547
  %v1549 = vadd.f32 %v1548, 1.0
  %v1550 = vrcp.pop %v1549
  %v1551 = vmul.f32 1.0, %v1550
  %v1552 = vxor.u32 %v1501, 2147483648
  %v1553 = vmul.f32 %v1552, 1.442695
  %v1554 = vpow.pop %v1553
  %v1555 = vadd.f32 %v1554, 1.0
  %v1556 = vrcp.pop %v1555
  %v1557 = vmul.f32 1.0, %v1556
  %v1558 = vtanh.pop %v1540
  %v1559 = vxor.u32 %v1542, 2147483648
  %v1560 = vmul.f32 %v1559, 1.442695
  %v1561 = vpow.pop %v1560
  %v1562 = vadd.f32 %v1561, 1.0
  %v1563 = vrcp.pop %v1562
  %v1564 = vmul.f32 1.0, %v1563
  %v1565 = vmul.f32 %v1557, %v1342
  %v1566 = vmul.f32 %v1551, %v1558
  %v1567 = vadd.f32 %v1565, %v1566
  %v1568 = vtanh.pop %v1567
  %v1569 = vmul.f32 %v1564, %v1568
  %s1570 = smul.u32 3, 4
  %s1571 = smul.addr %s1570, 8
  %s1572 = scalar_lea.vmem [#allocation2], %s1571
  %v1573 = vld [vmem:[%s1572] sm:$0xff]
  %v1574 = vld [vmem:[%s1572 + $0x8] sm:$0xff]
  %v1575 = vld [vmem:[%s1572 + $0x10] sm:$0xff]
  %v1576 = vld [vmem:[%s1572 + $0x18] sm:$0xff]
  %1577 = vmatprep.subr.bf16.mxu0 %v461
  %1578 = vmatpush1.bf16.msra.mxu0 %v460
  %1579 = vmatprep.subr.bf16.mxu0 %v457
  %1580 = vmatpush1.bf16.msra.mxu0 %v456
  %1581 = vmatprep.subr.bf16.mxu0 %v453
  %1582 = vmatpush1.bf16.msra.mxu0 %v452
  %1583 = vmatprep.subr.bf16.mxu0 %v449
  %1584 = vmatpush1.bf16.msra.mxu0 %v448
  %1585 = vmatprep.subr.bf16.mxu0 %v445
  %1586 = vmatpush1.bf16.msra.mxu0 %v444
  %1587 = vmatprep.subr.bf16.mxu0 %v441
  %1588 = vmatpush1.bf16.msra.mxu0 %v440
  %1589 = vmatprep.subr.bf16.mxu0 %v437
  %1590 = vmatpush1.bf16.msra.mxu0 %v436
  %1591 = vmatprep.subr.bf16.mxu0 %v433
  %1592 = vmatpush1.bf16.msra.mxu0 %v432
  %1593 = vmatprep.subr.bf16.mxu0 0
  %1594 = vmatpush2.bf16.msra.mxu0 0
  %1595 = vmatprep.subr.bf16.mxu0 0
  %1596 = vmatpush2.bf16.msra.mxu0 0
  %1597 = vmatprep.subr.bf16.mxu0 0
  %1598 = vmatpush2.bf16.msra.mxu0 0
  %1599 = vmatprep.subr.bf16.mxu0 0
  %1600 = vmatpush2.bf16.msra.mxu0 0
  %1601 = vmatprep.subr.bf16.mxu0 0
  %1602 = vmatpush2.bf16.msra.mxu0 0
  %1603 = vmatprep.subr.bf16.mxu0 0
  %1604 = vmatpush2.bf16.msra.mxu0 0
  %1605 = vmatprep.subr.bf16.mxu0 0
  %1606 = vmatpush2.bf16.msra.mxu0 0
  %1607 = vmatprep.subr.bf16.mxu0 0
  %1608 = vmatpush2.bf16.msra.mxu0 0
  %1609 = vmatprep.mubr.bf16.mxu0 0
  %1610 = vmatmul.mubr.bf16.gmra.mxu0 %v1462
  %v1611 = vpop.f32.mrf.mxu0
  %v1612 = vadd.f32 0.0, %v1611
  %v1613 = vpop.f32.mrf.mxu0
  %v1614 = vadd.f32 0.0, %v1613
  %v1615 = vpop.f32.mrf.mxu0
  %v1616 = vpop.f32.mrf.mxu0
  %1617 = vdwg.mxu0
  %1618 = vmatprep.subr.bf16.mxu0 %v463
  %1619 = vmatpush1.bf16.msra.mxu0 %v462
  %1620 = vmatprep.subr.bf16.mxu0 %v459
  %1621 = vmatpush1.bf16.msra.mxu0 %v458
  %1622 = vmatprep.subr.bf16.mxu0 %v455
  %1623 = vmatpush1.bf16.msra.mxu0 %v454
  %1624 = vmatprep.subr.bf16.mxu0 %v451
  %1625 = vmatpush1.bf16.msra.mxu0 %v450
  %1626 = vmatprep.subr.bf16.mxu0 %v447
  %1627 = vmatpush1.bf16.msra.mxu0 %v446
  %1628 = vmatprep.subr.bf16.mxu0 %v443
  %1629 = vmatpush1.bf16.msra.mxu0 %v442
  %1630 = vmatprep.subr.bf16.mxu0 %v439
  %1631 = vmatpush1.bf16.msra.mxu0 %v438
  %1632 = vmatprep.subr.bf16.mxu0 %v435
  %1633 = vmatpush1.bf16.msra.mxu0 %v434
  %1634 = vmatprep.subr.bf16.mxu0 0
  %1635 = vmatpush2.bf16.msra.mxu0 0
  %1636 = vmatprep.subr.bf16.mxu0 0
  %1637 = vmatpush2.bf16.msra.mxu0 0
  %1638 = vmatprep.subr.bf16.mxu0 0
  %1639 = vmatpush2.bf16.msra.mxu0 0
  %1640 = vmatprep.subr.bf16.mxu0 0
  %1641 = vmatpush2.bf16.msra.mxu0 0
  %1642 = vmatprep.subr.bf16.mxu0 0
  %1643 = vmatpush2.bf16.msra.mxu0 0
  %1644 = vmatprep.subr.bf16.mxu0 0
  %1645 = vmatpush2.bf16.msra.mxu0 0
  %1646 = vmatprep.subr.bf16.mxu0 0
  %1647 = vmatpush2.bf16.msra.mxu0 0
  %1648 = vmatprep.subr.bf16.mxu0 0
  %1649 = vmatpush2.bf16.msra.mxu0 0
  %1650 = vmatprep.mubr.bf16.mxu0 0
  %1651 = vmatmul.mubr.bf16.gmra.mxu0 %v1462
  %v1652 = vpop.f32.mrf.mxu0
  %v1653 = vadd.f32 0.0, %v1652
  %v1654 = vpop.f32.mrf.mxu0
  %v1655 = vadd.f32 0.0, %v1654
  %v1656 = vpop.f32.mrf.mxu0
  %v1657 = vpop.f32.mrf.mxu0
  %1658 = vdwg.mxu0
  %v1659 = vadd.f32 %v1573, %v1612
  %v1660 = vadd.f32 %v1574, %v1614
  %v1661 = vadd.f32 %v1575, %v1653
  %v1662 = vadd.f32 %v1576, %v1655
  %v1663 = vxor.u32 %v1659, 2147483648
  %v1664 = vmul.f32 %v1663, 1.442695
  %v1665 = vpow.pop %v1664
  %v1666 = vadd.f32 %v1665, 1.0
  %v1667 = vrcp.pop %v1666
  %v1668 = vmul.f32 1.0, %v1667
  %v1669 = vxor.u32 %v1660, 2147483648
  %v1670 = vmul.f32 %v1669, 1.442695
  %v1671 = vpow.pop %v1670
  %v1672 = vadd.f32 %v1671, 1.0
  %v1673 = vrcp.pop %v1672
  %v1674 = vmul.f32 1.0, %v1673
  %v1675 = vtanh.pop %v1661
  %v1676 = vxor.u32 %v1662, 2147483648
  %v1677 = vmul.f32 %v1676, 1.442695
  %v1678 = vpow.pop %v1677
  %v1679 = vadd.f32 %v1678, 1.0
  %v1680 = vrcp.pop %v1679
  %v1681 = vmul.f32 1.0, %v1680
  %v1682 = vmul.f32 %v1674, %v1459
  %v1683 = vmul.f32 %v1668, %v1675
  %v1684 = vadd.f32 %v1682, %v1683
  %v1685 = vtanh.pop %v1684
  %v1686 = vmul.f32 %v1681, %v1685
  %v1687 = vpack.c.bf16 %v1686, %v1686
  %v1688 = vpack.c.bf16 %v1569, %v1569
  %1689 = vmatprep.subr.bf16.mxu0 %v915
  %1690 = vmatpush1.bf16.msra.mxu0 %v914
  %1691 = vmatprep.subr.bf16.mxu0 %v911
  %1692 = vmatpush1.bf16.msra.mxu0 %v910
  %1693 = vmatprep.subr.bf16.mxu0 %v907
  %1694 = vmatpush1.bf16.msra.mxu0 %v906
  %1695 = vmatprep.subr.bf16.mxu0 %v903
  %1696 = vmatpush1.bf16.msra.mxu0 %v902
  %1697 = vmatprep.subr.bf16.mxu0 %v899
  %1698 = vmatpush1.bf16.msra.mxu0 %v898
  %1699 = vmatprep.subr.bf16.mxu0 %v895
  %1700 = vmatpush1.bf16.msra.mxu0 %v894
  %1701 = vmatprep.subr.bf16.mxu0 %v891
  %1702 = vmatpush1.bf16.msra.mxu0 %v890
  %1703 = vmatprep.subr.bf16.mxu0 %v887
  %1704 = vmatpush1.bf16.msra.mxu0 %v886
  %1705 = vmatprep.subr.bf16.mxu0 %v947
  %1706 = vmatpush2.bf16.msra.mxu0 %v946
  %1707 = vmatprep.subr.bf16.mxu0 %v943
  %1708 = vmatpush2.bf16.msra.mxu0 %v942
  %1709 = vmatprep.subr.bf16.mxu0 %v939
  %1710 = vmatpush2.bf16.msra.mxu0 %v938
  %1711 = vmatprep.subr.bf16.mxu0 %v935
  %1712 = vmatpush2.bf16.msra.mxu0 %v934
  %1713 = vmatprep.subr.bf16.mxu0 %v931
  %1714 = vmatpush2.bf16.msra.mxu0 %v930
  %1715 = vmatprep.subr.bf16.mxu0 %v927
  %1716 = vmatpush2.bf16.msra.mxu0 %v926
  %1717 = vmatprep.subr.bf16.mxu0 %v923
  %1718 = vmatpush2.bf16.msra.mxu0 %v922
  %1719 = vmatprep.subr.bf16.mxu0 %v919
  %1720 = vmatpush2.bf16.msra.mxu0 %v918
  %1721 = vmatprep.mubr.bf16.mxu0 %v1688
  %1722 = vmatmul.mubr.bf16.gmra.mxu0 %v1687
  %v1723 = vpop.f32.mrf.mxu0
  %v1724 = vadd.f32 %v677, %v1723
  %v1725 = vpop.f32.mrf.mxu0
  %v1726 = vadd.f32 %v681, %v1725
  %v1727 = vpop.f32.mrf.mxu0
  %v1728 = vpop.f32.mrf.mxu0
  %1729 = vdwg.mxu0
  %1730 = vmatprep.subr.bf16.mxu0 %v917
  %1731 = vmatpush1.bf16.msra.mxu0 %v916
  %1732 = vmatprep.subr.bf16.mxu0 %v913
  %1733 = vmatpush1.bf16.msra.mxu0 %v912
  %1734 = vmatprep.subr.bf16.mxu0 %v909
  %1735 = vmatpush1.bf16.msra.mxu0 %v908
  %1736 = vmatprep.subr.bf16.mxu0 %v905
  %1737 = vmatpush1.bf16.msra.mxu0 %v904
  %1738 = vmatprep.subr.bf16.mxu0 %v901
  %1739 = vmatpush1.bf16.msra.mxu0 %v900
  %1740 = vmatprep.subr.bf16.mxu0 %v897
  %1741 = vmatpush1.bf16.msra.mxu0 %v896
  %1742 = vmatprep.subr.bf16.mxu0 %v893
  %1743 = vmatpush1.bf16.msra.mxu0 %v892
  %1744 = vmatprep.subr.bf16.mxu0 %v889
  %1745 = vmatpush1.bf16.msra.mxu0 %v888
  %1746 = vmatprep.subr.bf16.mxu0 %v949
  %1747 = vmatpush2.bf16.msra.mxu0 %v948
  %1748 = vmatprep.subr.bf16.mxu0 %v945
  %1749 = vmatpush2.bf16.msra.mxu0 %v944
  %1750 = vmatprep.subr.bf16.mxu0 %v941
  %1751 = vmatpush2.bf16.msra.mxu0 %v940
  %1752 = vmatprep.subr.bf16.mxu0 %v937
  %1753 = vmatpush2.bf16.msra.mxu0 %v936
  %1754 = vmatprep.subr.bf16.mxu0 %v933
  %1755 = vmatpush2.bf16.msra.mxu0 %v932
  %1756 = vmatprep.subr.bf16.mxu0 %v929
  %1757 = vmatpush2.bf16.msra.mxu0 %v928
  %1758 = vmatprep.subr.bf16.mxu0 %v925
  %1759 = vmatpush2.bf16.msra.mxu0 %v924
  %1760 = vmatprep.subr.bf16.mxu0 %v921
  %1761 = vmatpush2.bf16.msra.mxu0 %v920
  %1762 = vmatprep.mubr.bf16.mxu0 %v1688
  %1763 = vmatmul.mubr.bf16.gmra.mxu0 %v1687
  %v1764 = vpop.f32.mrf.mxu0
  %v1765 = vadd.f32 %v685, %v1764
  %v1766 = vpop.f32.mrf.mxu0
  %v1767 = vadd.f32 %v689, %v1766
  %v1768 = vpop.f32.mrf.mxu0
  %v1769 = vpop.f32.mrf.mxu0
  %1770 = vdwg.mxu0
  %v1771 = vxor.u32 %v1724, 2147483648
  %v1772 = vmul.f32 %v1771, 1.442695
  %v1773 = vpow.pop %v1772
  %v1774 = vadd.f32 %v1773, 1.0
  %v1775 = vrcp.pop %v1774
  %v1776 = vmul.f32 1.0, %v1775
  %v1777 = vxor.u32 %v1726, 2147483648
  %v1778 = vmul.f32 %v1777, 1.442695
  %v1779 = vpow.pop %v1778
  %v1780 = vadd.f32 %v1779, 1.0
  %v1781 = vrcp.pop %v1780
  %v1782 = vmul.f32 1.0, %v1781
  %v1783 = vtanh.pop %v1765
  %v1784 = vxor.u32 %v1767, 2147483648
  %v1785 = vmul.f32 %v1784, 1.442695
  %v1786 = vpow.pop %v1785
  %v1787 = vadd.f32 %v1786, 1.0
  %v1788 = vrcp.pop %v1787
  %v1789 = vmul.f32 1.0, %v1788
  %v1790 = vmul.f32 %v1782, %v1567
  %v1791 = vmul.f32 %v1776, %v1783
  %v1792 = vadd.f32 %v1790, %v1791
  %v1793 = vtanh.pop %v1792
  %v1794 = vmul.f32 %v1789, %v1793
  %s1795 = smul.u32 4, 4
  %s1796 = smul.addr %s1795, 8
  %s1797 = scalar_lea.vmem [#allocation2], %s1796
  %v1798 = vld [vmem:[%s1797] sm:$0xff]
  %v1799 = vld [vmem:[%s1797 + $0x8] sm:$0xff]
  %v1800 = vld [vmem:[%s1797 + $0x10] sm:$0xff]
  %v1801 = vld [vmem:[%s1797 + $0x18] sm:$0xff]
  %1802 = vmatprep.subr.bf16.mxu0 %v461
  %1803 = vmatpush1.bf16.msra.mxu0 %v460
  %1804 = vmatprep.subr.bf16.mxu0 %v457
  %1805 = vmatpush1.bf16.msra.mxu0 %v456
  %1806 = vmatprep.subr.bf16.mxu0 %v453
  %1807 = vmatpush1.bf16.msra.mxu0 %v452
  %1808 = vmatprep.subr.bf16.mxu0 %v449
  %1809 = vmatpush1.bf16.msra.mxu0 %v448
  %1810 = vmatprep.subr.bf16.mxu0 %v445
  %1811 = vmatpush1.bf16.msra.mxu0 %v444
  %1812 = vmatprep.subr.bf16.mxu0 %v441
  %1813 = vmatpush1.bf16.msra.mxu0 %v440
  %1814 = vmatprep.subr.bf16.mxu0 %v437
  %1815 = vmatpush1.bf16.msra.mxu0 %v436
  %1816 = vmatprep.subr.bf16.mxu0 %v433
  %1817 = vmatpush1.bf16.msra.mxu0 %v432
  %1818 = vmatprep.subr.bf16.mxu0 0
  %1819 = vmatpush2.bf16.msra.mxu0 0
  %1820 = vmatprep.subr.bf16.mxu0 0
  %1821 = vmatpush2.bf16.msra.mxu0 0
  %1822 = vmatprep.subr.bf16.mxu0 0
  %1823 = vmatpush2.bf16.msra.mxu0 0
  %1824 = vmatprep.subr.bf16.mxu0 0
  %1825 = vmatpush2.bf16.msra.mxu0 0
  %1826 = vmatprep.subr.bf16.mxu0 0
  %1827 = vmatpush2.bf16.msra.mxu0 0
  %1828 = vmatprep.subr.bf16.mxu0 0
  %1829 = vmatpush2.bf16.msra.mxu0 0
  %1830 = vmatprep.subr.bf16.mxu0 0
  %1831 = vmatpush2.bf16.msra.mxu0 0
  %1832 = vmatprep.subr.bf16.mxu0 0
  %1833 = vmatpush2.bf16.msra.mxu0 0
  %1834 = vmatprep.mubr.bf16.mxu0 0
  %1835 = vmatmul.mubr.bf16.gmra.mxu0 %v1687
  %v1836 = vpop.f32.mrf.mxu0
  %v1837 = vadd.f32 0.0, %v1836
  %v1838 = vpop.f32.mrf.mxu0
  %v1839 = vadd.f32 0.0, %v1838
  %v1840 = vpop.f32.mrf.mxu0
  %v1841 = vpop.f32.mrf.mxu0
  %1842 = vdwg.mxu0
  %1843 = vmatprep.subr.bf16.mxu0 %v463
  %1844 = vmatpush1.bf16.msra.mxu0 %v462
  %1845 = vmatprep.subr.bf16.mxu0 %v459
  %1846 = vmatpush1.bf16.msra.mxu0 %v458
  %1847 = vmatprep.subr.bf16.mxu0 %v455
  %1848 = vmatpush1.bf16.msra.mxu0 %v454
  %1849 = vmatprep.subr.bf16.mxu0 %v451
  %1850 = vmatpush1.bf16.msra.mxu0 %v450
  %1851 = vmatprep.subr.bf16.mxu0 %v447
  %1852 = vmatpush1.bf16.msra.mxu0 %v446
  %1853 = vmatprep.subr.bf16.mxu0 %v443
  %1854 = vmatpush1.bf16.msra.mxu0 %v442
  %1855 = vmatprep.subr.bf16.mxu0 %v439
  %1856 = vmatpush1.bf16.msra.mxu0 %v438
  %1857 = vmatprep.subr.bf16.mxu0 %v435
  %1858 = vmatpush1.bf16.msra.mxu0 %v434
  %1859 = vmatprep.subr.bf16.mxu0 0
  %1860 = vmatpush2.bf16.msra.mxu0 0
  %1861 = vmatprep.subr.bf16.mxu0 0
  %1862 = vmatpush2.bf16.msra.mxu0 0
  %1863 = vmatprep.subr.bf16.mxu0 0
  %1864 = vmatpush2.bf16.msra.mxu0 0
  %1865 = vmatprep.subr.bf16.mxu0 0
  %1866 = vmatpush2.bf16.msra.mxu0 0
  %1867 = vmatprep.subr.bf16.mxu0 0
  %1868 = vmatpush2.bf16.msra.mxu0 0
  %1869 = vmatprep.subr.bf16.mxu0 0
  %1870 = vmatpush2.bf16.msra.mxu0 0
  %1871 = vmatprep.subr.bf16.mxu0 0
  %1872 = vmatpush2.bf16.msra.mxu0 0
  %1873 = vmatprep.subr.bf16.mxu0 0
  %1874 = vmatpush2.bf16.msra.mxu0 0
  %1875 = vmatprep.mubr.bf16.mxu0 0
  %1876 = vmatmul.mubr.bf16.gmra.mxu0 %v1687
  %v1877 = vpop.f32.mrf.mxu0
  %v1878 = vadd.f32 0.0, %v1877
  %v1879 = vpop.f32.mrf.mxu0
  %v1880 = vadd.f32 0.0, %v1879
  %v1881 = vpop.f32.mrf.mxu0
  %v1882 = vpop.f32.mrf.mxu0
  %1883 = vdwg.mxu0
  %v1884 = vadd.f32 %v1798, %v1837
  %v1885 = vadd.f32 %v1799, %v1839
  %v1886 = vadd.f32 %v1800, %v1878
  %v1887 = vadd.f32 %v1801, %v1880
  %v1888 = vxor.u32 %v1884, 2147483648
  %v1889 = vmul.f32 %v1888, 1.442695
  %v1890 = vpow.pop %v1889
  %v1891 = vadd.f32 %v1890, 1.0
  %v1892 = vrcp.pop %v1891
  %v1893 = vmul.f32 1.0, %v1892
  %v1894 = vxor.u32 %v1885, 2147483648
  %v1895 = vmul.f32 %v1894, 1.442695
  %v1896 = vpow.pop %v1895
  %v1897 = vadd.f32 %v1896, 1.0
  %v1898 = vrcp.pop %v1897
  %v1899 = vmul.f32 1.0, %v1898
  %v1900 = vtanh.pop %v1886
  %v1901 = vxor.u32 %v1887, 2147483648
  %v1902 = vmul.f32 %v1901, 1.442695
  %v1903 = vpow.pop %v1902
  %v1904 = vadd.f32 %v1903, 1.0
  %v1905 = vrcp.pop %v1904
  %v1906 = vmul.f32 1.0, %v1905
  %v1907 = vmul.f32 %v1899, %v1684
  %v1908 = vmul.f32 %v1893, %v1900
  %v1909 = vadd.f32 %v1907, %v1908
  %v1910 = vtanh.pop %v1909
  %v1911 = vmul.f32 %v1906, %v1910
  %v1912 = vpack.c.bf16 %v1911, %v1911
  %v1913 = vpack.c.bf16 %v1794, %v1794
  %1914 = vmatprep.subr.bf16.mxu0 %v915
  %1915 = vmatpush1.bf16.msra.mxu0 %v914
  %1916 = vmatprep.subr.bf16.mxu0 %v911
  %1917 = vmatpush1.bf16.msra.mxu0 %v910
  %1918 = vmatprep.subr.bf16.mxu0 %v907
  %1919 = vmatpush1.bf16.msra.mxu0 %v906
  %1920 = vmatprep.subr.bf16.mxu0 %v903
  %1921 = vmatpush1.bf16.msra.mxu0 %v902
  %1922 = vmatprep.subr.bf16.mxu0 %v899
  %1923 = vmatpush1.bf16.msra.mxu0 %v898
  %1924 = vmatprep.subr.bf16.mxu0 %v895
  %1925 = vmatpush1.bf16.msra.mxu0 %v894
  %1926 = vmatprep.subr.bf16.mxu0 %v891
  %1927 = vmatpush1.bf16.msra.mxu0 %v890
  %1928 = vmatprep.subr.bf16.mxu0 %v887
  %1929 = vmatpush1.bf16.msra.mxu0 %v886
  %1930 = vmatprep.subr.bf16.mxu0 %v947
  %1931 = vmatpush2.bf16.msra.mxu0 %v946
  %1932 = vmatprep.subr.bf16.mxu0 %v943
  %1933 = vmatpush2.bf16.msra.mxu0 %v942
  %1934 = vmatprep.subr.bf16.mxu0 %v939
  %1935 = vmatpush2.bf16.msra.mxu0 %v938
  %1936 = vmatprep.subr.bf16.mxu0 %v935
  %1937 = vmatpush2.bf16.msra.mxu0 %v934
  %1938 = vmatprep.subr.bf16.mxu0 %v931
  %1939 = vmatpush2.bf16.msra.mxu0 %v930
  %1940 = vmatprep.subr.bf16.mxu0 %v927
  %1941 = vmatpush2.bf16.msra.mxu0 %v926
  %1942 = vmatprep.subr.bf16.mxu0 %v923
  %1943 = vmatpush2.bf16.msra.mxu0 %v922
  %1944 = vmatprep.subr.bf16.mxu0 %v919
  %1945 = vmatpush2.bf16.msra.mxu0 %v918
  %1946 = vmatprep.mubr.bf16.mxu0 %v1913
  %1947 = vmatmul.mubr.bf16.gmra.mxu0 %v1912
  %v1948 = vpop.f32.mrf.mxu0
  %v1949 = vadd.f32 %v677, %v1948
  %v1950 = vpop.f32.mrf.mxu0
  %v1951 = vadd.f32 %v681, %v1950
  %v1952 = vpop.f32.mrf.mxu0
  %v1953 = vpop.f32.mrf.mxu0
  %1954 = vdwg.mxu0
  %1955 = vmatprep.subr.bf16.mxu0 %v917
  %1956 = vmatpush1.bf16.msra.mxu0 %v916
  %1957 = vmatprep.subr.bf16.mxu0 %v913
  %1958 = vmatpush1.bf16.msra.mxu0 %v912
  %1959 = vmatprep.subr.bf16.mxu0 %v909
  %1960 = vmatpush1.bf16.msra.mxu0 %v908
  %1961 = vmatprep.subr.bf16.mxu0 %v905
  %1962 = vmatpush1.bf16.msra.mxu0 %v904
  %1963 = vmatprep.subr.bf16.mxu0 %v901
  %1964 = vmatpush1.bf16.msra.mxu0 %v900
  %1965 = vmatprep.subr.bf16.mxu0 %v897
  %1966 = vmatpush1.bf16.msra.mxu0 %v896
  %1967 = vmatprep.subr.bf16.mxu0 %v893
  %1968 = vmatpush1.bf16.msra.mxu0 %v892
  %1969 = vmatprep.subr.bf16.mxu0 %v889
  %1970 = vmatpush1.bf16.msra.mxu0 %v888
  %1971 = vmatprep.subr.bf16.mxu0 %v949
  %1972 = vmatpush2.bf16.msra.mxu0 %v948
  %1973 = vmatprep.subr.bf16.mxu0 %v945
  %1974 = vmatpush2.bf16.msra.mxu0 %v944
  %1975 = vmatprep.subr.bf16.mxu0 %v941
  %1976 = vmatpush2.bf16.msra.mxu0 %v940
  %1977 = vmatprep.subr.bf16.mxu0 %v937
  %1978 = vmatpush2.bf16.msra.mxu0 %v936
  %1979 = vmatprep.subr.bf16.mxu0 %v933
  %1980 = vmatpush2.bf16.msra.mxu0 %v932
  %1981 = vmatprep.subr.bf16.mxu0 %v929
  %1982 = vmatpush2.bf16.msra.mxu0 %v928
  %1983 = vmatprep.subr.bf16.mxu0 %v925
  %1984 = vmatpush2.bf16.msra.mxu0 %v924
  %1985 = vmatprep.subr.bf16.mxu0 %v921
  %1986 = vmatpush2.bf16.msra.mxu0 %v920
  %1987 = vmatprep.mubr.bf16.mxu0 %v1913
  %1988 = vmatmul.mubr.bf16.gmra.mxu0 %v1912
  %v1989 = vpop.f32.mrf.mxu0
  %v1990 = vadd.f32 %v685, %v1989
  %v1991 = vpop.f32.mrf.mxu0
  %v1992 = vadd.f32 %v689, %v1991
  %v1993 = vpop.f32.mrf.mxu0
  %v1994 = vpop.f32.mrf.mxu0
  %1995 = vdwg.mxu0
  %v1996 = vxor.u32 %v1949, 2147483648
  %v1997 = vmul.f32 %v1996, 1.442695
  %v1998 = vpow.pop %v1997
  %v1999 = vadd.f32 %v1998, 1.0
  %v2000 = vrcp.pop %v1999
  %v2001 = vmul.f32 1.0, %v2000
  %v2002 = vxor.u32 %v1951, 2147483648
  %v2003 = vmul.f32 %v2002, 1.442695
  %v2004 = vpow.pop %v2003
  %v2005 = vadd.f32 %v2004, 1.0
  %v2006 = vrcp.pop %v2005
  %v2007 = vmul.f32 1.0, %v2006
  %v2008 = vtanh.pop %v1990
  %v2009 = vxor.u32 %v1992, 2147483648
  %v2010 = vmul.f32 %v2009, 1.442695
  %v2011 = vpow.pop %v2010
  %v2012 = vadd.f32 %v2011, 1.0
  %v2013 = vrcp.pop %v2012
  %v2014 = vmul.f32 1.0, %v2013
  %v2015 = vmul.f32 %v2007, %v1792
  %v2016 = vmul.f32 %v2001, %v2008
  %v2017 = vadd.f32 %v2015, %v2016
  %v2018 = vtanh.pop %v2017
  %v2019 = vmul.f32 %v2014, %v2018
  %s2020 = smul.u32 5, 4
  %s2021 = smul.addr %s2020, 8
  %s2022 = scalar_lea.vmem [#allocation2], %s2021
  %v2023 = vld [vmem:[%s2022] sm:$0xff]
  %v2024 = vld [vmem:[%s2022 + $0x8] sm:$0xff]
  %v2025 = vld [vmem:[%s2022 + $0x10] sm:$0xff]
  %v2026 = vld [vmem:[%s2022 + $0x18] sm:$0xff]
  %2027 = vmatprep.subr.bf16.mxu0 %v461
  %2028 = vmatpush1.bf16.msra.mxu0 %v460
  %2029 = vmatprep.subr.bf16.mxu0 %v457
  %2030 = vmatpush1.bf16.msra.mxu0 %v456
  %2031 = vmatprep.subr.bf16.mxu0 %v453
  %2032 = vmatpush1.bf16.msra.mxu0 %v452
  %2033 = vmatprep.subr.bf16.mxu0 %v449
  %2034 = vmatpush1.bf16.msra.mxu0 %v448
  %2035 = vmatprep.subr.bf16.mxu0 %v445
  %2036 = vmatpush1.bf16.msra.mxu0 %v444
  %2037 = vmatprep.subr.bf16.mxu0 %v441
  %2038 = vmatpush1.bf16.msra.mxu0 %v440
  %2039 = vmatprep.subr.bf16.mxu0 %v437
  %2040 = vmatpush1.bf16.msra.mxu0 %v436
  %2041 = vmatprep.subr.bf16.mxu0 %v433
  %2042 = vmatpush1.bf16.msra.mxu0 %v432
  %2043 = vmatprep.subr.bf16.mxu0 0
  %2044 = vmatpush2.bf16.msra.mxu0 0
  %2045 = vmatprep.subr.bf16.mxu0 0
  %2046 = vmatpush2.bf16.msra.mxu0 0
  %2047 = vmatprep.subr.bf16.mxu0 0
  %2048 = vmatpush2.bf16.msra.mxu0 0
  %2049 = vmatprep.subr.bf16.mxu0 0
  %2050 = vmatpush2.bf16.msra.mxu0 0
  %2051 = vmatprep.subr.bf16.mxu0 0
  %2052 = vmatpush2.bf16.msra.mxu0 0
  %2053 = vmatprep.subr.bf16.mxu0 0
  %2054 = vmatpush2.bf16.msra.mxu0 0
  %2055 = vmatprep.subr.bf16.mxu0 0
  %2056 = vmatpush2.bf16.msra.mxu0 0
  %2057 = vmatprep.subr.bf16.mxu0 0
  %2058 = vmatpush2.bf16.msra.mxu0 0
  %2059 = vmatprep.mubr.bf16.mxu0 0
  %2060 = vmatmul.mubr.bf16.gmra.mxu0 %v1912
  %v2061 = vpop.f32.mrf.mxu0
  %v2062 = vadd.f32 0.0, %v2061
  %v2063 = vpop.f32.mrf.mxu0
  %v2064 = vadd.f32 0.0, %v2063
  %v2065 = vpop.f32.mrf.mxu0
  %v2066 = vpop.f32.mrf.mxu0
  %2067 = vdwg.mxu0
  %2068 = vmatprep.subr.bf16.mxu0 %v463
  %2069 = vmatpush1.bf16.msra.mxu0 %v462
  %2070 = vmatprep.subr.bf16.mxu0 %v459
  %2071 = vmatpush1.bf16.msra.mxu0 %v458
  %2072 = vmatprep.subr.bf16.mxu0 %v455
  %2073 = vmatpush1.bf16.msra.mxu0 %v454
  %2074 = vmatprep.subr.bf16.mxu0 %v451
  %2075 = vmatpush1.bf16.msra.mxu0 %v450
  %2076 = vmatprep.subr.bf16.mxu0 %v447
  %2077 = vmatpush1.bf16.msra.mxu0 %v446
  %2078 = vmatprep.subr.bf16.mxu0 %v443
  %2079 = vmatpush1.bf16.msra.mxu0 %v442
  %2080 = vmatprep.subr.bf16.mxu0 %v439
  %2081 = vmatpush1.bf16.msra.mxu0 %v438
  %2082 = vmatprep.subr.bf16.mxu0 %v435
  %2083 = vmatpush1.bf16.msra.mxu0 %v434
  %2084 = vmatprep.subr.bf16.mxu0 0
  %2085 = vmatpush2.bf16.msra.mxu0 0
  %2086 = vmatprep.subr.bf16.mxu0 0
  %2087 = vmatpush2.bf16.msra.mxu0 0
  %2088 = vmatprep.subr.bf16.mxu0 0
  %2089 = vmatpush2.bf16.msra.mxu0 0
  %2090 = vmatprep.subr.bf16.mxu0 0
  %2091 = vmatpush2.bf16.msra.mxu0 0
  %2092 = vmatprep.subr.bf16.mxu0 0
  %2093 = vmatpush2.bf16.msra.mxu0 0
  %2094 = vmatprep.subr.bf16.mxu0 0
  %2095 = vmatpush2.bf16.msra.mxu0 0
  %2096 = vmatprep.subr.bf16.mxu0 0
  %2097 = vmatpush2.bf16.msra.mxu0 0
  %2098 = vmatprep.subr.bf16.mxu0 0
  %2099 = vmatpush2.bf16.msra.mxu0 0
  %2100 = vmatprep.mubr.bf16.mxu0 0
  %2101 = vmatmul.mubr.bf16.gmra.mxu0 %v1912
  %v2102 = vpop.f32.mrf.mxu0
  %v2103 = vadd.f32 0.0, %v2102
  %v2104 = vpop.f32.mrf.mxu0
  %v2105 = vadd.f32 0.0, %v2104
  %v2106 = vpop.f32.mrf.mxu0
  %v2107 = vpop.f32.mrf.mxu0
  %2108 = vdwg.mxu0
  %v2109 = vadd.f32 %v2023, %v2062
  %v2110 = vadd.f32 %v2024, %v2064
  %v2111 = vadd.f32 %v2025, %v2103
  %v2112 = vadd.f32 %v2026, %v2105
  %v2113 = vxor.u32 %v2109, 2147483648
  %v2114 = vmul.f32 %v2113, 1.442695
  %v2115 = vpow.pop %v2114
  %v2116 = vadd.f32 %v2115, 1.0
  %v2117 = vrcp.pop %v2116
  %v2118 = vmul.f32 1.0, %v2117
  %v2119 = vxor.u32 %v2110, 2147483648
  %v2120 = vmul.f32 %v2119, 1.442695
  %v2121 = vpow.pop %v2120
  %v2122 = vadd.f32 %v2121, 1.0
  %v2123 = vrcp.pop %v2122
  %v2124 = vmul.f32 1.0, %v2123
  %v2125 = vtanh.pop %v2111
  %v2126 = vxor.u32 %v2112, 2147483648
  %v2127 = vmul.f32 %v2126, 1.442695
  %v2128 = vpow.pop %v2127
  %v2129 = vadd.f32 %v2128, 1.0
  %v2130 = vrcp.pop %v2129
  %v2131 = vmul.f32 1.0, %v2130
  %v2132 = vmul.f32 %v2124, %v1909
  %v2133 = vmul.f32 %v2118, %v2125
  %v2134 = vadd.f32 %v2132, %v2133
  %v2135 = vtanh.pop %v2134
  %v2136 = vmul.f32 %v2131, %v2135
  %v2137 = vpack.c.bf16 %v2136, %v2136
  %v2138 = vpack.c.bf16 %v2019, %v2019
  %2139 = vmatprep.subr.bf16.mxu0 %v915
  %2140 = vmatpush1.bf16.msra.mxu0 %v914
  %2141 = vmatprep.subr.bf16.mxu0 %v911
  %2142 = vmatpush1.bf16.msra.mxu0 %v910
  %2143 = vmatprep.subr.bf16.mxu0 %v907
  %2144 = vmatpush1.bf16.msra.mxu0 %v906
  %2145 = vmatprep.subr.bf16.mxu0 %v903
  %2146 = vmatpush1.bf16.msra.mxu0 %v902
  %2147 = vmatprep.subr.bf16.mxu0 %v899
  %2148 = vmatpush1.bf16.msra.mxu0 %v898
  %2149 = vmatprep.subr.bf16.mxu0 %v895
  %2150 = vmatpush1.bf16.msra.mxu0 %v894
  %2151 = vmatprep.subr.bf16.mxu0 %v891
  %2152 = vmatpush1.bf16.msra.mxu0 %v890
  %2153 = vmatprep.subr.bf16.mxu0 %v887
  %2154 = vmatpush1.bf16.msra.mxu0 %v886
  %2155 = vmatprep.subr.bf16.mxu0 %v947
  %2156 = vmatpush2.bf16.msra.mxu0 %v946
  %2157 = vmatprep.subr.bf16.mxu0 %v943
  %2158 = vmatpush2.bf16.msra.mxu0 %v942
  %2159 = vmatprep.subr.bf16.mxu0 %v939
  %2160 = vmatpush2.bf16.msra.mxu0 %v938
  %2161 = vmatprep.subr.bf16.mxu0 %v935
  %2162 = vmatpush2.bf16.msra.mxu0 %v934
  %2163 = vmatprep.subr.bf16.mxu0 %v931
  %2164 = vmatpush2.bf16.msra.mxu0 %v930
  %2165 = vmatprep.subr.bf16.mxu0 %v927
  %2166 = vmatpush2.bf16.msra.mxu0 %v926
  %2167 = vmatprep.subr.bf16.mxu0 %v923
  %2168 = vmatpush2.bf16.msra.mxu0 %v922
  %2169 = vmatprep.subr.bf16.mxu0 %v919
  %2170 = vmatpush2.bf16.msra.mxu0 %v918
  %2171 = vmatprep.mubr.bf16.mxu0 %v2138
  %2172 = vmatmul.mubr.bf16.gmra.mxu0 %v2137
  %v2173 = vpop.f32.mrf.mxu0
  %v2174 = vadd.f32 %v677, %v2173
  %v2175 = vpop.f32.mrf.mxu0
  %v2176 = vadd.f32 %v681, %v2175
  %v2177 = vpop.f32.mrf.mxu0
  %v2178 = vpop.f32.mrf.mxu0
  %2179 = vdwg.mxu0
  %2180 = vmatprep.subr.bf16.mxu0 %v917
  %2181 = vmatpush1.bf16.msra.mxu0 %v916
  %2182 = vmatprep.subr.bf16.mxu0 %v913
  %2183 = vmatpush1.bf16.msra.mxu0 %v912
  %2184 = vmatprep.subr.bf16.mxu0 %v909
  %2185 = vmatpush1.bf16.msra.mxu0 %v908
  %2186 = vmatprep.subr.bf16.mxu0 %v905
  %2187 = vmatpush1.bf16.msra.mxu0 %v904
  %2188 = vmatprep.subr.bf16.mxu0 %v901
  %2189 = vmatpush1.bf16.msra.mxu0 %v900
  %2190 = vmatprep.subr.bf16.mxu0 %v897
  %2191 = vmatpush1.bf16.msra.mxu0 %v896
  %2192 = vmatprep.subr.bf16.mxu0 %v893
  %2193 = vmatpush1.bf16.msra.mxu0 %v892
  %2194 = vmatprep.subr.bf16.mxu0 %v889
  %2195 = vmatpush1.bf16.msra.mxu0 %v888
  %2196 = vmatprep.subr.bf16.mxu0 %v949
  %2197 = vmatpush2.bf16.msra.mxu0 %v948
  %2198 = vmatprep.subr.bf16.mxu0 %v945
  %2199 = vmatpush2.bf16.msra.mxu0 %v944
  %2200 = vmatprep.subr.bf16.mxu0 %v941
  %2201 = vmatpush2.bf16.msra.mxu0 %v940
  %2202 = vmatprep.subr.bf16.mxu0 %v937
  %2203 = vmatpush2.bf16.msra.mxu0 %v936
  %2204 = vmatprep.subr.bf16.mxu0 %v933
  %2205 = vmatpush2.bf16.msra.mxu0 %v932
  %2206 = vmatprep.subr.bf16.mxu0 %v929
  %2207 = vmatpush2.bf16.msra.mxu0 %v928
  %2208 = vmatprep.subr.bf16.mxu0 %v925
  %2209 = vmatpush2.bf16.msra.mxu0 %v924
  %2210 = vmatprep.subr.bf16.mxu0 %v921
  %2211 = vmatpush2.bf16.msra.mxu0 %v920
  %2212 = vmatprep.mubr.bf16.mxu0 %v2138
  %2213 = vmatmul.mubr.bf16.gmra.mxu0 %v2137
  %v2214 = vpop.f32.mrf.mxu0
  %v2215 = vadd.f32 %v685, %v2214
  %v2216 = vpop.f32.mrf.mxu0
  %v2217 = vadd.f32 %v689, %v2216
  %v2218 = vpop.f32.mrf.mxu0
  %v2219 = vpop.f32.mrf.mxu0
  %2220 = vdwg.mxu0
  %v2221 = vxor.u32 %v2174, 2147483648
  %v2222 = vmul.f32 %v2221, 1.442695
  %v2223 = vpow.pop %v2222
  %v2224 = vadd.f32 %v2223, 1.0
  %v2225 = vrcp.pop %v2224
  %v2226 = vmul.f32 1.0, %v2225
  %v2227 = vxor.u32 %v2176, 2147483648
  %v2228 = vmul.f32 %v2227, 1.442695
  %v2229 = vpow.pop %v2228
  %v2230 = vadd.f32 %v2229, 1.0
  %v2231 = vrcp.pop %v2230
  %v2232 = vmul.f32 1.0, %v2231
  %v2233 = vtanh.pop %v2215
  %v2234 = vxor.u32 %v2217, 2147483648
  %v2235 = vmul.f32 %v2234, 1.442695
  %v2236 = vpow.pop %v2235
  %v2237 = vadd.f32 %v2236, 1.0
  %v2238 = vrcp.pop %v2237
  %v2239 = vmul.f32 1.0, %v2238
  %v2240 = vmul.f32 %v2232, %v2017
  %v2241 = vmul.f32 %v2226, %v2233
  %v2242 = vadd.f32 %v2240, %v2241
  %v2243 = vtanh.pop %v2242
  %v2244 = vmul.f32 %v2239, %v2243
  %s2245 = smul.u32 6, 4
  %s2246 = smul.addr %s2245, 8
  %s2247 = scalar_lea.vmem [#allocation2], %s2246
  %v2248 = vld [vmem:[%s2247] sm:$0xff]
  %v2249 = vld [vmem:[%s2247 + $0x8] sm:$0xff]
  %v2250 = vld [vmem:[%s2247 + $0x10] sm:$0xff]
  %v2251 = vld [vmem:[%s2247 + $0x18] sm:$0xff]
  %2252 = vmatprep.subr.bf16.mxu0 %v461
  %2253 = vmatpush1.bf16.msra.mxu0 %v460
  %2254 = vmatprep.subr.bf16.mxu0 %v457
  %2255 = vmatpush1.bf16.msra.mxu0 %v456
  %2256 = vmatprep.subr.bf16.mxu0 %v453
  %2257 = vmatpush1.bf16.msra.mxu0 %v452
  %2258 = vmatprep.subr.bf16.mxu0 %v449
  %2259 = vmatpush1.bf16.msra.mxu0 %v448
  %2260 = vmatprep.subr.bf16.mxu0 %v445
  %2261 = vmatpush1.bf16.msra.mxu0 %v444
  %2262 = vmatprep.subr.bf16.mxu0 %v441
  %2263 = vmatpush1.bf16.msra.mxu0 %v440
  %2264 = vmatprep.subr.bf16.mxu0 %v437
  %2265 = vmatpush1.bf16.msra.mxu0 %v436
  %2266 = vmatprep.subr.bf16.mxu0 %v433
  %2267 = vmatpush1.bf16.msra.mxu0 %v432
  %2268 = vmatprep.subr.bf16.mxu0 0
  %2269 = vmatpush2.bf16.msra.mxu0 0
  %2270 = vmatprep.subr.bf16.mxu0 0
  %2271 = vmatpush2.bf16.msra.mxu0 0
  %2272 = vmatprep.subr.bf16.mxu0 0
  %2273 = vmatpush2.bf16.msra.mxu0 0
  %2274 = vmatprep.subr.bf16.mxu0 0
  %2275 = vmatpush2.bf16.msra.mxu0 0
  %2276 = vmatprep.subr.bf16.mxu0 0
  %2277 = vmatpush2.bf16.msra.mxu0 0
  %2278 = vmatprep.subr.bf16.mxu0 0
  %2279 = vmatpush2.bf16.msra.mxu0 0
  %2280 = vmatprep.subr.bf16.mxu0 0
  %2281 = vmatpush2.bf16.msra.mxu0 0
  %2282 = vmatprep.subr.bf16.mxu0 0
  %2283 = vmatpush2.bf16.msra.mxu0 0
  %2284 = vmatprep.mubr.bf16.mxu0 0
  %2285 = vmatmul.mubr.bf16.gmra.mxu0 %v2137
  %v2286 = vpop.f32.mrf.mxu0
  %v2287 = vadd.f32 0.0, %v2286
  %v2288 = vpop.f32.mrf.mxu0
  %v2289 = vadd.f32 0.0, %v2288
  %v2290 = vpop.f32.mrf.mxu0
  %v2291 = vpop.f32.mrf.mxu0
  %2292 = vdwg.mxu0
  %2293 = vmatprep.subr.bf16.mxu0 %v463
  %2294 = vmatpush1.bf16.msra.mxu0 %v462
  %2295 = vmatprep.subr.bf16.mxu0 %v459
  %2296 = vmatpush1.bf16.msra.mxu0 %v458
  %2297 = vmatprep.subr.bf16.mxu0 %v455
  %2298 = vmatpush1.bf16.msra.mxu0 %v454
  %2299 = vmatprep.subr.bf16.mxu0 %v451
  %2300 = vmatpush1.bf16.msra.mxu0 %v450
  %2301 = vmatprep.subr.bf16.mxu0 %v447
  %2302 = vmatpush1.bf16.msra.mxu0 %v446
  %2303 = vmatprep.subr.bf16.mxu0 %v443
  %2304 = vmatpush1.bf16.msra.mxu0 %v442
  %2305 = vmatprep.subr.bf16.mxu0 %v439
  %2306 = vmatpush1.bf16.msra.mxu0 %v438
  %2307 = vmatprep.subr.bf16.mxu0 %v435
  %2308 = vmatpush1.bf16.msra.mxu0 %v434
  %2309 = vmatprep.subr.bf16.mxu0 0
  %2310 = vmatpush2.bf16.msra.mxu0 0
  %2311 = vmatprep.subr.bf16.mxu0 0
  %2312 = vmatpush2.bf16.msra.mxu0 0
  %2313 = vmatprep.subr.bf16.mxu0 0
  %2314 = vmatpush2.bf16.msra.mxu0 0
  %2315 = vmatprep.subr.bf16.mxu0 0
  %2316 = vmatpush2.bf16.msra.mxu0 0
  %2317 = vmatprep.subr.bf16.mxu0 0
  %2318 = vmatpush2.bf16.msra.mxu0 0
  %2319 = vmatprep.subr.bf16.mxu0 0
  %2320 = vmatpush2.bf16.msra.mxu0 0
  %2321 = vmatprep.subr.bf16.mxu0 0
  %2322 = vmatpush2.bf16.msra.mxu0 0
  %2323 = vmatprep.subr.bf16.mxu0 0
  %2324 = vmatpush2.bf16.msra.mxu0 0
  %2325 = vmatprep.mubr.bf16.mxu0 0
  %2326 = vmatmul.mubr.bf16.gmra.mxu0 %v2137
  %v2327 = vpop.f32.mrf.mxu0
  %v2328 = vadd.f32 0.0, %v2327
  %v2329 = vpop.f32.mrf.mxu0
  %v2330 = vadd.f32 0.0, %v2329
  %v2331 = vpop.f32.mrf.mxu0
  %v2332 = vpop.f32.mrf.mxu0
  %2333 = vdwg.mxu0
  %v2334 = vadd.f32 %v2248, %v2287
  %v2335 = vadd.f32 %v2249, %v2289
  %v2336 = vadd.f32 %v2250, %v2328
  %v2337 = vadd.f32 %v2251, %v2330
  %v2338 = vxor.u32 %v2334, 2147483648
  %v2339 = vmul.f32 %v2338, 1.442695
  %v2340 = vpow.pop %v2339
  %v2341 = vadd.f32 %v2340, 1.0
  %v2342 = vrcp.pop %v2341
  %v2343 = vmul.f32 1.0, %v2342
  %v2344 = vxor.u32 %v2335, 2147483648
  %v2345 = vmul.f32 %v2344, 1.442695
  %v2346 = vpow.pop %v2345
  %v2347 = vadd.f32 %v2346, 1.0
  %v2348 = vrcp.pop %v2347
  %v2349 = vmul.f32 1.0, %v2348
  %v2350 = vtanh.pop %v2336
  %v2351 = vxor.u32 %v2337, 2147483648
  %v2352 = vmul.f32 %v2351, 1.442695
  %v2353 = vpow.pop %v2352
  %v2354 = vadd.f32 %v2353, 1.0
  %v2355 = vrcp.pop %v2354
  %v2356 = vmul.f32 1.0, %v2355
  %v2357 = vmul.f32 %v2349, %v2134
  %v2358 = vmul.f32 %v2343, %v2350
  %v2359 = vadd.f32 %v2357, %v2358
  %v2360 = vtanh.pop %v2359
  %v2361 = vmul.f32 %v2356, %v2360
  %v2362 = vpack.c.bf16 %v2361, %v2361
  %v2363 = vpack.c.bf16 %v2244, %v2244
  %2364 = vmatprep.subr.bf16.mxu0 %v915
  %2365 = vmatpush1.bf16.msra.mxu0 %v914
  %2366 = vmatprep.subr.bf16.mxu0 %v911
  %2367 = vmatpush1.bf16.msra.mxu0 %v910
  %2368 = vmatprep.subr.bf16.mxu0 %v907
  %2369 = vmatpush1.bf16.msra.mxu0 %v906
  %2370 = vmatprep.subr.bf16.mxu0 %v903
  %2371 = vmatpush1.bf16.msra.mxu0 %v902
  %2372 = vmatprep.subr.bf16.mxu0 %v899
  %2373 = vmatpush1.bf16.msra.mxu0 %v898
  %2374 = vmatprep.subr.bf16.mxu0 %v895
  %2375 = vmatpush1.bf16.msra.mxu0 %v894
  %2376 = vmatprep.subr.bf16.mxu0 %v891
  %2377 = vmatpush1.bf16.msra.mxu0 %v890
  %2378 = vmatprep.subr.bf16.mxu0 %v887
  %2379 = vmatpush1.bf16.msra.mxu0 %v886
  %2380 = vmatprep.subr.bf16.mxu0 %v947
  %2381 = vmatpush2.bf16.msra.mxu0 %v946
  %2382 = vmatprep.subr.bf16.mxu0 %v943
  %2383 = vmatpush2.bf16.msra.mxu0 %v942
  %2384 = vmatprep.subr.bf16.mxu0 %v939
  %2385 = vmatpush2.bf16.msra.mxu0 %v938
  %2386 = vmatprep.subr.bf16.mxu0 %v935
  %2387 = vmatpush2.bf16.msra.mxu0 %v934
  %2388 = vmatprep.subr.bf16.mxu0 %v931
  %2389 = vmatpush2.bf16.msra.mxu0 %v930
  %2390 = vmatprep.subr.bf16.mxu0 %v927
  %2391 = vmatpush2.bf16.msra.mxu0 %v926
  %2392 = vmatprep.subr.bf16.mxu0 %v923
  %2393 = vmatpush2.bf16.msra.mxu0 %v922
  %2394 = vmatprep.subr.bf16.mxu0 %v919
  %2395 = vmatpush2.bf16.msra.mxu0 %v918
  %2396 = vmatprep.mubr.bf16.mxu0 %v2363
  %2397 = vmatmul.mubr.bf16.gmra.mxu0 %v2362
  %v2398 = vpop.f32.mrf.mxu0
  %v2399 = vadd.f32 %v677, %v2398
  %v2400 = vpop.f32.mrf.mxu0
  %v2401 = vadd.f32 %v681, %v2400
  %v2402 = vpop.f32.mrf.mxu0
  %v2403 = vpop.f32.mrf.mxu0
  %2404 = vdwg.mxu0
  %2405 = vmatprep.subr.bf16.mxu0 %v917
  %2406 = vmatpush1.bf16.msra.mxu0 %v916
  %2407 = vmatprep.subr.bf16.mxu0 %v913
  %2408 = vmatpush1.bf16.msra.mxu0 %v912
  %2409 = vmatprep.subr.bf16.mxu0 %v909
  %2410 = vmatpush1.bf16.msra.mxu0 %v908
  %2411 = vmatprep.subr.bf16.mxu0 %v905
  %2412 = vmatpush1.bf16.msra.mxu0 %v904
  %2413 = vmatprep.subr.bf16.mxu0 %v901
  %2414 = vmatpush1.bf16.msra.mxu0 %v900
  %2415 = vmatprep.subr.bf16.mxu0 %v897
  %2416 = vmatpush1.bf16.msra.mxu0 %v896
  %2417 = vmatprep.subr.bf16.mxu0 %v893
  %2418 = vmatpush1.bf16.msra.mxu0 %v892
  %2419 = vmatprep.subr.bf16.mxu0 %v889
  %2420 = vmatpush1.bf16.msra.mxu0 %v888
  %2421 = vmatprep.subr.bf16.mxu0 %v949
  %2422 = vmatpush2.bf16.msra.mxu0 %v948
  %2423 = vmatprep.subr.bf16.mxu0 %v945
  %2424 = vmatpush2.bf16.msra.mxu0 %v944
  %2425 = vmatprep.subr.bf16.mxu0 %v941
  %2426 = vmatpush2.bf16.msra.mxu0 %v940
  %2427 = vmatprep.subr.bf16.mxu0 %v937
  %2428 = vmatpush2.bf16.msra.mxu0 %v936
  %2429 = vmatprep.subr.bf16.mxu0 %v933
  %2430 = vmatpush2.bf16.msra.mxu0 %v932
  %2431 = vmatprep.subr.bf16.mxu0 %v929
  %2432 = vmatpush2.bf16.msra.mxu0 %v928
  %2433 = vmatprep.subr.bf16.mxu0 %v925
  %2434 = vmatpush2.bf16.msra.mxu0 %v924
  %2435 = vmatprep.subr.bf16.mxu0 %v921
  %2436 = vmatpush2.bf16.msra.mxu0 %v920
  %2437 = vmatprep.mubr.bf16.mxu0 %v2363
  %2438 = vmatmul.mubr.bf16.gmra.mxu0 %v2362
  %v2439 = vpop.f32.mrf.mxu0
  %v2440 = vadd.f32 %v685, %v2439
  %v2441 = vpop.f32.mrf.mxu0
  %v2442 = vadd.f32 %v689, %v2441
  %v2443 = vpop.f32.mrf.mxu0
  %v2444 = vpop.f32.mrf.mxu0
  %2445 = vdwg.mxu0
  %v2446 = vxor.u32 %v2399, 2147483648
  %v2447 = vmul.f32 %v2446, 1.442695
  %v2448 = vpow.pop %v2447
  %v2449 = vadd.f32 %v2448, 1.0
  %v2450 = vrcp.pop %v2449
  %v2451 = vmul.f32 1.0, %v2450
  %v2452 = vxor.u32 %v2401, 2147483648
  %v2453 = vmul.f32 %v2452, 1.442695
  %v2454 = vpow.pop %v2453
  %v2455 = vadd.f32 %v2454, 1.0
  %v2456 = vrcp.pop %v2455
  %v2457 = vmul.f32 1.0, %v2456
  %v2458 = vtanh.pop %v2440
  %v2459 = vxor.u32 %v2442, 2147483648
  %v2460 = vmul.f32 %v2459, 1.442695
  %v2461 = vpow.pop %v2460
  %v2462 = vadd.f32 %v2461, 1.0
  %v2463 = vrcp.pop %v2462
  %v2464 = vmul.f32 1.0, %v2463
  %v2465 = vmul.f32 %v2457, %v2242
  %v2466 = vmul.f32 %v2451, %v2458
  %v2467 = vadd.f32 %v2465, %v2466
  %v2468 = vtanh.pop %v2467
  %v2469 = vmul.f32 %v2464, %v2468
  %s2470 = smul.u32 7, 4
  %s2471 = smul.addr %s2470, 8
  %s2472 = scalar_lea.vmem [#allocation2], %s2471
  %v2473 = vld [vmem:[%s2472] sm:$0xff]
  %v2474 = vld [vmem:[%s2472 + $0x8] sm:$0xff]
  %v2475 = vld [vmem:[%s2472 + $0x10] sm:$0xff]
  %v2476 = vld [vmem:[%s2472 + $0x18] sm:$0xff]
  %2477 = vmatprep.subr.bf16.mxu0 %v461
  %2478 = vmatpush1.bf16.msra.mxu0 %v460
  %2479 = vmatprep.subr.bf16.mxu0 %v457
  %2480 = vmatpush1.bf16.msra.mxu0 %v456
  %2481 = vmatprep.subr.bf16.mxu0 %v453
  %2482 = vmatpush1.bf16.msra.mxu0 %v452
  %2483 = vmatprep.subr.bf16.mxu0 %v449
  %2484 = vmatpush1.bf16.msra.mxu0 %v448
  %2485 = vmatprep.subr.bf16.mxu0 %v445
  %2486 = vmatpush1.bf16.msra.mxu0 %v444
  %2487 = vmatprep.subr.bf16.mxu0 %v441
  %2488 = vmatpush1.bf16.msra.mxu0 %v440
  %2489 = vmatprep.subr.bf16.mxu0 %v437
  %2490 = vmatpush1.bf16.msra.mxu0 %v436
  %2491 = vmatprep.subr.bf16.mxu0 %v433
  %2492 = vmatpush1.bf16.msra.mxu0 %v432
  %2493 = vmatprep.subr.bf16.mxu0 0
  %2494 = vmatpush2.bf16.msra.mxu0 0
  %2495 = vmatprep.subr.bf16.mxu0 0
  %2496 = vmatpush2.bf16.msra.mxu0 0
  %2497 = vmatprep.subr.bf16.mxu0 0
  %2498 = vmatpush2.bf16.msra.mxu0 0
  %2499 = vmatprep.subr.bf16.mxu0 0
  %2500 = vmatpush2.bf16.msra.mxu0 0
  %2501 = vmatprep.subr.bf16.mxu0 0
  %2502 = vmatpush2.bf16.msra.mxu0 0
  %2503 = vmatprep.subr.bf16.mxu0 0
  %2504 = vmatpush2.bf16.msra.mxu0 0
  %2505 = vmatprep.subr.bf16.mxu0 0
  %2506 = vmatpush2.bf16.msra.mxu0 0
  %2507 = vmatprep.subr.bf16.mxu0 0
  %2508 = vmatpush2.bf16.msra.mxu0 0
  %2509 = vmatprep.mubr.bf16.mxu0 0
  %2510 = vmatmul.mubr.bf16.gmra.mxu0 %v2362
  %v2511 = vpop.f32.mrf.mxu0
  %v2512 = vadd.f32 0.0, %v2511
  %v2513 = vpop.f32.mrf.mxu0
  %v2514 = vadd.f32 0.0, %v2513
  %v2515 = vpop.f32.mrf.mxu0
  %v2516 = vpop.f32.mrf.mxu0
  %2517 = vdwg.mxu0
  %2518 = vmatprep.subr.bf16.mxu0 %v463
  %2519 = vmatpush1.bf16.msra.mxu0 %v462
  %2520 = vmatprep.subr.bf16.mxu0 %v459
  %2521 = vmatpush1.bf16.msra.mxu0 %v458
  %2522 = vmatprep.subr.bf16.mxu0 %v455
  %2523 = vmatpush1.bf16.msra.mxu0 %v454
  %2524 = vmatprep.subr.bf16.mxu0 %v451
  %2525 = vmatpush1.bf16.msra.mxu0 %v450
  %2526 = vmatprep.subr.bf16.mxu0 %v447
  %2527 = vmatpush1.bf16.msra.mxu0 %v446
  %2528 = vmatprep.subr.bf16.mxu0 %v443
  %2529 = vmatpush1.bf16.msra.mxu0 %v442
  %2530 = vmatprep.subr.bf16.mxu0 %v439
  %2531 = vmatpush1.bf16.msra.mxu0 %v438
  %2532 = vmatprep.subr.bf16.mxu0 %v435
  %2533 = vmatpush1.bf16.msra.mxu0 %v434
  %2534 = vmatprep.subr.bf16.mxu0 0
  %2535 = vmatpush2.bf16.msra.mxu0 0
  %2536 = vmatprep.subr.bf16.mxu0 0
  %2537 = vmatpush2.bf16.msra.mxu0 0
  %2538 = vmatprep.subr.bf16.mxu0 0
  %2539 = vmatpush2.bf16.msra.mxu0 0
  %2540 = vmatprep.subr.bf16.mxu0 0
  %2541 = vmatpush2.bf16.msra.mxu0 0
  %2542 = vmatprep.subr.bf16.mxu0 0
  %2543 = vmatpush2.bf16.msra.mxu0 0
  %2544 = vmatprep.subr.bf16.mxu0 0
  %2545 = vmatpush2.bf16.msra.mxu0 0
  %2546 = vmatprep.subr.bf16.mxu0 0
  %2547 = vmatpush2.bf16.msra.mxu0 0
  %2548 = vmatprep.subr.bf16.mxu0 0
  %2549 = vmatpush2.bf16.msra.mxu0 0
  %2550 = vmatprep.mubr.bf16.mxu0 0
  %2551 = vmatmul.mubr.bf16.gmra.mxu0 %v2362
  %v2552 = vpop.f32.mrf.mxu0
  %v2553 = vadd.f32 0.0, %v2552
  %v2554 = vpop.f32.mrf.mxu0
  %v2555 = vadd.f32 0.0, %v2554
  %v2556 = vpop.f32.mrf.mxu0
  %v2557 = vpop.f32.mrf.mxu0
  %2558 = vdwg.mxu0
  %v2559 = vadd.f32 %v2473, %v2512
  %v2560 = vadd.f32 %v2474, %v2514
  %v2561 = vadd.f32 %v2475, %v2553
  %v2562 = vadd.f32 %v2476, %v2555
  %v2563 = vxor.u32 %v2559, 2147483648
  %v2564 = vmul.f32 %v2563, 1.442695
  %v2565 = vpow.pop %v2564
  %v2566 = vadd.f32 %v2565, 1.0
  %v2567 = vrcp.pop %v2566
  %v2568 = vmul.f32 1.0, %v2567
  %v2569 = vxor.u32 %v2560, 2147483648
  %v2570 = vmul.f32 %v2569, 1.442695
  %v2571 = vpow.pop %v2570
  %v2572 = vadd.f32 %v2571, 1.0
  %v2573 = vrcp.pop %v2572
  %v2574 = vmul.f32 1.0, %v2573
  %v2575 = vtanh.pop %v2561
  %v2576 = vxor.u32 %v2562, 2147483648
  %v2577 = vmul.f32 %v2576, 1.442695
  %v2578 = vpow.pop %v2577
  %v2579 = vadd.f32 %v2578, 1.0
  %v2580 = vrcp.pop %v2579
  %v2581 = vmul.f32 1.0, %v2580
  %v2582 = vmul.f32 %v2574, %v2359
  %v2583 = vmul.f32 %v2568, %v2575
  %v2584 = vadd.f32 %v2582, %v2583
  %v2585 = vtanh.pop %v2584
  %v2586 = vmul.f32 %v2581, %v2585
  %v2587 = vpack.c.bf16 %v2586, %v2586
  %v2588 = vpack.c.bf16 %v2469, %v2469
  %2589 = vmatprep.subr.bf16.mxu0 %v915
  %2590 = vmatpush1.bf16.msra.mxu0 %v914
  %2591 = vmatprep.subr.bf16.mxu0 %v911
  %2592 = vmatpush1.bf16.msra.mxu0 %v910
  %2593 = vmatprep.subr.bf16.mxu0 %v907
  %2594 = vmatpush1.bf16.msra.mxu0 %v906
  %2595 = vmatprep.subr.bf16.mxu0 %v903
  %2596 = vmatpush1.bf16.msra.mxu0 %v902
  %2597 = vmatprep.subr.bf16.mxu0 %v899
  %2598 = vmatpush1.bf16.msra.mxu0 %v898
  %2599 = vmatprep.subr.bf16.mxu0 %v895
  %2600 = vmatpush1.bf16.msra.mxu0 %v894
  %2601 = vmatprep.subr.bf16.mxu0 %v891
  %2602 = vmatpush1.bf16.msra.mxu0 %v890
  %2603 = vmatprep.subr.bf16.mxu0 %v887
  %2604 = vmatpush1.bf16.msra.mxu0 %v886
  %2605 = vmatprep.subr.bf16.mxu0 %v947
  %2606 = vmatpush2.bf16.msra.mxu0 %v946
  %2607 = vmatprep.subr.bf16.mxu0 %v943
  %2608 = vmatpush2.bf16.msra.mxu0 %v942
  %2609 = vmatprep.subr.bf16.mxu0 %v939
  %2610 = vmatpush2.bf16.msra.mxu0 %v938
  %2611 = vmatprep.subr.bf16.mxu0 %v935
  %2612 = vmatpush2.bf16.msra.mxu0 %v934
  %2613 = vmatprep.subr.bf16.mxu0 %v931
  %2614 = vmatpush2.bf16.msra.mxu0 %v930
  %2615 = vmatprep.subr.bf16.mxu0 %v927
  %2616 = vmatpush2.bf16.msra.mxu0 %v926
  %2617 = vmatprep.subr.bf16.mxu0 %v923
  %2618 = vmatpush2.bf16.msra.mxu0 %v922
  %2619 = vmatprep.subr.bf16.mxu0 %v919
  %2620 = vmatpush2.bf16.msra.mxu0 %v918
  %2621 = vmatprep.mubr.bf16.mxu0 %v2588
  %2622 = vmatmul.mubr.bf16.gmra.mxu0 %v2587
  %v2623 = vpop.f32.mrf.mxu0
  %v2624 = vadd.f32 %v677, %v2623
  %v2625 = vpop.f32.mrf.mxu0
  %v2626 = vadd.f32 %v681, %v2625
  %v2627 = vpop.f32.mrf.mxu0
  %v2628 = vpop.f32.mrf.mxu0
  %2629 = vdwg.mxu0
  %2630 = vmatprep.subr.bf16.mxu0 %v917
  %2631 = vmatpush1.bf16.msra.mxu0 %v916
  %2632 = vmatprep.subr.bf16.mxu0 %v913
  %2633 = vmatpush1.bf16.msra.mxu0 %v912
  %2634 = vmatprep.subr.bf16.mxu0 %v909
  %2635 = vmatpush1.bf16.msra.mxu0 %v908
  %2636 = vmatprep.subr.bf16.mxu0 %v905
  %2637 = vmatpush1.bf16.msra.mxu0 %v904
  %2638 = vmatprep.subr.bf16.mxu0 %v901
  %2639 = vmatpush1.bf16.msra.mxu0 %v900
  %2640 = vmatprep.subr.bf16.mxu0 %v897
  %2641 = vmatpush1.bf16.msra.mxu0 %v896
  %2642 = vmatprep.subr.bf16.mxu0 %v893
  %2643 = vmatpush1.bf16.msra.mxu0 %v892
  %2644 = vmatprep.subr.bf16.mxu0 %v889
  %2645 = vmatpush1.bf16.msra.mxu0 %v888
  %2646 = vmatprep.subr.bf16.mxu0 %v949
  %2647 = vmatpush2.bf16.msra.mxu0 %v948
  %2648 = vmatprep.subr.bf16.mxu0 %v945
  %2649 = vmatpush2.bf16.msra.mxu0 %v944
  %2650 = vmatprep.subr.bf16.mxu0 %v941
  %2651 = vmatpush2.bf16.msra.mxu0 %v940
  %2652 = vmatprep.subr.bf16.mxu0 %v937
  %2653 = vmatpush2.bf16.msra.mxu0 %v936
  %2654 = vmatprep.subr.bf16.mxu0 %v933
  %2655 = vmatpush2.bf16.msra.mxu0 %v932
  %2656 = vmatprep.subr.bf16.mxu0 %v929
  %2657 = vmatpush2.bf16.msra.mxu0 %v928
  %2658 = vmatprep.subr.bf16.mxu0 %v925
  %2659 = vmatpush2.bf16.msra.mxu0 %v924
  %2660 = vmatprep.subr.bf16.mxu0 %v921
  %2661 = vmatpush2.bf16.msra.mxu0 %v920
  %2662 = vmatprep.mubr.bf16.mxu0 %v2588
  %2663 = vmatmul.mubr.bf16.gmra.mxu0 %v2587
  %v2664 = vpop.f32.mrf.mxu0
  %v2665 = vadd.f32 %v685, %v2664
  %v2666 = vpop.f32.mrf.mxu0
  %v2667 = vadd.f32 %v689, %v2666
  %v2668 = vpop.f32.mrf.mxu0
  %v2669 = vpop.f32.mrf.mxu0
  %2670 = vdwg.mxu0
  %v2671 = vxor.u32 %v2624, 2147483648
  %v2672 = vmul.f32 %v2671, 1.442695
  %v2673 = vpow.pop %v2672
  %v2674 = vadd.f32 %v2673, 1.0
  %v2675 = vrcp.pop %v2674
  %v2676 = vmul.f32 1.0, %v2675
  %v2677 = vxor.u32 %v2626, 2147483648
  %v2678 = vmul.f32 %v2677, 1.442695
  %v2679 = vpow.pop %v2678
  %v2680 = vadd.f32 %v2679, 1.0
  %v2681 = vrcp.pop %v2680
  %v2682 = vmul.f32 1.0, %v2681
  %v2683 = vtanh.pop %v2665
  %v2684 = vxor.u32 %v2667, 2147483648
  %v2685 = vmul.f32 %v2684, 1.442695
  %v2686 = vpow.pop %v2685
  %v2687 = vadd.f32 %v2686, 1.0
  %v2688 = vrcp.pop %v2687
  %v2689 = vmul.f32 1.0, %v2688
  %v2690 = vmul.f32 %v2682, %v2467
  %v2691 = vmul.f32 %v2676, %v2683
  %v2692 = vadd.f32 %v2690, %v2691
  %v2693 = vtanh.pop %v2692
  %v2694 = vmul.f32 %v2689, %v2693
  %2695 = vst [vmem:[%s6] sm:$0xff] %v2694
  // Predicated region
  $region26: #{lstm_model_forward.1} parent=0 // pred_check
    _
  $region27: #{lstm_model_forward.1} parent=0 // pred_check_branch
    %2697 = sbr.rel (0) target = $region29
  $region28: #{lstm_model_forward.1} parent=0 // pred_region
    _
  $region29: #{lstm_model_forward.1} parent=0 // pred_fallthru
    _
  // Predicated region
  $region30: #{lstm_model_forward.1} parent=0 // pred_check
    _
  $region31: #{lstm_model_forward.1} parent=0 // pred_check_branch
    %2699 = sbr.rel (0) target = $region33
  $region32: #{lstm_model_forward.1} parent=0 // pred_region
    _
  $region33: #{lstm_model_forward.1} parent=0 // pred_fallthru
    _

</llo_original>
